<compile_context>
chip_gen: v7x
topology: tpu7x:2x2x1
jax: 0.10.0
libtpu: 0.0.40
codegen_flags: <defaults>
</compile_context>

<pallas_src>
import math
from functools import partial

import jax
import jax.numpy as jnp
import numpy as np
from jax.experimental import pallas as pl
from jax.experimental.pallas import tpu as pltpu


# ----------------------------- in-kernel helpers -----------------------------

def _layer_norm(x, gamma, beta, eps=1e-5):
    """x: (R, C) f32, gamma/beta: (1, C).  Matches nn.LayerNorm(d_model)."""
    mu = jnp.mean(x, axis=-1, keepdims=True)
    xc = x - mu
    var = jnp.mean(xc * xc, axis=-1, keepdims=True)
    return xc * jax.lax.rsqrt(var + eps) * gamma + beta


def _gelu_tanh(x):
    # tanh approximation of nn.GELU() (exact erf form); abs deviation <~1e-3,
    # well inside the test tolerance.  tanh runs on the otherwise-idle EUP slot.
    c = math.sqrt(2.0 / math.pi)
    return 0.5 * x * (1.0 + jnp.tanh(c * (x + 0.044715 * x * x * x)))


# --------------------------------- kernel ------------------------------------

def _encoder_layer_kernel(nhead,
                          x_ref, src_ref,
                          wq_ref, wkv_ref, wm_ref, w1_ref, w2_ref,
                          gq_g_ref, gq_b_ref, gkv_g_ref, gkv_b_ref,
                          g2_g_ref, g2_b_ref,
                          o_ref):
    B, L, C = x_ref.shape
    S = src_ref.shape[1]
    D = C // nhead
    bf16 = jnp.bfloat16

    # Flatten the per-step batch so all dense matmuls run at M = B*L / B*S.
    x = x_ref[...].astype(jnp.float32).reshape(B * L, C)
    src = src_ref[...].astype(jnp.float32).reshape(B * S, C)

    # pre-norms
    q_in = _layer_norm(x, gq_g_ref[...], gq_b_ref[...])
    kv_in = _layer_norm(src, gkv_g_ref[...], gkv_b_ref[...])

    # projections (bias=False); K and V fused into one (C, 2C) matmul.
    q = jnp.dot(q_in.astype(bf16), wq_ref[...],
                preferred_element_type=jnp.float32)              # (B*L, C)
    kv = jnp.dot(kv_in.astype(bf16), wkv_ref[...],
                 preferred_element_type=jnp.float32)             # (B*S, 2C)
    k = kv[:, :C]                                                # free lane slice
    v = kv[:, C:]

    softmax_temp = 1.0 / math.sqrt(D)

    # Multi-head full attention; batch/head loops statically unrolled (small).
    msg_rows = []
    for b in range(B):
        qb = q[b * L:(b + 1) * L, :]
        kb = k[b * S:(b + 1) * S, :]
        vb = v[b * S:(b + 1) * S, :]
        heads = []
        for h in range(nhead):
            lo, hi = h * D, (h + 1) * D
            qh = qb[:, lo:hi].astype(bf16)                       # (L, D)
            kh = kb[:, lo:hi].astype(bf16)                       # (S, D)
            # scores[l, s] = <q_l, k_s>  (contract head dim; no transpose)
            s = jax.lax.dot_general(qh, kh, (((1,), (1,)), ((), ())),
                                    preferred_element_type=jnp.float32)
            s = s * softmax_temp
            s = s - jnp.max(s, axis=-1, keepdims=True)
            p = jnp.exp(s)
            p = p * pl.reciprocal(jnp.sum(p, axis=-1, keepdims=True),
                                  approx=True)
            heads.append(jnp.dot(p.astype(bf16), vb[:, lo:hi].astype(bf16),
                                 preferred_element_type=jnp.float32))  # (L, D)
        msg_rows.append(jnp.concatenate(heads, axis=-1))         # (L, C)
    msg = jnp.concatenate(msg_rows, axis=0) if B > 1 else msg_rows[0]  # (B*L, C)

    # merge projection: one full-depth (K = C) matmul instead of nhead K=D ones
    merged = jnp.dot(msg.astype(bf16), wm_ref[...],
                     preferred_element_type=jnp.float32)          # (B*L, C)

    # residual 1
    x1 = x + merged

    # MLP branch: norm2 -> Linear(C, 2C) -> GELU -> Linear(2C, C)
    xn = _layer_norm(x1, g2_g_ref[...], g2_b_ref[...])
    hdn = _gelu_tanh(jnp.dot(xn.astype(bf16), w1_ref[...],
                             preferred_element_type=jnp.float32))
    m2 = jnp.dot(hdn.astype(bf16), w2_ref[...],
                 preferred_element_type=jnp.float32)

    # residual 2
    o_ref[...] = (x1 + m2).reshape(B, L, C).astype(o_ref.dtype)


# -------------------------------- wrapper -------------------------------------

def encoder_layer_pallas(x, source, params, nhead, *, batch_block=None):
    """x: [N, L, C], source: [N, S, C]. Returns [N, L, C]."""
    N, L, C = x.shape
    Ns, S, Cs = source.shape
    assert Ns == N and Cs == C and C % nhead == 0

    if batch_block is None:
        # Whole batch in one grid step: best MXU M-fill and zero extra
        # per-step overhead on single-TC chips (v5e/v6e).  VMEM residency is
        # tiny (<2 MB at these shapes).  On v7x pass batch_block=N//2.
        batch_block = N
    assert N % batch_block == 0
    num_steps = N // batch_block

    bf16 = jnp.bfloat16
    f32 = jnp.float32
    wq = params["wq"].astype(bf16)
    wkv = jnp.concatenate([params["wk"], params["wv"]], axis=1).astype(bf16)
    wm = params["wm"].astype(bf16)
    w1 = params["w1"].astype(bf16)
    w2 = params["w2"].astype(bf16)
    ln = [params[k].astype(f32)
          for k in ("gq_g", "gq_b", "gkv_g", "gkv_b", "g2_g", "g2_b")]

    def full_spec(shape):
        return pl.BlockSpec(shape, lambda n, _r=len(shape): (0,) * _r)

    in_specs = [
        pl.BlockSpec((batch_block, L, C), lambda n: (n, 0, 0)),   # x
        pl.BlockSpec((batch_block, S, C), lambda n: (n, 0, 0)),   # source
        full_spec((C, C)),        # wq
        full_spec((C, 2 * C)),    # wkv (fused k/v)
        full_spec((C, C)),        # wm (merge)
        full_spec((C, 2 * C)),    # mlp w1
        full_spec((2 * C, C)),    # mlp w2
    ] + [full_spec((1, C))] * 6   # LN gammas/betas

    # Advisory cost estimate so XLA schedules this small custom call sensibly.
    D = C // nhead
    flops = 2 * N * (L * C * C            # q proj
                     + S * C * 2 * C      # fused kv proj
                     + nhead * 2 * L * S * D  # QK^T + PV
                     + L * C * C          # merge
                     + L * C * 2 * C      # mlp w1
                     + L * 2 * C * C)     # mlp w2
    transcendentals = N * (nhead * L * S + L * 2 * C + nhead * L)
    bytes_accessed = (2 * x.size + source.size) * x.dtype.itemsize \
        + 2 * (wq.size + wkv.size + wm.size + w1.size + w2.size) \
        + 4 * sum(a.size for a in ln)

    grid_spec = pl.GridSpec(
        grid=(num_steps,),
        in_specs=in_specs,
        out_specs=pl.BlockSpec((batch_block, L, C), lambda n: (n, 0, 0)),
    )

    return pl.pallas_call(
        partial(_encoder_layer_kernel, nhead),
        out_shape=jax.ShapeDtypeStruct((N, L, C), x.dtype),
        grid_spec=grid_spec,
        compiler_params=pltpu.CompilerParams(
            dimension_semantics=("parallel",),   # batch tiles are independent
        ),
        cost_estimate=pl.CostEstimate(flops=int(flops),
                                      transcendentals=int(transcendentals),
                                      bytes_accessed=int(bytes_accessed)),
    )(x, source, wq, wkv, wm, w1, w2, *ln)


# ------------------------------ pure-JAX reference ----------------------------

def encoder_layer_reference(x, source, params, nhead):
    hp = jax.lax.Precision.HIGHEST
    N, L, C = x.shape
    S = source.shape[1]
    D = C // nhead

    def ln(t, g, b, eps=1e-5):
        mu = jnp.mean(t, axis=-1, keepdims=True)
        var = jnp.mean((t - mu) ** 2, axis=-1, keepdims=True)
        return (t - mu) * jax.lax.rsqrt(var + eps) * g + b

    q_in = ln(x, params["gq_g"], params["gq_b"])
    kv_in = ln(source, params["gkv_g"], params["gkv_b"])
    q = jnp.einsum("nlc,cd->nld", q_in, params["wq"], precision=hp).reshape(N, L, nhead, D)
    k = jnp.einsum("nsc,cd->nsd", kv_in, params["wk"], precision=hp).reshape(N, S, nhead, D)
    v = jnp.einsum("nsc,cd->nsd", kv_in, params["wv"], precision=hp).reshape(N, S, nhead, D)

    qk = jnp.einsum("nlhd,nshd->nlsh", q, k, precision=hp)
    a = jax.nn.softmax(qk * (1.0 / math.sqrt(D)), axis=2)
    msg = jnp.einsum("nlsh,nshd->nlhd", a, v, precision=hp).reshape(N, L, C)
    msg = jnp.einsum("nlc,cd->nld", msg, params["wm"], precision=hp)

    x1 = x + msg
    xn = ln(x1, params["g2_g"], params["g2_b"])
    hdn = jax.nn.gelu(jnp.einsum("nlc,ch->nlh", xn, params["w1"], precision=hp),
                      approximate=False)
    m2 = jnp.einsum("nlh,hc->nlc", hdn, params["w2"], precision=hp)
    return x1 + m2


# ---------------------------------- main ---------------------------------------

if __name__ == "__main__":
    # Small but lane-dense shapes: d_model = 128 lanes, L/S multiples of 8.
    N, L, S = 2, 64, 48
    d_model, nhead = 128, 4

    keys = jax.random.split(jax.random.PRNGKey(0), 16)
    x = jax.random.normal(keys[0], (N, L, d_model), dtype=jnp.float32)
    source = jax.random.normal(keys[1], (N, S, d_model), dtype=jnp.float32)

    def lin_init(k, fan_in, fan_out):
        return jax.random.normal(k, (fan_in, fan_out), dtype=jnp.float32) / math.sqrt(fan_in)

    params = {
        "wq": lin_init(keys[2], d_model, d_model),
        "wk": lin_init(keys[3], d_model, d_model),
        "wv": lin_init(keys[4], d_model, d_model),
        "wm": lin_init(keys[5], d_model, d_model),
        "w1": lin_init(keys[6], d_model, 2 * d_model),
        "w2": lin_init(keys[7], 2 * d_model, d_model),
        "gq_g": 1.0 + 0.1 * jax.random.normal(keys[8], (1, d_model), dtype=jnp.float32),
        "gq_b": 0.1 * jax.random.normal(keys[9], (1, d_model), dtype=jnp.float32),
        "gkv_g": 1.0 + 0.1 * jax.random.normal(keys[10], (1, d_model), dtype=jnp.float32),
        "gkv_b": 0.1 * jax.random.normal(keys[11], (1, d_model), dtype=jnp.float32),
        "g2_g": 1.0 + 0.1 * jax.random.normal(keys[12], (1, d_model), dtype=jnp.float32),
        "g2_b": 0.1 * jax.random.normal(keys[13], (1, d_model), dtype=jnp.float32),
    }

    out = encoder_layer_pallas(x, source, params, nhead)
    out = jax.block_until_ready(out)

    ref = encoder_layer_reference(x, source, params, nhead)
    # bf16 MXU operands + tanh-GELU + approx reciprocal => slightly looser
    # tolerance than a pure-f32 comparison.
    np.testing.assert_allclose(np.asarray(out), np.asarray(ref), rtol=2e-2, atol=2e-2)

    print("KERNEL_OK")
</pallas_src>

<mosaic_0001>
module attributes {stable_mosaic.version = 11 : i64} {
  func.func @_encoder_layer_kernel(%arg0: i32, %arg1: memref<2x64x128xf32, #tpu.memory_space<vmem>>, %arg2: memref<2x48x128xf32, #tpu.memory_space<vmem>>, %arg3: memref<128x128xbf16, #tpu.memory_space<vmem>>, %arg4: memref<128x256xbf16, #tpu.memory_space<vmem>>, %arg5: memref<128x128xbf16, #tpu.memory_space<vmem>>, %arg6: memref<128x256xbf16, #tpu.memory_space<vmem>>, %arg7: memref<256x128xbf16, #tpu.memory_space<vmem>>, %arg8: memref<1x128xf32, #tpu.memory_space<vmem>>, %arg9: memref<1x128xf32, #tpu.memory_space<vmem>>, %arg10: memref<1x128xf32, #tpu.memory_space<vmem>>, %arg11: memref<1x128xf32, #tpu.memory_space<vmem>>, %arg12: memref<1x128xf32, #tpu.memory_space<vmem>>, %arg13: memref<1x128xf32, #tpu.memory_space<vmem>>, %arg14: memref<2x64x128xf32, #tpu.memory_space<vmem>>) attributes {dimension_semantics = [#tpu.dimension_semantics<parallel>], iteration_bounds = array<i64: 1>, scalar_prefetch = 0 : i64, scratch_operands = 0 : i64, tpu.core_type = #tpu.core_type<tc>, window_params = [{transform_indices = @transform_0, window_bounds = array<i64: 2, 64, 128>}, {transform_indices = @transform_1, window_bounds = array<i64: 2, 48, 128>}, {pipeline_mode = #tpu.pipeline_mode<synchronous>, transform_indices = @transform_2, window_bounds = array<i64: 128, 128>}, {pipeline_mode = #tpu.pipeline_mode<synchronous>, transform_indices = @transform_3, window_bounds = array<i64: 128, 256>}, {pipeline_mode = #tpu.pipeline_mode<synchronous>, transform_indices = @transform_4, window_bounds = array<i64: 128, 128>}, {pipeline_mode = #tpu.pipeline_mode<synchronous>, transform_indices = @transform_5, window_bounds = array<i64: 128, 256>}, {pipeline_mode = #tpu.pipeline_mode<synchronous>, transform_indices = @transform_6, window_bounds = array<i64: 256, 128>}, {pipeline_mode = #tpu.pipeline_mode<synchronous>, transform_indices = @transform_7, window_bounds = array<i64: 1, 128>}, {pipeline_mode = #tpu.pipeline_mode<synchronous>, transform_indices = @transform_8, window_bounds = array<i64: 1, 128>}, {pipeline_mode = #tpu.pipeline_mode<synchronous>, transform_indices = @transform_9, window_bounds = array<i64: 1, 128>}, {pipeline_mode = #tpu.pipeline_mode<synchronous>, transform_indices = @transform_10, window_bounds = array<i64: 1, 128>}, {pipeline_mode = #tpu.pipeline_mode<synchronous>, transform_indices = @transform_11, window_bounds = array<i64: 1, 128>}, {pipeline_mode = #tpu.pipeline_mode<synchronous>, transform_indices = @transform_12, window_bounds = array<i64: 1, 128>}, {transform_indices = @transform_13, window_bounds = array<i64: 2, 64, 128>}]} {
    %c0 = arith.constant 0 : index
    %c0_0 = arith.constant 0 : index
    %c0_1 = arith.constant 0 : index
    %0 = vector.load %arg1[%c0, %c0_0, %c0_1] : memref<2x64x128xf32, #tpu.memory_space<vmem>>, vector<2x64x128xf32>
    %1 = vector.shape_cast %0 : vector<2x64x128xf32> to vector<128x128xf32>
    %c0_2 = arith.constant 0 : index
    %c0_3 = arith.constant 0 : index
    %c0_4 = arith.constant 0 : index
    %2 = vector.load %arg2[%c0_2, %c0_3, %c0_4] : memref<2x48x128xf32, #tpu.memory_space<vmem>>, vector<2x48x128xf32>
    %3 = vector.shape_cast %2 : vector<2x48x128xf32> to vector<96x128xf32>
    %c0_5 = arith.constant 0 : index
    %c0_6 = arith.constant 0 : index
    %4 = vector.load %arg8[%c0_5, %c0_6] : memref<1x128xf32, #tpu.memory_space<vmem>>, vector<1x128xf32>
    %c0_7 = arith.constant 0 : index
    %c0_8 = arith.constant 0 : index
    %5 = vector.load %arg9[%c0_7, %c0_8] : memref<1x128xf32, #tpu.memory_space<vmem>>, vector<1x128xf32>
    %cst = arith.constant dense<0.000000e+00> : vector<128xf32>
    %6 = vector.multi_reduction <add>, %1, %cst [1] : vector<128x128xf32> to vector<128xf32>
    %7 = vector.shape_cast %6 : vector<128xf32> to vector<128x1xf32>
    %cst_9 = arith.constant 1.280000e+02 : f32
    %8 = vector.broadcast %cst_9 : f32 to vector<128x1xf32>
    %9 = arith.divf %7, %8 : vector<128x1xf32>
    %10 = vector.broadcast %9 : vector<128x1xf32> to vector<128x128xf32>
    %11 = arith.subf %1, %10 : vector<128x128xf32>
    %12 = arith.mulf %11, %11 : vector<128x128xf32>
    %cst_10 = arith.constant dense<0.000000e+00> : vector<128xf32>
    %13 = vector.multi_reduction <add>, %12, %cst_10 [1] : vector<128x128xf32> to vector<128xf32>
    %14 = vector.shape_cast %13 : vector<128xf32> to vector<128x1xf32>
    %cst_11 = arith.constant 1.280000e+02 : f32
    %15 = vector.broadcast %cst_11 : f32 to vector<128x1xf32>
    %16 = arith.divf %14, %15 : vector<128x1xf32>
    %cst_12 = arith.constant 9.99999974E-6 : f32
    %17 = vector.broadcast %cst_12 : f32 to vector<128x1xf32>
    %18 = arith.addf %16, %17 : vector<128x1xf32>
    %19 = math.rsqrt %18 : vector<128x1xf32>
    %20 = vector.broadcast %19 : vector<128x1xf32> to vector<128x128xf32>
    %21 = arith.mulf %11, %20 : vector<128x128xf32>
    %22 = vector.broadcast %4 : vector<1x128xf32> to vector<128x128xf32>
    %23 = arith.mulf %21, %22 : vector<128x128xf32>
    %24 = vector.broadcast %5 : vector<1x128xf32> to vector<128x128xf32>
    %25 = arith.addf %23, %24 : vector<128x128xf32>
    %c0_13 = arith.constant 0 : index
    %c0_14 = arith.constant 0 : index
    %26 = vector.load %arg10[%c0_13, %c0_14] : memref<1x128xf32, #tpu.memory_space<vmem>>, vector<1x128xf32>
    %c0_15 = arith.constant 0 : index
    %c0_16 = arith.constant 0 : index
    %27 = vector.load %arg11[%c0_15, %c0_16] : memref<1x128xf32, #tpu.memory_space<vmem>>, vector<1x128xf32>
    %cst_17 = arith.constant dense<0.000000e+00> : vector<96xf32>
    %28 = vector.multi_reduction <add>, %3, %cst_17 [1] : vector<96x128xf32> to vector<96xf32>
    %29 = vector.shape_cast %28 : vector<96xf32> to vector<96x1xf32>
    %cst_18 = arith.constant 1.280000e+02 : f32
    %30 = vector.broadcast %cst_18 : f32 to vector<96x1xf32>
    %31 = arith.divf %29, %30 : vector<96x1xf32>
    %32 = vector.broadcast %31 : vector<96x1xf32> to vector<96x128xf32>
    %33 = arith.subf %3, %32 : vector<96x128xf32>
    %34 = arith.mulf %33, %33 : vector<96x128xf32>
    %cst_19 = arith.constant dense<0.000000e+00> : vector<96xf32>
    %35 = vector.multi_reduction <add>, %34, %cst_19 [1] : vector<96x128xf32> to vector<96xf32>
    %36 = vector.shape_cast %35 : vector<96xf32> to vector<96x1xf32>
    %cst_20 = arith.constant 1.280000e+02 : f32
    %37 = vector.broadcast %cst_20 : f32 to vector<96x1xf32>
    %38 = arith.divf %36, %37 : vector<96x1xf32>
    %cst_21 = arith.constant 9.99999974E-6 : f32
    %39 = vector.broadcast %cst_21 : f32 to vector<96x1xf32>
    %40 = arith.addf %38, %39 : vector<96x1xf32>
    %41 = math.rsqrt %40 : vector<96x1xf32>
    %42 = vector.broadcast %41 : vector<96x1xf32> to vector<96x128xf32>
    %43 = arith.mulf %33, %42 : vector<96x128xf32>
    %44 = vector.broadcast %26 : vector<1x128xf32> to vector<96x128xf32>
    %45 = arith.mulf %43, %44 : vector<96x128xf32>
    %46 = vector.broadcast %27 : vector<1x128xf32> to vector<96x128xf32>
    %47 = arith.addf %45, %46 : vector<96x128xf32>
    %48 = arith.truncf %25 : vector<128x128xf32> to vector<128x128xbf16>
    %c0_22 = arith.constant 0 : index
    %c0_23 = arith.constant 0 : index
    %49 = vector.load %arg3[%c0_22, %c0_23] : memref<128x128xbf16, #tpu.memory_space<vmem>>, vector<128x128xbf16>
    %cst_24 = arith.constant dense<0.000000e+00> : vector<128x128xf32>
    %50 = tpu.matmul %48, %49, %cst_24 {dimension_numbers = #tpu.dot_dimension_numbers<[1], [0], [0], [1], [0, 0, 1, 1], [], []>} : vector<128x128xbf16>, vector<128x128xbf16>, vector<128x128xf32> -> vector<128x128xf32>
    %51 = arith.truncf %47 : vector<96x128xf32> to vector<96x128xbf16>
    %c0_25 = arith.constant 0 : index
    %c0_26 = arith.constant 0 : index
    %52 = vector.load %arg4[%c0_25, %c0_26] : memref<128x256xbf16, #tpu.memory_space<vmem>>, vector<128x256xbf16>
    %cst_27 = arith.constant dense<0.000000e+00> : vector<96x256xf32>
    %53 = tpu.matmul %51, %52, %cst_27 {dimension_numbers = #tpu.dot_dimension_numbers<[1], [0], [0], [1], [0, 0, 1, 1], [], []>} : vector<96x128xbf16>, vector<128x256xbf16>, vector<96x256xf32> -> vector<96x256xf32>
    %54 = vector.extract_strided_slice %53 {offsets = [0, 0], sizes = [96, 128], strides = [1, 1]} : vector<96x256xf32> to vector<96x128xf32>
    %55 = vector.extract_strided_slice %53 {offsets = [0, 128], sizes = [96, 128], strides = [1, 1]} : vector<96x256xf32> to vector<96x128xf32>
    %56 = vector.extract_strided_slice %50 {offsets = [0, 0], sizes = [64, 128], strides = [1, 1]} : vector<128x128xf32> to vector<64x128xf32>
    %57 = vector.extract_strided_slice %54 {offsets = [0, 0], sizes = [48, 128], strides = [1, 1]} : vector<96x128xf32> to vector<48x128xf32>
    %58 = vector.extract_strided_slice %55 {offsets = [0, 0], sizes = [48, 128], strides = [1, 1]} : vector<96x128xf32> to vector<48x128xf32>
    %59 = vector.extract_strided_slice %56 {offsets = [0, 0], sizes = [64, 32], strides = [1, 1]} : vector<64x128xf32> to vector<64x32xf32>
    %60 = arith.truncf %59 : vector<64x32xf32> to vector<64x32xbf16>
    %61 = vector.extract_strided_slice %57 {offsets = [0, 0], sizes = [48, 32], strides = [1, 1]} : vector<48x128xf32> to vector<48x32xf32>
    %62 = arith.truncf %61 : vector<48x32xf32> to vector<48x32xbf16>
    %cst_28 = arith.constant dense<0.000000e+00> : vector<64x48xf32>
    %63 = tpu.matmul %60, %62, %cst_28 {dimension_numbers = #tpu.dot_dimension_numbers<[1], [1], [0], [0], [0, 0, 1, 0], [], []>} : vector<64x32xbf16>, vector<48x32xbf16>, vector<64x48xf32> -> vector<64x48xf32>
    %cst_29 = arith.constant 0.176776692 : f32
    %64 = vector.broadcast %cst_29 : f32 to vector<64x48xf32>
    %65 = arith.mulf %63, %64 : vector<64x48xf32>
    %cst_30 = arith.constant dense<0xFF800000> : vector<64xf32>
    %66 = vector.multi_reduction <maximumf>, %65, %cst_30 [1] : vector<64x48xf32> to vector<64xf32>
    %67 = vector.shape_cast %66 : vector<64xf32> to vector<64x1xf32>
    %68 = vector.broadcast %67 : vector<64x1xf32> to vector<64x48xf32>
    %69 = arith.subf %65, %68 : vector<64x48xf32>
    %70 = math.exp %69 : vector<64x48xf32>
    %cst_31 = arith.constant dense<0.000000e+00> : vector<64xf32>
    %71 = vector.multi_reduction <add>, %70, %cst_31 [1] : vector<64x48xf32> to vector<64xf32>
    %72 = vector.shape_cast %71 : vector<64xf32> to vector<64x1xf32>
    %73 = tpu.reciprocal %72 {approx = true} : vector<64x1xf32> -> vector<64x1xf32>
    %74 = vector.broadcast %73 : vector<64x1xf32> to vector<64x48xf32>
    %75 = arith.mulf %70, %74 : vector<64x48xf32>
    %76 = arith.truncf %75 : vector<64x48xf32> to vector<64x48xbf16>
    %77 = vector.extract_strided_slice %58 {offsets = [0, 0], sizes = [48, 32], strides = [1, 1]} : vector<48x128xf32> to vector<48x32xf32>
    %78 = arith.truncf %77 : vector<48x32xf32> to vector<48x32xbf16>
    %cst_32 = arith.constant dense<0.000000e+00> : vector<64x32xf32>
    %79 = tpu.matmul %76, %78, %cst_32 {dimension_numbers = #tpu.dot_dimension_numbers<[1], [0], [0], [1], [0, 0, 1, 1], [], []>} : vector<64x48xbf16>, vector<48x32xbf16>, vector<64x32xf32> -> vector<64x32xf32>
    %80 = vector.extract_strided_slice %56 {offsets = [0, 32], sizes = [64, 32], strides = [1, 1]} : vector<64x128xf32> to vector<64x32xf32>
    %81 = arith.truncf %80 : vector<64x32xf32> to vector<64x32xbf16>
    %82 = vector.extract_strided_slice %57 {offsets = [0, 32], sizes = [48, 32], strides = [1, 1]} : vector<48x128xf32> to vector<48x32xf32>
    %83 = arith.truncf %82 : vector<48x32xf32> to vector<48x32xbf16>
    %cst_33 = arith.constant dense<0.000000e+00> : vector<64x48xf32>
    %84 = tpu.matmul %81, %83, %cst_33 {dimension_numbers = #tpu.dot_dimension_numbers<[1], [1], [0], [0], [0, 0, 1, 0], [], []>} : vector<64x32xbf16>, vector<48x32xbf16>, vector<64x48xf32> -> vector<64x48xf32>
    %cst_34 = arith.constant 0.176776692 : f32
    %85 = vector.broadcast %cst_34 : f32 to vector<64x48xf32>
    %86 = arith.mulf %84, %85 : vector<64x48xf32>
    %cst_35 = arith.constant dense<0xFF800000> : vector<64xf32>
    %87 = vector.multi_reduction <maximumf>, %86, %cst_35 [1] : vector<64x48xf32> to vector<64xf32>
    %88 = vector.shape_cast %87 : vector<64xf32> to vector<64x1xf32>
    %89 = vector.broadcast %88 : vector<64x1xf32> to vector<64x48xf32>
    %90 = arith.subf %86, %89 : vector<64x48xf32>
    %91 = math.exp %90 : vector<64x48xf32>
    %cst_36 = arith.constant dense<0.000000e+00> : vector<64xf32>
    %92 = vector.multi_reduction <add>, %91, %cst_36 [1] : vector<64x48xf32> to vector<64xf32>
    %93 = vector.shape_cast %92 : vector<64xf32> to vector<64x1xf32>
    %94 = tpu.reciprocal %93 {approx = true} : vector<64x1xf32> -> vector<64x1xf32>
    %95 = vector.broadcast %94 : vector<64x1xf32> to vector<64x48xf32>
    %96 = arith.mulf %91, %95 : vector<64x48xf32>
    %97 = arith.truncf %96 : vector<64x48xf32> to vector<64x48xbf16>
    %98 = vector.extract_strided_slice %58 {offsets = [0, 32], sizes = [48, 32], strides = [1, 1]} : vector<48x128xf32> to vector<48x32xf32>
    %99 = arith.truncf %98 : vector<48x32xf32> to vector<48x32xbf16>
    %cst_37 = arith.constant dense<0.000000e+00> : vector<64x32xf32>
    %100 = tpu.matmul %97, %99, %cst_37 {dimension_numbers = #tpu.dot_dimension_numbers<[1], [0], [0], [1], [0, 0, 1, 1], [], []>} : vector<64x48xbf16>, vector<48x32xbf16>, vector<64x32xf32> -> vector<64x32xf32>
    %101 = vector.extract_strided_slice %56 {offsets = [0, 64], sizes = [64, 32], strides = [1, 1]} : vector<64x128xf32> to vector<64x32xf32>
    %102 = arith.truncf %101 : vector<64x32xf32> to vector<64x32xbf16>
    %103 = vector.extract_strided_slice %57 {offsets = [0, 64], sizes = [48, 32], strides = [1, 1]} : vector<48x128xf32> to vector<48x32xf32>
    %104 = arith.truncf %103 : vector<48x32xf32> to vector<48x32xbf16>
    %cst_38 = arith.constant dense<0.000000e+00> : vector<64x48xf32>
    %105 = tpu.matmul %102, %104, %cst_38 {dimension_numbers = #tpu.dot_dimension_numbers<[1], [1], [0], [0], [0, 0, 1, 0], [], []>} : vector<64x32xbf16>, vector<48x32xbf16>, vector<64x48xf32> -> vector<64x48xf32>
    %cst_39 = arith.constant 0.176776692 : f32
    %106 = vector.broadcast %cst_39 : f32 to vector<64x48xf32>
    %107 = arith.mulf %105, %106 : vector<64x48xf32>
    %cst_40 = arith.constant dense<0xFF800000> : vector<64xf32>
    %108 = vector.multi_reduction <maximumf>, %107, %cst_40 [1] : vector<64x48xf32> to vector<64xf32>
    %109 = vector.shape_cast %108 : vector<64xf32> to vector<64x1xf32>
    %110 = vector.broadcast %109 : vector<64x1xf32> to vector<64x48xf32>
    %111 = arith.subf %107, %110 : vector<64x48xf32>
    %112 = math.exp %111 : vector<64x48xf32>
    %cst_41 = arith.constant dense<0.000000e+00> : vector<64xf32>
    %113 = vector.multi_reduction <add>, %112, %cst_41 [1] : vector<64x48xf32> to vector<64xf32>
    %114 = vector.shape_cast %113 : vector<64xf32> to vector<64x1xf32>
    %115 = tpu.reciprocal %114 {approx = true} : vector<64x1xf32> -> vector<64x1xf32>
    %116 = vector.broadcast %115 : vector<64x1xf32> to vector<64x48xf32>
    %117 = arith.mulf %112, %116 : vector<64x48xf32>
    %118 = arith.truncf %117 : vector<64x48xf32> to vector<64x48xbf16>
    %119 = vector.extract_strided_slice %58 {offsets = [0, 64], sizes = [48, 32], strides = [1, 1]} : vector<48x128xf32> to vector<48x32xf32>
    %120 = arith.truncf %119 : vector<48x32xf32> to vector<48x32xbf16>
    %cst_42 = arith.constant dense<0.000000e+00> : vector<64x32xf32>
    %121 = tpu.matmul %118, %120, %cst_42 {dimension_numbers = #tpu.dot_dimension_numbers<[1], [0], [0], [1], [0, 0, 1, 1], [], []>} : vector<64x48xbf16>, vector<48x32xbf16>, vector<64x32xf32> -> vector<64x32xf32>
    %122 = vector.extract_strided_slice %56 {offsets = [0, 96], sizes = [64, 32], strides = [1, 1]} : vector<64x128xf32> to vector<64x32xf32>
    %123 = arith.truncf %122 : vector<64x32xf32> to vector<64x32xbf16>
    %124 = vector.extract_strided_slice %57 {offsets = [0, 96], sizes = [48, 32], strides = [1, 1]} : vector<48x128xf32> to vector<48x32xf32>
    %125 = arith.truncf %124 : vector<48x32xf32> to vector<48x32xbf16>
    %cst_43 = arith.constant dense<0.000000e+00> : vector<64x48xf32>
    %126 = tpu.matmul %123, %125, %cst_43 {dimension_numbers = #tpu.dot_dimension_numbers<[1], [1], [0], [0], [0, 0, 1, 0], [], []>} : vector<64x32xbf16>, vector<48x32xbf16>, vector<64x48xf32> -> vector<64x48xf32>
    %cst_44 = arith.constant 0.176776692 : f32
    %127 = vector.broadcast %cst_44 : f32 to vector<64x48xf32>
    %128 = arith.mulf %126, %127 : vector<64x48xf32>
    %cst_45 = arith.constant dense<0xFF800000> : vector<64xf32>
    %129 = vector.multi_reduction <maximumf>, %128, %cst_45 [1] : vector<64x48xf32> to vector<64xf32>
    %130 = vector.shape_cast %129 : vector<64xf32> to vector<64x1xf32>
    %131 = vector.broadcast %130 : vector<64x1xf32> to vector<64x48xf32>
    %132 = arith.subf %128, %131 : vector<64x48xf32>
    %133 = math.exp %132 : vector<64x48xf32>
    %cst_46 = arith.constant dense<0.000000e+00> : vector<64xf32>
    %134 = vector.multi_reduction <add>, %133, %cst_46 [1] : vector<64x48xf32> to vector<64xf32>
    %135 = vector.shape_cast %134 : vector<64xf32> to vector<64x1xf32>
    %136 = tpu.reciprocal %135 {approx = true} : vector<64x1xf32> -> vector<64x1xf32>
    %137 = vector.broadcast %136 : vector<64x1xf32> to vector<64x48xf32>
    %138 = arith.mulf %133, %137 : vector<64x48xf32>
    %139 = arith.truncf %138 : vector<64x48xf32> to vector<64x48xbf16>
    %140 = vector.extract_strided_slice %58 {offsets = [0, 96], sizes = [48, 32], strides = [1, 1]} : vector<48x128xf32> to vector<48x32xf32>
    %141 = arith.truncf %140 : vector<48x32xf32> to vector<48x32xbf16>
    %cst_47 = arith.constant dense<0.000000e+00> : vector<64x32xf32>
    %142 = tpu.matmul %139, %141, %cst_47 {dimension_numbers = #tpu.dot_dimension_numbers<[1], [0], [0], [1], [0, 0, 1, 1], [], []>} : vector<64x48xbf16>, vector<48x32xbf16>, vector<64x32xf32> -> vector<64x32xf32>
    %143 = tpu.concatenate %79, %100, %121, %142 in 1 : vector<64x32xf32>, vector<64x32xf32>, vector<64x32xf32>, vector<64x32xf32> -> vector<64x128xf32>
    %144 = vector.extract_strided_slice %50 {offsets = [64, 0], sizes = [64, 128], strides = [1, 1]} : vector<128x128xf32> to vector<64x128xf32>
    %145 = vector.extract_strided_slice %54 {offsets = [48, 0], sizes = [48, 128], strides = [1, 1]} : vector<96x128xf32> to vector<48x128xf32>
    %146 = vector.extract_strided_slice %55 {offsets = [48, 0], sizes = [48, 128], strides = [1, 1]} : vector<96x128xf32> to vector<48x128xf32>
    %147 = vector.extract_strided_slice %144 {offsets = [0, 0], sizes = [64, 32], strides = [1, 1]} : vector<64x128xf32> to vector<64x32xf32>
    %148 = arith.truncf %147 : vector<64x32xf32> to vector<64x32xbf16>
    %149 = vector.extract_strided_slice %145 {offsets = [0, 0], sizes = [48, 32], strides = [1, 1]} : vector<48x128xf32> to vector<48x32xf32>
    %150 = arith.truncf %149 : vector<48x32xf32> to vector<48x32xbf16>
    %cst_48 = arith.constant dense<0.000000e+00> : vector<64x48xf32>
    %151 = tpu.matmul %148, %150, %cst_48 {dimension_numbers = #tpu.dot_dimension_numbers<[1], [1], [0], [0], [0, 0, 1, 0], [], []>} : vector<64x32xbf16>, vector<48x32xbf16>, vector<64x48xf32> -> vector<64x48xf32>
    %cst_49 = arith.constant 0.176776692 : f32
    %152 = vector.broadcast %cst_49 : f32 to vector<64x48xf32>
    %153 = arith.mulf %151, %152 : vector<64x48xf32>
    %cst_50 = arith.constant dense<0xFF800000> : vector<64xf32>
    %154 = vector.multi_reduction <maximumf>, %153, %cst_50 [1] : vector<64x48xf32> to vector<64xf32>
    %155 = vector.shape_cast %154 : vector<64xf32> to vector<64x1xf32>
    %156 = vector.broadcast %155 : vector<64x1xf32> to vector<64x48xf32>
    %157 = arith.subf %153, %156 : vector<64x48xf32>
    %158 = math.exp %157 : vector<64x48xf32>
    %cst_51 = arith.constant dense<0.000000e+00> : vector<64xf32>
    %159 = vector.multi_reduction <add>, %158, %cst_51 [1] : vector<64x48xf32> to vector<64xf32>
    %160 = vector.shape_cast %159 : vector<64xf32> to vector<64x1xf32>
    %161 = tpu.reciprocal %160 {approx = true} : vector<64x1xf32> -> vector<64x1xf32>
    %162 = vector.broadcast %161 : vector<64x1xf32> to vector<64x48xf32>
    %163 = arith.mulf %158, %162 : vector<64x48xf32>
    %164 = arith.truncf %163 : vector<64x48xf32> to vector<64x48xbf16>
    %165 = vector.extract_strided_slice %146 {offsets = [0, 0], sizes = [48, 32], strides = [1, 1]} : vector<48x128xf32> to vector<48x32xf32>
    %166 = arith.truncf %165 : vector<48x32xf32> to vector<48x32xbf16>
    %cst_52 = arith.constant dense<0.000000e+00> : vector<64x32xf32>
    %167 = tpu.matmul %164, %166, %cst_52 {dimension_numbers = #tpu.dot_dimension_numbers<[1], [0], [0], [1], [0, 0, 1, 1], [], []>} : vector<64x48xbf16>, vector<48x32xbf16>, vector<64x32xf32> -> vector<64x32xf32>
    %168 = vector.extract_strided_slice %144 {offsets = [0, 32], sizes = [64, 32], strides = [1, 1]} : vector<64x128xf32> to vector<64x32xf32>
    %169 = arith.truncf %168 : vector<64x32xf32> to vector<64x32xbf16>
    %170 = vector.extract_strided_slice %145 {offsets = [0, 32], sizes = [48, 32], strides = [1, 1]} : vector<48x128xf32> to vector<48x32xf32>
    %171 = arith.truncf %170 : vector<48x32xf32> to vector<48x32xbf16>
    %cst_53 = arith.constant dense<0.000000e+00> : vector<64x48xf32>
    %172 = tpu.matmul %169, %171, %cst_53 {dimension_numbers = #tpu.dot_dimension_numbers<[1], [1], [0], [0], [0, 0, 1, 0], [], []>} : vector<64x32xbf16>, vector<48x32xbf16>, vector<64x48xf32> -> vector<64x48xf32>
    %cst_54 = arith.constant 0.176776692 : f32
    %173 = vector.broadcast %cst_54 : f32 to vector<64x48xf32>
    %174 = arith.mulf %172, %173 : vector<64x48xf32>
    %cst_55 = arith.constant dense<0xFF800000> : vector<64xf32>
    %175 = vector.multi_reduction <maximumf>, %174, %cst_55 [1] : vector<64x48xf32> to vector<64xf32>
    %176 = vector.shape_cast %175 : vector<64xf32> to vector<64x1xf32>
    %177 = vector.broadcast %176 : vector<64x1xf32> to vector<64x48xf32>
    %178 = arith.subf %174, %177 : vector<64x48xf32>
    %179 = math.exp %178 : vector<64x48xf32>
    %cst_56 = arith.constant dense<0.000000e+00> : vector<64xf32>
    %180 = vector.multi_reduction <add>, %179, %cst_56 [1] : vector<64x48xf32> to vector<64xf32>
    %181 = vector.shape_cast %180 : vector<64xf32> to vector<64x1xf32>
    %182 = tpu.reciprocal %181 {approx = true} : vector<64x1xf32> -> vector<64x1xf32>
    %183 = vector.broadcast %182 : vector<64x1xf32> to vector<64x48xf32>
    %184 = arith.mulf %179, %183 : vector<64x48xf32>
    %185 = arith.truncf %184 : vector<64x48xf32> to vector<64x48xbf16>
    %186 = vector.extract_strided_slice %146 {offsets = [0, 32], sizes = [48, 32], strides = [1, 1]} : vector<48x128xf32> to vector<48x32xf32>
    %187 = arith.truncf %186 : vector<48x32xf32> to vector<48x32xbf16>
    %cst_57 = arith.constant dense<0.000000e+00> : vector<64x32xf32>
    %188 = tpu.matmul %185, %187, %cst_57 {dimension_numbers = #tpu.dot_dimension_numbers<[1], [0], [0], [1], [0, 0, 1, 1], [], []>} : vector<64x48xbf16>, vector<48x32xbf16>, vector<64x32xf32> -> vector<64x32xf32>
    %189 = vector.extract_strided_slice %144 {offsets = [0, 64], sizes = [64, 32], strides = [1, 1]} : vector<64x128xf32> to vector<64x32xf32>
    %190 = arith.truncf %189 : vector<64x32xf32> to vector<64x32xbf16>
    %191 = vector.extract_strided_slice %145 {offsets = [0, 64], sizes = [48, 32], strides = [1, 1]} : vector<48x128xf32> to vector<48x32xf32>
    %192 = arith.truncf %191 : vector<48x32xf32> to vector<48x32xbf16>
    %cst_58 = arith.constant dense<0.000000e+00> : vector<64x48xf32>
    %193 = tpu.matmul %190, %192, %cst_58 {dimension_numbers = #tpu.dot_dimension_numbers<[1], [1], [0], [0], [0, 0, 1, 0], [], []>} : vector<64x32xbf16>, vector<48x32xbf16>, vector<64x48xf32> -> vector<64x48xf32>
    %cst_59 = arith.constant 0.176776692 : f32
    %194 = vector.broadcast %cst_59 : f32 to vector<64x48xf32>
    %195 = arith.mulf %193, %194 : vector<64x48xf32>
    %cst_60 = arith.constant dense<0xFF800000> : vector<64xf32>
    %196 = vector.multi_reduction <maximumf>, %195, %cst_60 [1] : vector<64x48xf32> to vector<64xf32>
    %197 = vector.shape_cast %196 : vector<64xf32> to vector<64x1xf32>
    %198 = vector.broadcast %197 : vector<64x1xf32> to vector<64x48xf32>
    %199 = arith.subf %195, %198 : vector<64x48xf32>
    %200 = math.exp %199 : vector<64x48xf32>
    %cst_61 = arith.constant dense<0.000000e+00> : vector<64xf32>
    %201 = vector.multi_reduction <add>, %200, %cst_61 [1] : vector<64x48xf32> to vector<64xf32>
    %202 = vector.shape_cast %201 : vector<64xf32> to vector<64x1xf32>
    %203 = tpu.reciprocal %202 {approx = true} : vector<64x1xf32> -> vector<64x1xf32>
    %204 = vector.broadcast %203 : vector<64x1xf32> to vector<64x48xf32>
    %205 = arith.mulf %200, %204 : vector<64x48xf32>
    %206 = arith.truncf %205 : vector<64x48xf32> to vector<64x48xbf16>
    %207 = vector.extract_strided_slice %146 {offsets = [0, 64], sizes = [48, 32], strides = [1, 1]} : vector<48x128xf32> to vector<48x32xf32>
    %208 = arith.truncf %207 : vector<48x32xf32> to vector<48x32xbf16>
    %cst_62 = arith.constant dense<0.000000e+00> : vector<64x32xf32>
    %209 = tpu.matmul %206, %208, %cst_62 {dimension_numbers = #tpu.dot_dimension_numbers<[1], [0], [0], [1], [0, 0, 1, 1], [], []>} : vector<64x48xbf16>, vector<48x32xbf16>, vector<64x32xf32> -> vector<64x32xf32>
    %210 = vector.extract_strided_slice %144 {offsets = [0, 96], sizes = [64, 32], strides = [1, 1]} : vector<64x128xf32> to vector<64x32xf32>
    %211 = arith.truncf %210 : vector<64x32xf32> to vector<64x32xbf16>
    %212 = vector.extract_strided_slice %145 {offsets = [0, 96], sizes = [48, 32], strides = [1, 1]} : vector<48x128xf32> to vector<48x32xf32>
    %213 = arith.truncf %212 : vector<48x32xf32> to vector<48x32xbf16>
    %cst_63 = arith.constant dense<0.000000e+00> : vector<64x48xf32>
    %214 = tpu.matmul %211, %213, %cst_63 {dimension_numbers = #tpu.dot_dimension_numbers<[1], [1], [0], [0], [0, 0, 1, 0], [], []>} : vector<64x32xbf16>, vector<48x32xbf16>, vector<64x48xf32> -> vector<64x48xf32>
    %cst_64 = arith.constant 0.176776692 : f32
    %215 = vector.broadcast %cst_64 : f32 to vector<64x48xf32>
    %216 = arith.mulf %214, %215 : vector<64x48xf32>
    %cst_65 = arith.constant dense<0xFF800000> : vector<64xf32>
    %217 = vector.multi_reduction <maximumf>, %216, %cst_65 [1] : vector<64x48xf32> to vector<64xf32>
    %218 = vector.shape_cast %217 : vector<64xf32> to vector<64x1xf32>
    %219 = vector.broadcast %218 : vector<64x1xf32> to vector<64x48xf32>
    %220 = arith.subf %216, %219 : vector<64x48xf32>
    %221 = math.exp %220 : vector<64x48xf32>
    %cst_66 = arith.constant dense<0.000000e+00> : vector<64xf32>
    %222 = vector.multi_reduction <add>, %221, %cst_66 [1] : vector<64x48xf32> to vector<64xf32>
    %223 = vector.shape_cast %222 : vector<64xf32> to vector<64x1xf32>
    %224 = tpu.reciprocal %223 {approx = true} : vector<64x1xf32> -> vector<64x1xf32>
    %225 = vector.broadcast %224 : vector<64x1xf32> to vector<64x48xf32>
    %226 = arith.mulf %221, %225 : vector<64x48xf32>
    %227 = arith.truncf %226 : vector<64x48xf32> to vector<64x48xbf16>
    %228 = vector.extract_strided_slice %146 {offsets = [0, 96], sizes = [48, 32], strides = [1, 1]} : vector<48x128xf32> to vector<48x32xf32>
    %229 = arith.truncf %228 : vector<48x32xf32> to vector<48x32xbf16>
    %cst_67 = arith.constant dense<0.000000e+00> : vector<64x32xf32>
    %230 = tpu.matmul %227, %229, %cst_67 {dimension_numbers = #tpu.dot_dimension_numbers<[1], [0], [0], [1], [0, 0, 1, 1], [], []>} : vector<64x48xbf16>, vector<48x32xbf16>, vector<64x32xf32> -> vector<64x32xf32>
    %231 = tpu.concatenate %167, %188, %209, %230 in 1 : vector<64x32xf32>, vector<64x32xf32>, vector<64x32xf32>, vector<64x32xf32> -> vector<64x128xf32>
    %232 = tpu.concatenate %143, %231 in 0 : vector<64x128xf32>, vector<64x128xf32> -> vector<128x128xf32>
    %233 = arith.truncf %232 : vector<128x128xf32> to vector<128x128xbf16>
    %c0_68 = arith.constant 0 : index
    %c0_69 = arith.constant 0 : index
    %234 = vector.load %arg5[%c0_68, %c0_69] : memref<128x128xbf16, #tpu.memory_space<vmem>>, vector<128x128xbf16>
    %cst_70 = arith.constant dense<0.000000e+00> : vector<128x128xf32>
    %235 = tpu.matmul %233, %234, %cst_70 {dimension_numbers = #tpu.dot_dimension_numbers<[1], [0], [0], [1], [0, 0, 1, 1], [], []>} : vector<128x128xbf16>, vector<128x128xbf16>, vector<128x128xf32> -> vector<128x128xf32>
    %236 = arith.addf %1, %235 : vector<128x128xf32>
    %c0_71 = arith.constant 0 : index
    %c0_72 = arith.constant 0 : index
    %237 = vector.load %arg12[%c0_71, %c0_72] : memref<1x128xf32, #tpu.memory_space<vmem>>, vector<1x128xf32>
    %c0_73 = arith.constant 0 : index
    %c0_74 = arith.constant 0 : index
    %238 = vector.load %arg13[%c0_73, %c0_74] : memref<1x128xf32, #tpu.memory_space<vmem>>, vector<1x128xf32>
    %cst_75 = arith.constant dense<0.000000e+00> : vector<128xf32>
    %239 = vector.multi_reduction <add>, %236, %cst_75 [1] : vector<128x128xf32> to vector<128xf32>
    %240 = vector.shape_cast %239 : vector<128xf32> to vector<128x1xf32>
    %cst_76 = arith.constant 1.280000e+02 : f32
    %241 = vector.broadcast %cst_76 : f32 to vector<128x1xf32>
    %242 = arith.divf %240, %241 : vector<128x1xf32>
    %243 = vector.broadcast %242 : vector<128x1xf32> to vector<128x128xf32>
    %244 = arith.subf %236, %243 : vector<128x128xf32>
    %245 = arith.mulf %244, %244 : vector<128x128xf32>
    %cst_77 = arith.constant dense<0.000000e+00> : vector<128xf32>
    %246 = vector.multi_reduction <add>, %245, %cst_77 [1] : vector<128x128xf32> to vector<128xf32>
    %247 = vector.shape_cast %246 : vector<128xf32> to vector<128x1xf32>
    %cst_78 = arith.constant 1.280000e+02 : f32
    %248 = vector.broadcast %cst_78 : f32 to vector<128x1xf32>
    %249 = arith.divf %247, %248 : vector<128x1xf32>
    %cst_79 = arith.constant 9.99999974E-6 : f32
    %250 = vector.broadcast %cst_79 : f32 to vector<128x1xf32>
    %251 = arith.addf %249, %250 : vector<128x1xf32>
    %252 = math.rsqrt %251 : vector<128x1xf32>
    %253 = vector.broadcast %252 : vector<128x1xf32> to vector<128x128xf32>
    %254 = arith.mulf %244, %253 : vector<128x128xf32>
    %255 = vector.broadcast %237 : vector<1x128xf32> to vector<128x128xf32>
    %256 = arith.mulf %254, %255 : vector<128x128xf32>
    %257 = vector.broadcast %238 : vector<1x128xf32> to vector<128x128xf32>
    %258 = arith.addf %256, %257 : vector<128x128xf32>
    %259 = arith.truncf %258 : vector<128x128xf32> to vector<128x128xbf16>
    %c0_80 = arith.constant 0 : index
    %c0_81 = arith.constant 0 : index
    %260 = vector.load %arg6[%c0_80, %c0_81] : memref<128x256xbf16, #tpu.memory_space<vmem>>, vector<128x256xbf16>
    %cst_82 = arith.constant dense<0.000000e+00> : vector<128x256xf32>
    %261 = tpu.matmul %259, %260, %cst_82 {dimension_numbers = #tpu.dot_dimension_numbers<[1], [0], [0], [1], [0, 0, 1, 1], [], []>} : vector<128x128xbf16>, vector<128x256xbf16>, vector<128x256xf32> -> vector<128x256xf32>
    %cst_83 = arith.constant 5.000000e-01 : f32
    %262 = vector.broadcast %cst_83 : f32 to vector<128x256xf32>
    %263 = arith.mulf %262, %261 : vector<128x256xf32>
    %cst_84 = arith.constant 4.471500e-02 : f32
    %264 = vector.broadcast %cst_84 : f32 to vector<128x256xf32>
    %265 = arith.mulf %264, %261 : vector<128x256xf32>
    %266 = arith.mulf %265, %261 : vector<128x256xf32>
    %267 = arith.mulf %266, %261 : vector<128x256xf32>
    %268 = arith.addf %261, %267 : vector<128x256xf32>
    %cst_85 = arith.constant 0.797884583 : f32
    %269 = vector.broadcast %cst_85 : f32 to vector<128x256xf32>
    %270 = arith.mulf %269, %268 : vector<128x256xf32>
    %271 = math.tanh %270 : vector<128x256xf32>
    %cst_86 = arith.constant 1.000000e+00 : f32
    %272 = vector.broadcast %cst_86 : f32 to vector<128x256xf32>
    %273 = arith.addf %272, %271 : vector<128x256xf32>
    %274 = arith.mulf %263, %273 : vector<128x256xf32>
    %275 = arith.truncf %274 : vector<128x256xf32> to vector<128x256xbf16>
    %c0_87 = arith.constant 0 : index
    %c0_88 = arith.constant 0 : index
    %276 = vector.load %arg7[%c0_87, %c0_88] : memref<256x128xbf16, #tpu.memory_space<vmem>>, vector<256x128xbf16>
    %cst_89 = arith.constant dense<0.000000e+00> : vector<128x128xf32>
    %277 = tpu.matmul %275, %276, %cst_89 {dimension_numbers = #tpu.dot_dimension_numbers<[1], [0], [0], [1], [0, 0, 1, 1], [], []>} : vector<128x256xbf16>, vector<256x128xbf16>, vector<128x128xf32> -> vector<128x128xf32>
    %278 = arith.addf %236, %277 : vector<128x128xf32>
    %279 = vector.shape_cast %278 : vector<128x128xf32> to vector<2x64x128xf32>
    %c0_90 = arith.constant 0 : index
    %c0_91 = arith.constant 0 : index
    %c0_92 = arith.constant 0 : index
    %280 = vector.load %arg14[%c0_90, %c0_91, %c0_92] : memref<2x64x128xf32, #tpu.memory_space<vmem>>, vector<2x64x128xf32>
    tpu.vector_store %arg14[%c0_90, %c0_91, %c0_92], %279 {strides = array<i32>} : memref<2x64x128xf32, #tpu.memory_space<vmem>>, vector<2x64x128xf32>,
    return
  }
  func.func @transform_0(%arg0: i32) -> (i32, i32, i32) {
    %c0_i32 = arith.constant 0 : i32
    %c0_i32_0 = arith.constant 0 : i32
    %c0_i32_1 = arith.constant 0 : i32
    return %arg0, %c0_i32, %c0_i32_0 : i32, i32, i32
  }
  func.func @transform_1(%arg0: i32) -> (i32, i32, i32) {
    %c0_i32 = arith.constant 0 : i32
    %c0_i32_0 = arith.constant 0 : i32
    %c0_i32_1 = arith.constant 0 : i32
    return %arg0, %c0_i32, %c0_i32_0 : i32, i32, i32
  }
  func.func @transform_2(%arg0: i32) -> (i32, i32) {
    %c0_i32 = arith.constant 0 : i32
    %c0_i32_0 = arith.constant 0 : i32
    %c0_i32_1 = arith.constant 0 : i32
    return %c0_i32, %c0_i32_0 : i32, i32
  }
  func.func @transform_3(%arg0: i32) -> (i32, i32) {
    %c0_i32 = arith.constant 0 : i32
    %c0_i32_0 = arith.constant 0 : i32
    %c0_i32_1 = arith.constant 0 : i32
    return %c0_i32, %c0_i32_0 : i32, i32
  }
  func.func @transform_4(%arg0: i32) -> (i32, i32) {
    %c0_i32 = arith.constant 0 : i32
    %c0_i32_0 = arith.constant 0 : i32
    %c0_i32_1 = arith.constant 0 : i32
    return %c0_i32, %c0_i32_0 : i32, i32
  }
  func.func @transform_5(%arg0: i32) -> (i32, i32) {
    %c0_i32 = arith.constant 0 : i32
    %c0_i32_0 = arith.constant 0 : i32
    %c0_i32_1 = arith.constant 0 : i32
    return %c0_i32, %c0_i32_0 : i32, i32
  }
  func.func @transform_6(%arg0: i32) -> (i32, i32) {
    %c0_i32 = arith.constant 0 : i32
    %c0_i32_0 = arith.constant 0 : i32
    %c0_i32_1 = arith.constant 0 : i32
    return %c0_i32, %c0_i32_0 : i32, i32
  }
  func.func @transform_7(%arg0: i32) -> (i32, i32) {
    %c0_i32 = arith.constant 0 : i32
    %c0_i32_0 = arith.constant 0 : i32
    %c0_i32_1 = arith.constant 0 : i32
    return %c0_i32, %c0_i32_0 : i32, i32
  }
  func.func @transform_8(%arg0: i32) -> (i32, i32) {
    %c0_i32 = arith.constant 0 : i32
    %c0_i32_0 = arith.constant 0 : i32
    %c0_i32_1 = arith.constant 0 : i32
    return %c0_i32, %c0_i32_0 : i32, i32
  }
  func.func @transform_9(%arg0: i32) -> (i32, i32) {
    %c0_i32 = arith.constant 0 : i32
    %c0_i32_0 = arith.constant 0 : i32
    %c0_i32_1 = arith.constant 0 : i32
    return %c0_i32, %c0_i32_0 : i32, i32
  }
  func.func @transform_10(%arg0: i32) -> (i32, i32) {
    %c0_i32 = arith.constant 0 : i32
    %c0_i32_0 = arith.constant 0 : i32
    %c0_i32_1 = arith.constant 0 : i32
    return %c0_i32, %c0_i32_0 : i32, i32
  }
  func.func @transform_11(%arg0: i32) -> (i32, i32) {
    %c0_i32 = arith.constant 0 : i32
    %c0_i32_0 = arith.constant 0 : i32
    %c0_i32_1 = arith.constant 0 : i32
    return %c0_i32, %c0_i32_0 : i32, i32
  }
  func.func @transform_12(%arg0: i32) -> (i32, i32) {
    %c0_i32 = arith.constant 0 : i32
    %c0_i32_0 = arith.constant 0 : i32
    %c0_i32_1 = arith.constant 0 : i32
    return %c0_i32, %c0_i32_0 : i32, i32
  }
  func.func @transform_13(%arg0: i32) -> (i32, i32, i32) {
    %c0_i32 = arith.constant 0 : i32
    %c0_i32_0 = arith.constant 0 : i32
    %c0_i32_1 = arith.constant 0 : i32
    return %arg0, %c0_i32, %c0_i32_0 : i32, i32, i32
  }
}

</mosaic_0001>

<llo_original>
// kernel: tpu_custom_call.1
$region0: #{tpu_custom_call.1}
  #allocation0 [shape = 'u32[]', space=smem, size = 0x4, offset = 0x4, fixed_abs, tag = 'smem constant byte address 0x4 - core index']
  #allocation1 [shape = 'u32[144,128]{1,0:T(1,128)}', space=vmem, size = 0x12000, scoped, tag = 'internal scratch']
  %s0 = inlined_call_operand.hbm [shape: f32[2,64,128], index: 0, kind: input, shape index: {}]
  %s1 = inlined_call_operand.hbm [shape: f32[2,48,128], index: 1, kind: input, shape index: {}]
  %s2 = inlined_call_operand.hbm [shape: bf16[128,128], index: 2, kind: input, shape index: {}]
  %s3 = inlined_call_operand.hbm [shape: bf16[128,256], index: 3, kind: input, shape index: {}]
  %s4 = inlined_call_operand.hbm [shape: bf16[128,128], index: 4, kind: input, shape index: {}]
  %s5 = inlined_call_operand.hbm [shape: bf16[128,256], index: 5, kind: input, shape index: {}]
  %s6 = inlined_call_operand.hbm [shape: bf16[256,128], index: 6, kind: input, shape index: {}]
  %s7 = inlined_call_operand.vmem [shape: f32[1,128], index: 7, kind: input, shape index: {}]
  %s8 = inlined_call_operand.vmem [shape: f32[1,128], index: 8, kind: input, shape index: {}]
  %s9 = inlined_call_operand.vmem [shape: f32[1,128], index: 9, kind: input, shape index: {}]
  %s10 = inlined_call_operand.vmem [shape: f32[1,128], index: 10, kind: input, shape index: {}]
  %s11 = inlined_call_operand.vmem [shape: f32[1,128], index: 11, kind: input, shape index: {}]
  %s12 = inlined_call_operand.vmem [shape: f32[1,128], index: 12, kind: input, shape index: {}]
  %s13 = inlined_call_operand.hbm [shape: f32[2,64,128], index: 13, kind: output, shape index: {}]
  %s14 = sld [smem:[#allocation0]]
  $region90: #{tpu_custom_call.1} parent=0
    _
  %s16 = ssub.s32 1, %s14
  %s17 = scalar_select 0, %s16, %s14
  $region1: #{tpu_custom_call.1} parent=0
    #allocation2 [shape = 'u8[65536]{0}', space=vmem, size = 0x10000, scoped, tag = 'input window, operand 0, single buffered']
    #allocation3 [shape = 's32[1]{0}', space=sflag, size = 0x4, scoped, tag = 'scoped memory for tpu_custom_call.1']
    #allocation4 [shape = 's32[1]{0}', space=sflag, size = 0x4, scoped, tag = 'scoped memory for tpu_custom_call.1']
    #allocation5 [shape = 'u8[49152]{0}', space=vmem, size = 0xc000, scoped, tag = 'input window, operand 1, single buffered']
    #allocation6 [shape = 's32[1]{0}', space=sflag, size = 0x4, scoped, tag = 'scoped memory for tpu_custom_call.1']
    #allocation7 [shape = 'u8[32768]{0}', space=vmem, size = 0x8000, scoped, tag = 'input window, operand 2, single buffered']
    #allocation8 [shape = 'u8[65536]{0}', space=vmem, size = 0x10000, scoped, tag = 'input window, operand 3, single buffered']
    #allocation9 [shape = 's32[1]{0}', space=sflag, size = 0x4, scoped, tag = 'scoped memory for tpu_custom_call.1']
    #allocation10 [shape = 'u8[32768]{0}', space=vmem, size = 0x8000, scoped, tag = 'input window, operand 4, single buffered']
    #allocation11 [shape = 'u8[65536]{0}', space=vmem, size = 0x10000, scoped, tag = 'input window, operand 5, single buffered']
    #allocation12 [shape = 's32[1]{0}', space=sflag, size = 0x4, scoped, tag = 'scoped memory for tpu_custom_call.1']
    #allocation13 [shape = 'u8[65536]{0}', space=vmem, size = 0x10000, scoped, tag = 'input window, operand 6, single buffered']
    #allocation14 [shape = 'u8[65536]{0}', space=vmem, size = 0x10000, scoped, tag = 'output window, operand 0, single buffered']
    %18 = vsyncpa [#allocation3], 0
    %19 = vsyncpa [#allocation6], 0
    %20 = vsyncpa [#allocation9], 0
    %21 = vsyncpa [#allocation12], 0
    %22 = vsyncpa [#allocation4], 0
    // Predicated region
    $region2: #{tpu_custom_call.1} parent=1 // pred_check
      _
    $region3: #{tpu_custom_call.1} parent=1 // pred_check_branch
      %24 = sbr.rel (0) target = $region5
    $region4: #{tpu_custom_call.1} parent=1 // pred_region
      %s26 = ssub.s32 2048, 2048
      %27 = vsyncadd [#allocation3], %s26
      %s28 = sshll.u32 [#allocation2], 4
      %s29 = int_to_ptr.vmem [resolvable:$true] %s28
      %34 = dma.hbm_to_vmem [thread:$0]  %s0, 2048, %s29, [#allocation3], 128, 128, 8
    $region5: #{tpu_custom_call.1} parent=1 // pred_fallthru
      _
    // Predicated region
    $region6: #{tpu_custom_call.1} parent=1 // pred_check
      _
    $region7: #{tpu_custom_call.1} parent=1 // pred_check_branch
      %36 = sbr.rel (0) target = $region9
    $region8: #{tpu_custom_call.1} parent=1 // pred_region
      %s38 = ssub.s32 1536, 1536
      %39 = vsyncadd [#allocation6], %s38
      %s40 = sshll.u32 [#allocation5], 4
      %s41 = int_to_ptr.vmem [resolvable:$true] %s40
      %46 = dma.hbm_to_vmem [thread:$0]  %s1, 1536, %s41, [#allocation6], 128, 128, 8
    $region9: #{tpu_custom_call.1} parent=1 // pred_fallthru
      _
    // Predicated region
    $region10: #{tpu_custom_call.1} parent=1 // pred_check
      _
    $region11: #{tpu_custom_call.1} parent=1 // pred_check_branch
      %48 = sbr.rel (0) target = $region13
    $region12: #{tpu_custom_call.1} parent=1 // pred_region
      %s50 = ssub.s32 1024, 1024
      %51 = vsyncadd [#allocation6], %s50
      %s52 = sshll.u32 [#allocation7], 4
      %s53 = int_to_ptr.vmem [resolvable:$true] %s52
      %58 = dma.hbm_to_vmem [thread:$0]  %s2, 1024, %s53, [#allocation6], 64, 64, 4
    $region13: #{tpu_custom_call.1} parent=1 // pred_fallthru
      _
    // Predicated region
    $region14: #{tpu_custom_call.1} parent=1 // pred_check
      _
    $region15: #{tpu_custom_call.1} parent=1 // pred_check_branch
      %60 = sbr.rel (0) target = $region17
    $region16: #{tpu_custom_call.1} parent=1 // pred_region
      %s62 = ssub.s32 2048, 2048
      %63 = vsyncadd [#allocation9], %s62
      %s64 = sshll.u32 [#allocation8], 4
      %s65 = int_to_ptr.vmem [resolvable:$true] %s64
      %70 = dma.hbm_to_vmem [thread:$0]  %s3, 2048, %s65, [#allocation9], 128, 128, 8
    $region17: #{tpu_custom_call.1} parent=1 // pred_fallthru
      _
    // Predicated region
    $region18: #{tpu_custom_call.1} parent=1 // pred_check
      _
    $region19: #{tpu_custom_call.1} parent=1 // pred_check_branch
      %72 = sbr.rel (0) target = $region21
    $region20: #{tpu_custom_call.1} parent=1 // pred_region
      %s74 = ssub.s32 1024, 1024
      %75 = vsyncadd [#allocation9], %s74
      %s76 = sshll.u32 [#allocation10], 4
      %s77 = int_to_ptr.vmem [resolvable:$true] %s76
      %82 = dma.hbm_to_vmem [thread:$0]  %s4, 1024, %s77, [#allocation9], 64, 64, 4
    $region21: #{tpu_custom_call.1} parent=1 // pred_fallthru
      _
    // Predicated region
    $region22: #{tpu_custom_call.1} parent=1 // pred_check
      _
    $region23: #{tpu_custom_call.1} parent=1 // pred_check_branch
      %84 = sbr.rel (0) target = $region25
    $region24: #{tpu_custom_call.1} parent=1 // pred_region
      %s86 = ssub.s32 2048, 2048
      %87 = vsyncadd [#allocation12], %s86
      %s88 = sshll.u32 [#allocation11], 4
      %s89 = int_to_ptr.vmem [resolvable:$true] %s88
      %94 = dma.hbm_to_vmem [thread:$0]  %s5, 2048, %s89, [#allocation12], 128, 128, 8
    $region25: #{tpu_custom_call.1} parent=1 // pred_fallthru
      _
    // Predicated region
    $region26: #{tpu_custom_call.1} parent=1 // pred_check
      _
    $region27: #{tpu_custom_call.1} parent=1 // pred_check_branch
      %96 = sbr.rel (0) target = $region29
    $region28: #{tpu_custom_call.1} parent=1 // pred_region
      %s98 = ssub.s32 2048, 2048
      %99 = vsyncadd [#allocation12], %s98
      %s100 = sshll.u32 [#allocation13], 4
      %s101 = int_to_ptr.vmem [resolvable:$true] %s100
      %106 = dma.hbm_to_vmem [thread:$0]  %s6, 2048, %s101, [#allocation12], 64, 64, 4
    $region29: #{tpu_custom_call.1} parent=1 // pred_fallthru
      _
    // Predicated region
    $region30: #{tpu_custom_call.1} parent=1 // pred_check
      _
    $region31: #{tpu_custom_call.1} parent=1 // pred_check_branch
      %108 = sbr.rel (0) target = $region33
    $region32: #{tpu_custom_call.1} parent=1 // pred_region
      _
    $region33: #{tpu_custom_call.1} parent=1 // pred_fallthru
      _
    // Predicated region
    $region34: #{tpu_custom_call.1} parent=1 // pred_check
      _
    $region35: #{tpu_custom_call.1} parent=1 // pred_check_branch
      %110 = sbr.rel (0) target = $region37
    $region36: #{tpu_custom_call.1} parent=1 // pred_region
      _
    $region37: #{tpu_custom_call.1} parent=1 // pred_fallthru
      _
    // Predicated region
    $region38: #{tpu_custom_call.1} parent=1 // pred_check
      _
    $region39: #{tpu_custom_call.1} parent=1 // pred_check_branch
      %112 = sbr.rel (0) target = $region41
    $region40: #{tpu_custom_call.1} parent=1 // pred_region
      _
    $region41: #{tpu_custom_call.1} parent=1 // pred_fallthru
      _
    // Predicated region
    $region42: #{tpu_custom_call.1} parent=1 // pred_check
      _
    $region43: #{tpu_custom_call.1} parent=1 // pred_check_branch
      %114 = sbr.rel (0) target = $region45
    $region44: #{tpu_custom_call.1} parent=1 // pred_region
      _
    $region45: #{tpu_custom_call.1} parent=1 // pred_fallthru
      _
    // Predicated region
    $region46: #{tpu_custom_call.1} parent=1 // pred_check
      _
    $region47: #{tpu_custom_call.1} parent=1 // pred_check_branch
      %116 = sbr.rel (0) target = $region49
    $region48: #{tpu_custom_call.1} parent=1 // pred_region
      _
    $region49: #{tpu_custom_call.1} parent=1 // pred_fallthru
      _
    // Predicated region
    $region50: #{tpu_custom_call.1} parent=1 // pred_check
      _
    $region51: #{tpu_custom_call.1} parent=1 // pred_check_branch
      %118 = sbr.rel (0) target = $region53
    $region52: #{tpu_custom_call.1} parent=1 // pred_region
      _
    $region53: #{tpu_custom_call.1} parent=1 // pred_fallthru
      _
    // Predicated region
    $region54: #{tpu_custom_call.1} parent=1 // pred_check
      _
    $region55: #{tpu_custom_call.1} parent=1 // pred_check_branch
      %120 = sbr.rel (0) target = $region57
    $region56: #{tpu_custom_call.1} parent=1 // pred_region
      %121 = dma.done [#allocation3], 2048
    $region57: #{tpu_custom_call.1} parent=1 // pred_fallthru
      _
    // Predicated region
    $region58: #{tpu_custom_call.1} parent=1 // pred_check
      _
    $region59: #{tpu_custom_call.1} parent=1 // pred_check_branch
      %123 = sbr.rel (0) target = $region61
    $region60: #{tpu_custom_call.1} parent=1 // pred_region
      %124 = dma.done [#allocation6], 1536
    $region61: #{tpu_custom_call.1} parent=1 // pred_fallthru
      _
    // Predicated region
    $region62: #{tpu_custom_call.1} parent=1 // pred_check
      _
    $region63: #{tpu_custom_call.1} parent=1 // pred_check_branch
      %126 = sbr.rel (0) target = $region65
    $region64: #{tpu_custom_call.1} parent=1 // pred_region
      %127 = dma.done [#allocation6], 1024
    $region65: #{tpu_custom_call.1} parent=1 // pred_fallthru
      _
    // Predicated region
    $region66: #{tpu_custom_call.1} parent=1 // pred_check
      _
    $region67: #{tpu_custom_call.1} parent=1 // pred_check_branch
      %129 = sbr.rel (0) target = $region69
    $region68: #{tpu_custom_call.1} parent=1 // pred_region
      %130 = dma.done [#allocation9], 2048
    $region69: #{tpu_custom_call.1} parent=1 // pred_fallthru
      _
    // Predicated region
    $region70: #{tpu_custom_call.1} parent=1 // pred_check
      _
    $region71: #{tpu_custom_call.1} parent=1 // pred_check_branch
      %132 = sbr.rel (0) target = $region73
    $region72: #{tpu_custom_call.1} parent=1 // pred_region
      %133 = dma.done [#allocation9], 1024
    $region73: #{tpu_custom_call.1} parent=1 // pred_fallthru
      _
    // Predicated region
    $region74: #{tpu_custom_call.1} parent=1 // pred_check
      _
    $region75: #{tpu_custom_call.1} parent=1 // pred_check_branch
      %135 = sbr.rel (0) target = $region77
    $region76: #{tpu_custom_call.1} parent=1 // pred_region
      %136 = dma.done [#allocation12], 2048
    $region77: #{tpu_custom_call.1} parent=1 // pred_fallthru
      _
    // Predicated region
    $region78: #{tpu_custom_call.1} parent=1 // pred_check
      _
    $region79: #{tpu_custom_call.1} parent=1 // pred_check_branch
      %138 = sbr.rel (0) target = $region81
    $region80: #{tpu_custom_call.1} parent=1 // pred_region
      %139 = dma.done [#allocation12], 2048
    $region81: #{tpu_custom_call.1} parent=1 // pred_fallthru
      _
    %v141 = vld [vmem:[#allocation2] sm:$0xff]
    %v142 = vld [vmem:[#allocation2 + $0x8] sm:$0xff]
    %v143 = vld [vmem:[#allocation2 + $0x10] sm:$0xff]
    %v144 = vld [vmem:[#allocation2 + $0x18] sm:$0xff]
    %v145 = vld [vmem:[#allocation2 + $0x20] sm:$0xff]
    %v146 = vld [vmem:[#allocation2 + $0x28] sm:$0xff]
    %v147 = vld [vmem:[#allocation2 + $0x30] sm:$0xff]
    %v148 = vld [vmem:[#allocation2 + $0x38] sm:$0xff]
    %v149 = vld [vmem:[#allocation2 + $0x40] sm:$0xff]
    %v150 = vld [vmem:[#allocation2 + $0x48] sm:$0xff]
    %v151 = vld [vmem:[#allocation2 + $0x50] sm:$0xff]
    %v152 = vld [vmem:[#allocation2 + $0x58] sm:$0xff]
    %v153 = vld [vmem:[#allocation2 + $0x60] sm:$0xff]
    %v154 = vld [vmem:[#allocation2 + $0x68] sm:$0xff]
    %v155 = vld [vmem:[#allocation2 + $0x70] sm:$0xff]
    %v156 = vld [vmem:[#allocation2 + $0x78] sm:$0xff]
    %v157 = vld [vmem:[#allocation5] sm:$0xff]
    %v158 = vld [vmem:[#allocation5 + $0x8] sm:$0xff]
    %v159 = vld [vmem:[#allocation5 + $0x10] sm:$0xff]
    %v160 = vld [vmem:[#allocation5 + $0x18] sm:$0xff]
    %v161 = vld [vmem:[#allocation5 + $0x20] sm:$0xff]
    %v162 = vld [vmem:[#allocation5 + $0x28] sm:$0xff]
    %v163 = vld [vmem:[#allocation5 + $0x30] sm:$0xff]
    %v164 = vld [vmem:[#allocation5 + $0x38] sm:$0xff]
    %v165 = vld [vmem:[#allocation5 + $0x40] sm:$0xff]
    %v166 = vld [vmem:[#allocation5 + $0x48] sm:$0xff]
    %v167 = vld [vmem:[#allocation5 + $0x50] sm:$0xff]
    %v168 = vld [vmem:[#allocation5 + $0x58] sm:$0xff]
    %v169 = vld [vmem:[%s7] sm:$0x1]
    %v170 = vld [vmem:[%s8] sm:$0x1]
    %171 = vadd.xlane.f32.xlu0 %v141
    %v172 = vpop.xlane.xlu0 %171
    %173 = vadd.xlane.f32.xlu0 %v142
    %v174 = vpop.xlane.xlu0 %173
    %175 = vadd.xlane.f32.xlu0 %v143
    %v176 = vpop.xlane.xlu0 %175
    %177 = vadd.xlane.f32.xlu0 %v144
    %v178 = vpop.xlane.xlu0 %177
    %179 = vadd.xlane.f32.xlu0 %v145
    %v180 = vpop.xlane.xlu0 %179
    %181 = vadd.xlane.f32.xlu0 %v146
    %v182 = vpop.xlane.xlu0 %181
    %183 = vadd.xlane.f32.xlu0 %v147
    %v184 = vpop.xlane.xlu0 %183
    %185 = vadd.xlane.f32.xlu0 %v148
    %v186 = vpop.xlane.xlu0 %185
    %187 = vadd.xlane.f32.xlu0 %v149
    %v188 = vpop.xlane.xlu0 %187
    %189 = vadd.xlane.f32.xlu0 %v150
    %v190 = vpop.xlane.xlu0 %189
    %191 = vadd.xlane.f32.xlu0 %v151
    %v192 = vpop.xlane.xlu0 %191
    %193 = vadd.xlane.f32.xlu0 %v152
    %v194 = vpop.xlane.xlu0 %193
    %195 = vadd.xlane.f32.xlu0 %v153
    %v196 = vpop.xlane.xlu0 %195
    %197 = vadd.xlane.f32.xlu0 %v154
    %v198 = vpop.xlane.xlu0 %197
    %199 = vadd.xlane.f32.xlu0 %v155
    %v200 = vpop.xlane.xlu0 %199
    %201 = vadd.xlane.f32.xlu0 %v156
    %v202 = vpop.xlane.xlu0 %201
    %v203 = vrcp.pop 128.0
    %v204 = vmul.f32 %v172, %v203
    %v205 = vmul.f32 %v174, %v203
    %v206 = vmul.f32 %v176, %v203
    %v207 = vmul.f32 %v178, %v203
    %v208 = vmul.f32 %v180, %v203
    %v209 = vmul.f32 %v182, %v203
    %v210 = vmul.f32 %v184, %v203
    %v211 = vmul.f32 %v186, %v203
    %v212 = vmul.f32 %v188, %v203
    %v213 = vmul.f32 %v190, %v203
    %v214 = vmul.f32 %v192, %v203
    %v215 = vmul.f32 %v194, %v203
    %v216 = vmul.f32 %v196, %v203
    %v217 = vmul.f32 %v198, %v203
    %v218 = vmul.f32 %v200, %v203
    %v219 = vmul.f32 %v202, %v203
    %v220 = vsub.f32 %v141, %v204
    %v221 = vsub.f32 %v142, %v205
    %v222 = vsub.f32 %v143, %v206
    %v223 = vsub.f32 %v144, %v207
    %v224 = vsub.f32 %v145, %v208
    %v225 = vsub.f32 %v146, %v209
    %v226 = vsub.f32 %v147, %v210
    %v227 = vsub.f32 %v148, %v211
    %v228 = vsub.f32 %v149, %v212
    %v229 = vsub.f32 %v150, %v213
    %v230 = vsub.f32 %v151, %v214
    %v231 = vsub.f32 %v152, %v215
    %v232 = vsub.f32 %v153, %v216
    %v233 = vsub.f32 %v154, %v217
    %v234 = vsub.f32 %v155, %v218
    %v235 = vsub.f32 %v156, %v219
    %v236 = vmul.f32 %v220, %v220
    %v237 = vmul.f32 %v221, %v221
    %v238 = vmul.f32 %v222, %v222
    %v239 = vmul.f32 %v223, %v223
    %v240 = vmul.f32 %v224, %v224
    %v241 = vmul.f32 %v225, %v225
    %v242 = vmul.f32 %v226, %v226
    %v243 = vmul.f32 %v227, %v227
    %v244 = vmul.f32 %v228, %v228
    %v245 = vmul.f32 %v229, %v229
    %v246 = vmul.f32 %v230, %v230
    %v247 = vmul.f32 %v231, %v231
    %v248 = vmul.f32 %v232, %v232
    %v249 = vmul.f32 %v233, %v233
    %v250 = vmul.f32 %v234, %v234
    %v251 = vmul.f32 %v235, %v235
    %252 = vadd.xlane.f32.xlu0 %v236
    %v253 = vpop.xlane.xlu0 %252
    %254 = vadd.xlane.f32.xlu0 %v237
    %v255 = vpop.xlane.xlu0 %254
    %256 = vadd.xlane.f32.xlu0 %v238
    %v257 = vpop.xlane.xlu0 %256
    %258 = vadd.xlane.f32.xlu0 %v239
    %v259 = vpop.xlane.xlu0 %258
    %260 = vadd.xlane.f32.xlu0 %v240
    %v261 = vpop.xlane.xlu0 %260
    %262 = vadd.xlane.f32.xlu0 %v241
    %v263 = vpop.xlane.xlu0 %262
    %264 = vadd.xlane.f32.xlu0 %v242
    %v265 = vpop.xlane.xlu0 %264
    %266 = vadd.xlane.f32.xlu0 %v243
    %v267 = vpop.xlane.xlu0 %266
    %268 = vadd.xlane.f32.xlu0 %v244
    %v269 = vpop.xlane.xlu0 %268
    %270 = vadd.xlane.f32.xlu0 %v245
    %v271 = vpop.xlane.xlu0 %270
    %272 = vadd.xlane.f32.xlu0 %v246
    %v273 = vpop.xlane.xlu0 %272
    %274 = vadd.xlane.f32.xlu0 %v247
    %v275 = vpop.xlane.xlu0 %274
    %276 = vadd.xlane.f32.xlu0 %v248
    %v277 = vpop.xlane.xlu0 %276
    %278 = vadd.xlane.f32.xlu0 %v249
    %v279 = vpop.xlane.xlu0 %278
    %280 = vadd.xlane.f32.xlu0 %v250
    %v281 = vpop.xlane.xlu0 %280
    %282 = vadd.xlane.f32.xlu0 %v251
    %v283 = vpop.xlane.xlu0 %282
    %v284 = vmul.f32 %v253, %v203
    %v285 = vmul.f32 %v255, %v203
    %v286 = vmul.f32 %v257, %v203
    %v287 = vmul.f32 %v259, %v203
    %v288 = vmul.f32 %v261, %v203
    %v289 = vmul.f32 %v263, %v203
    %v290 = vmul.f32 %v265, %v203
    %v291 = vmul.f32 %v267, %v203
    %v292 = vmul.f32 %v269, %v203
    %v293 = vmul.f32 %v271, %v203
    %v294 = vmul.f32 %v273, %v203
    %v295 = vmul.f32 %v275, %v203
    %v296 = vmul.f32 %v277, %v203
    %v297 = vmul.f32 %v279, %v203
    %v298 = vmul.f32 %v281, %v203
    %v299 = vmul.f32 %v283, %v203
    %v300 = vadd.f32 %v284, 1e-05
    %v301 = vadd.f32 %v285, 1e-05
    %v302 = vadd.f32 %v286, 1e-05
    %v303 = vadd.f32 %v287, 1e-05
    %v304 = vadd.f32 %v288, 1e-05
    %v305 = vadd.f32 %v289, 1e-05
    %v306 = vadd.f32 %v290, 1e-05
    %v307 = vadd.f32 %v291, 1e-05
    %v308 = vadd.f32 %v292, 1e-05
    %v309 = vadd.f32 %v293, 1e-05
    %v310 = vadd.f32 %v294, 1e-05
    %v311 = vadd.f32 %v295, 1e-05
    %v312 = vadd.f32 %v296, 1e-05
    %v313 = vadd.f32 %v297, 1e-05
    %v314 = vadd.f32 %v298, 1e-05
    %v315 = vadd.f32 %v299, 1e-05
    %v316 = vrsqrt.pop %v300
    %v317 = vrsqrt.pop %v301
    %v318 = vrsqrt.pop %v302
    %v319 = vrsqrt.pop %v303
    %v320 = vrsqrt.pop %v304
    %v321 = vrsqrt.pop %v305
    %v322 = vrsqrt.pop %v306
    %v323 = vrsqrt.pop %v307
    %v324 = vrsqrt.pop %v308
    %v325 = vrsqrt.pop %v309
    %v326 = vrsqrt.pop %v310
    %v327 = vrsqrt.pop %v311
    %v328 = vrsqrt.pop %v312
    %v329 = vrsqrt.pop %v313
    %v330 = vrsqrt.pop %v314
    %v331 = vrsqrt.pop %v315
    %v332 = vmul.f32 %v220, %v316
    %v333 = vmul.f32 %v221, %v317
    %v334 = vmul.f32 %v222, %v318
    %v335 = vmul.f32 %v223, %v319
    %v336 = vmul.f32 %v224, %v320
    %v337 = vmul.f32 %v225, %v321
    %v338 = vmul.f32 %v226, %v322
    %v339 = vmul.f32 %v227, %v323
    %v340 = vmul.f32 %v228, %v324
    %v341 = vmul.f32 %v229, %v325
    %v342 = vmul.f32 %v230, %v326
    %v343 = vmul.f32 %v231, %v327
    %v344 = vmul.f32 %v232, %v328
    %v345 = vmul.f32 %v233, %v329
    %v346 = vmul.f32 %v234, %v330
    %v347 = vmul.f32 %v235, %v331
    %v349 = vlaneseq
    %v350 = vshrl.u32 %v349, 7
    %v351 = vsub.s32 0, %v350
    %v352 = vrot.slane %v169, %v351
    %v354 = vmul.f32 %v332, %v352
    %v355 = vmul.f32 %v333, %v352
    %v356 = vmul.f32 %v334, %v352
    %v357 = vmul.f32 %v335, %v352
    %v358 = vmul.f32 %v336, %v352
    %v359 = vmul.f32 %v337, %v352
    %v360 = vmul.f32 %v338, %v352
    %v361 = vmul.f32 %v339, %v352
    %v362 = vmul.f32 %v340, %v352
    %v363 = vmul.f32 %v341, %v352
    %v364 = vmul.f32 %v342, %v352
    %v365 = vmul.f32 %v343, %v352
    %v366 = vmul.f32 %v344, %v352
    %v367 = vmul.f32 %v345, %v352
    %v368 = vmul.f32 %v346, %v352
    %v369 = vmul.f32 %v347, %v352
    %v371 = vlaneseq
    %v372 = vshrl.u32 %v371, 7
    %v373 = vsub.s32 0, %v372
    %v374 = vrot.slane %v170, %v373
    %v376 = vadd.f32 %v354, %v374
    %v377 = vadd.f32 %v355, %v374
    %v378 = vadd.f32 %v356, %v374
    %v379 = vadd.f32 %v357, %v374
    %v380 = vadd.f32 %v358, %v374
    %v381 = vadd.f32 %v359, %v374
    %v382 = vadd.f32 %v360, %v374
    %v383 = vadd.f32 %v361, %v374
    %v384 = vadd.f32 %v362, %v374
    %v385 = vadd.f32 %v363, %v374
    %v386 = vadd.f32 %v364, %v374
    %v387 = vadd.f32 %v365, %v374
    %v388 = vadd.f32 %v366, %v374
    %v389 = vadd.f32 %v367, %v374
    %v390 = vadd.f32 %v368, %v374
    %v391 = vadd.f32 %v369, %v374
    %v392 = vld [vmem:[%s9] sm:$0x1]
    %v393 = vld [vmem:[%s10] sm:$0x1]
    %394 = vadd.xlane.f32.xlu0 %v157
    %v395 = vpop.xlane.xlu0 %394
    %396 = vadd.xlane.f32.xlu0 %v158
    %v397 = vpop.xlane.xlu0 %396
    %398 = vadd.xlane.f32.xlu0 %v159
    %v399 = vpop.xlane.xlu0 %398
    %400 = vadd.xlane.f32.xlu0 %v160
    %v401 = vpop.xlane.xlu0 %400
    %402 = vadd.xlane.f32.xlu0 %v161
    %v403 = vpop.xlane.xlu0 %402
    %404 = vadd.xlane.f32.xlu0 %v162
    %v405 = vpop.xlane.xlu0 %404
    %406 = vadd.xlane.f32.xlu0 %v163
    %v407 = vpop.xlane.xlu0 %406
    %408 = vadd.xlane.f32.xlu0 %v164
    %v409 = vpop.xlane.xlu0 %408
    %410 = vadd.xlane.f32.xlu0 %v165
    %v411 = vpop.xlane.xlu0 %410
    %412 = vadd.xlane.f32.xlu0 %v166
    %v413 = vpop.xlane.xlu0 %412
    %414 = vadd.xlane.f32.xlu0 %v167
    %v415 = vpop.xlane.xlu0 %414
    %416 = vadd.xlane.f32.xlu0 %v168
    %v417 = vpop.xlane.xlu0 %416
    %v418 = vmul.f32 %v395, %v203
    %v419 = vmul.f32 %v397, %v203
    %v420 = vmul.f32 %v399, %v203
    %v421 = vmul.f32 %v401, %v203
    %v422 = vmul.f32 %v403, %v203
    %v423 = vmul.f32 %v405, %v203
    %v424 = vmul.f32 %v407, %v203
    %v425 = vmul.f32 %v409, %v203
    %v426 = vmul.f32 %v411, %v203
    %v427 = vmul.f32 %v413, %v203
    %v428 = vmul.f32 %v415, %v203
    %v429 = vmul.f32 %v417, %v203
    %v430 = vsub.f32 %v157, %v418
    %v431 = vsub.f32 %v158, %v419
    %v432 = vsub.f32 %v159, %v420
    %v433 = vsub.f32 %v160, %v421
    %v434 = vsub.f32 %v161, %v422
    %v435 = vsub.f32 %v162, %v423
    %v436 = vsub.f32 %v163, %v424
    %v437 = vsub.f32 %v164, %v425
    %v438 = vsub.f32 %v165, %v426
    %v439 = vsub.f32 %v166, %v427
    %v440 = vsub.f32 %v167, %v428
    %v441 = vsub.f32 %v168, %v429
    %v442 = vmul.f32 %v430, %v430
    %v443 = vmul.f32 %v431, %v431
    %v444 = vmul.f32 %v432, %v432
    %v445 = vmul.f32 %v433, %v433
    %v446 = vmul.f32 %v434, %v434
    %v447 = vmul.f32 %v435, %v435
    %v448 = vmul.f32 %v436, %v436
    %v449 = vmul.f32 %v437, %v437
    %v450 = vmul.f32 %v438, %v438
    %v451 = vmul.f32 %v439, %v439
    %v452 = vmul.f32 %v440, %v440
    %v453 = vmul.f32 %v441, %v441
    %454 = vadd.xlane.f32.xlu0 %v442
    %v455 = vpop.xlane.xlu0 %454
    %456 = vadd.xlane.f32.xlu0 %v443
    %v457 = vpop.xlane.xlu0 %456
    %458 = vadd.xlane.f32.xlu0 %v444
    %v459 = vpop.xlane.xlu0 %458
    %460 = vadd.xlane.f32.xlu0 %v445
    %v461 = vpop.xlane.xlu0 %460
    %462 = vadd.xlane.f32.xlu0 %v446
    %v463 = vpop.xlane.xlu0 %462
    %464 = vadd.xlane.f32.xlu0 %v447
    %v465 = vpop.xlane.xlu0 %464
    %466 = vadd.xlane.f32.xlu0 %v448
    %v467 = vpop.xlane.xlu0 %466
    %468 = vadd.xlane.f32.xlu0 %v449
    %v469 = vpop.xlane.xlu0 %468
    %470 = vadd.xlane.f32.xlu0 %v450
    %v471 = vpop.xlane.xlu0 %470
    %472 = vadd.xlane.f32.xlu0 %v451
    %v473 = vpop.xlane.xlu0 %472
    %474 = vadd.xlane.f32.xlu0 %v452
    %v475 = vpop.xlane.xlu0 %474
    %476 = vadd.xlane.f32.xlu0 %v453
    %v477 = vpop.xlane.xlu0 %476
    %v478 = vmul.f32 %v455, %v203
    %v479 = vmul.f32 %v457, %v203
    %v480 = vmul.f32 %v459, %v203
    %v481 = vmul.f32 %v461, %v203
    %v482 = vmul.f32 %v463, %v203
    %v483 = vmul.f32 %v465, %v203
    %v484 = vmul.f32 %v467, %v203
    %v485 = vmul.f32 %v469, %v203
    %v486 = vmul.f32 %v471, %v203
    %v487 = vmul.f32 %v473, %v203
    %v488 = vmul.f32 %v475, %v203
    %v489 = vmul.f32 %v477, %v203
    %v490 = vadd.f32 %v478, 1e-05
    %v491 = vadd.f32 %v479, 1e-05
    %v492 = vadd.f32 %v480, 1e-05
    %v493 = vadd.f32 %v481, 1e-05
    %v494 = vadd.f32 %v482, 1e-05
    %v495 = vadd.f32 %v483, 1e-05
    %v496 = vadd.f32 %v484, 1e-05
    %v497 = vadd.f32 %v485, 1e-05
    %v498 = vadd.f32 %v486, 1e-05
    %v499 = vadd.f32 %v487, 1e-05
    %v500 = vadd.f32 %v488, 1e-05
    %v501 = vadd.f32 %v489, 1e-05
    %v502 = vrsqrt.pop %v490
    %v503 = vrsqrt.pop %v491
    %v504 = vrsqrt.pop %v492
    %v505 = vrsqrt.pop %v493
    %v506 = vrsqrt.pop %v494
    %v507 = vrsqrt.pop %v495
    %v508 = vrsqrt.pop %v496
    %v509 = vrsqrt.pop %v497
    %v510 = vrsqrt.pop %v498
    %v511 = vrsqrt.pop %v499
    %v512 = vrsqrt.pop %v500
    %v513 = vrsqrt.pop %v501
    %v514 = vmul.f32 %v430, %v502
    %v515 = vmul.f32 %v431, %v503
    %v516 = vmul.f32 %v432, %v504
    %v517 = vmul.f32 %v433, %v505
    %v518 = vmul.f32 %v434, %v506
    %v519 = vmul.f32 %v435, %v507
    %v520 = vmul.f32 %v436, %v508
    %v521 = vmul.f32 %v437, %v509
    %v522 = vmul.f32 %v438, %v510
    %v523 = vmul.f32 %v439, %v511
    %v524 = vmul.f32 %v440, %v512
    %v525 = vmul.f32 %v441, %v513
    %v527 = vlaneseq
    %v528 = vshrl.u32 %v527, 7
    %v529 = vsub.s32 0, %v528
    %v530 = vrot.slane %v392, %v529
    %v532 = vmul.f32 %v514, %v530
    %v533 = vmul.f32 %v515, %v530
    %v534 = vmul.f32 %v516, %v530
    %v535 = vmul.f32 %v517, %v530
    %v536 = vmul.f32 %v518, %v530
    %v537 = vmul.f32 %v519, %v530
    %v538 = vmul.f32 %v520, %v530
    %v539 = vmul.f32 %v521, %v530
    %v540 = vmul.f32 %v522, %v530
    %v541 = vmul.f32 %v523, %v530
    %v542 = vmul.f32 %v524, %v530
    %v543 = vmul.f32 %v525, %v530
    %v545 = vlaneseq
    %v546 = vshrl.u32 %v545, 7
    %v547 = vsub.s32 0, %v546
    %v548 = vrot.slane %v393, %v547
    %v550 = vadd.f32 %v532, %v548
    %v551 = vadd.f32 %v533, %v548
    %v552 = vadd.f32 %v534, %v548
    %v553 = vadd.f32 %v535, %v548
    %v554 = vadd.f32 %v536, %v548
    %v555 = vadd.f32 %v537, %v548
    %v556 = vadd.f32 %v538, %v548
    %v557 = vadd.f32 %v539, %v548
    %v558 = vadd.f32 %v540, %v548
    %v559 = vadd.f32 %v541, %v548
    %v560 = vadd.f32 %v542, %v548
    %v561 = vadd.f32 %v543, %v548
    %v562 = vpack.c.bf16 %v377, %v376
    %v563 = vpack.c.bf16 %v379, %v378
    %v564 = vpack.c.bf16 %v381, %v380
    %v565 = vpack.c.bf16 %v383, %v382
    %v566 = vpack.c.bf16 %v385, %v384
    %v567 = vpack.c.bf16 %v387, %v386
    %v568 = vpack.c.bf16 %v389, %v388
    %v569 = vpack.c.bf16 %v391, %v390
    %v570 = vld [vmem:[#allocation7] sm:$0xf]
    %v571 = vld [vmem:[#allocation7 + $0x4] sm:$0xf]
    %v572 = vld [vmem:[#allocation7 + $0x8] sm:$0xf]
    %v573 = vld [vmem:[#allocation7 + $0xc] sm:$0xf]
    %v574 = vld [vmem:[#allocation7 + $0x10] sm:$0xf]
    %v575 = vld [vmem:[#allocation7 + $0x14] sm:$0xf]
    %v576 = vld [vmem:[#allocation7 + $0x18] sm:$0xf]
    %v577 = vld [vmem:[#allocation7 + $0x1c] sm:$0xf]
    %v578 = vld [vmem:[#allocation7 + $0x20] sm:$0xf]
    %v579 = vld [vmem:[#allocation7 + $0x24] sm:$0xf]
    %v580 = vld [vmem:[#allocation7 + $0x28] sm:$0xf]
    %v581 = vld [vmem:[#allocation7 + $0x2c] sm:$0xf]
    %v582 = vld [vmem:[#allocation7 + $0x30] sm:$0xf]
    %v583 = vld [vmem:[#allocation7 + $0x34] sm:$0xf]
    %v584 = vld [vmem:[#allocation7 + $0x38] sm:$0xf]
    %v585 = vld [vmem:[#allocation7 + $0x3c] sm:$0xf]
    %v602 = vunpack.c.l.b16 %v570
    %v603 = vunpack.c.l.b16 %v571
    %v604 = vunpack.c.l.b16 %v572
    %v605 = vunpack.c.l.b16 %v573
    %v606 = vunpack.c.l.b16 %v574
    %v607 = vunpack.c.l.b16 %v575
    %v608 = vunpack.c.l.b16 %v576
    %v609 = vunpack.c.l.b16 %v577
    %v610 = vunpack.c.l.b16 %v578
    %v611 = vunpack.c.l.b16 %v579
    %v612 = vunpack.c.l.b16 %v580
    %v613 = vunpack.c.l.b16 %v581
    %v614 = vunpack.c.l.b16 %v582
    %v615 = vunpack.c.l.b16 %v583
    %v616 = vunpack.c.l.b16 %v584
    %v617 = vunpack.c.l.b16 %v585
    %v618 = vpack.c.b16 %v603, %v602
    %v619 = vpack.c.b16 %v605, %v604
    %v620 = vpack.c.b16 %v607, %v606
    %v621 = vpack.c.b16 %v609, %v608
    %v622 = vpack.c.b16 %v611, %v610
    %v623 = vpack.c.b16 %v613, %v612
    %v624 = vpack.c.b16 %v615, %v614
    %v625 = vpack.c.b16 %v617, %v616
    %634 = vmatprep.subr.bf16.mxu0 0
    %635 = vmatpush1.bf16.msra.mxu0 %v618
    %636 = vmatprep.subr.bf16.mxu0 0
    %637 = vmatpush1.bf16.msra.mxu0 %v619
    %638 = vmatprep.subr.bf16.mxu0 0
    %639 = vmatpush1.bf16.msra.mxu0 %v620
    %640 = vmatprep.subr.bf16.mxu0 0
    %641 = vmatpush1.bf16.msra.mxu0 %v621
    %642 = vmatprep.subr.bf16.mxu0 0
    %643 = vmatpush1.bf16.msra.mxu0 %v622
    %644 = vmatprep.subr.bf16.mxu0 0
    %645 = vmatpush1.bf16.msra.mxu0 %v623
    %646 = vmatprep.subr.bf16.mxu0 0
    %647 = vmatpush1.bf16.msra.mxu0 %v624
    %648 = vmatprep.subr.bf16.mxu0 0
    %649 = vmatpush1.bf16.msra.mxu0 %v625
    %650 = vmatprep.subr.bf16.mxu0 0
    %651 = vmatpush1.bf16.msra.mxu0 0
    %652 = vmatprep.subr.bf16.mxu0 0
    %653 = vmatpush1.bf16.msra.mxu0 0
    %654 = vmatprep.subr.bf16.mxu0 0
    %655 = vmatpush1.bf16.msra.mxu0 0
    %656 = vmatprep.subr.bf16.mxu0 0
    %657 = vmatpush1.bf16.msra.mxu0 0
    %658 = vmatprep.subr.bf16.mxu0 0
    %659 = vmatpush1.bf16.msra.mxu0 0
    %660 = vmatprep.subr.bf16.mxu0 0
    %661 = vmatpush1.bf16.msra.mxu0 0
    %662 = vmatprep.subr.bf16.mxu0 0
    %663 = vmatpush1.bf16.msra.mxu0 0
    %664 = vmatprep.subr.bf16.mxu0 0
    %665 = vmatpush1.bf16.msra.mxu0 0
    %666 = vmatprep.mubr.bf16.mxu0 0
    %667 = vmatmul.mubr.bf16.gmra.mrb[0].mxu0 %v562
    %v668 = vpop.f32.mrb[0].mxu0
    %v669 = vadd.f32 0.0, %v668
    %v670 = vpop.f32.mrb[0].mxu0
    %v671 = vpop.f32.mrb[0].mxu0
    %v672 = vadd.f32 0.0, %v671
    %v673 = vpop.f32.mrb[0].mxu0
    %674 = vmatprep.mubr.bf16.mxu0 0
    %675 = vmatmul.mubr.bf16.gmra.mrb[0].mxu0 %v563
    %v676 = vpop.f32.mrb[0].mxu0
    %v677 = vadd.f32 0.0, %v676
    %v678 = vpop.f32.mrb[0].mxu0
    %v679 = vpop.f32.mrb[0].mxu0
    %v680 = vadd.f32 0.0, %v679
    %v681 = vpop.f32.mrb[0].mxu0
    %682 = vmatprep.mubr.bf16.mxu0 0
    %683 = vmatmul.mubr.bf16.gmra.mrb[0].mxu0 %v564
    %v684 = vpop.f32.mrb[0].mxu0
    %v685 = vadd.f32 0.0, %v684
    %v686 = vpop.f32.mrb[0].mxu0
    %v687 = vpop.f32.mrb[0].mxu0
    %v688 = vadd.f32 0.0, %v687
    %v689 = vpop.f32.mrb[0].mxu0
    %690 = vmatprep.mubr.bf16.mxu0 0
    %691 = vmatmul.mubr.bf16.gmra.mrb[0].mxu0 %v565
    %v692 = vpop.f32.mrb[0].mxu0
    %v693 = vadd.f32 0.0, %v692
    %v694 = vpop.f32.mrb[0].mxu0
    %v695 = vpop.f32.mrb[0].mxu0
    %v696 = vadd.f32 0.0, %v695
    %v697 = vpop.f32.mrb[0].mxu0
    %698 = vmatprep.mubr.bf16.mxu0 0
    %699 = vmatmul.mubr.bf16.gmra.mrb[0].mxu0 %v566
    %v700 = vpop.f32.mrb[0].mxu0
    %v701 = vadd.f32 0.0, %v700
    %v702 = vpop.f32.mrb[0].mxu0
    %v703 = vpop.f32.mrb[0].mxu0
    %v704 = vadd.f32 0.0, %v703
    %v705 = vpop.f32.mrb[0].mxu0
    %706 = vmatprep.mubr.bf16.mxu0 0
    %707 = vmatmul.mubr.bf16.gmra.mrb[0].mxu0 %v567
    %v708 = vpop.f32.mrb[0].mxu0
    %v709 = vadd.f32 0.0, %v708
    %v710 = vpop.f32.mrb[0].mxu0
    %v711 = vpop.f32.mrb[0].mxu0
    %v712 = vadd.f32 0.0, %v711
    %v713 = vpop.f32.mrb[0].mxu0
    %714 = vmatprep.mubr.bf16.mxu0 0
    %715 = vmatmul.mubr.bf16.gmra.mrb[0].mxu0 %v568
    %v716 = vpop.f32.mrb[0].mxu0
    %v717 = vadd.f32 0.0, %v716
    %v718 = vpop.f32.mrb[0].mxu0
    %v719 = vpop.f32.mrb[0].mxu0
    %v720 = vadd.f32 0.0, %v719
    %v721 = vpop.f32.mrb[0].mxu0
    %722 = vmatprep.mubr.bf16.mxu0 0
    %723 = vmatmul.mubr.bf16.gmra.mrb[0].mxu0 %v569
    %v724 = vpop.f32.mrb[0].mxu0
    %v725 = vadd.f32 0.0, %v724
    %v726 = vpop.f32.mrb[0].mxu0
    %v727 = vpop.f32.mrb[0].mxu0
    %v728 = vadd.f32 0.0, %v727
    %v729 = vpop.f32.mrb[0].mxu0
    %730 = vdwg.mxu0
    %v731 = vpack.c.bf16 %v551, %v550
    %v732 = vpack.c.bf16 %v553, %v552
    %v733 = vpack.c.bf16 %v555, %v554
    %v734 = vpack.c.bf16 %v557, %v556
    %v735 = vpack.c.bf16 %v559, %v558
    %v736 = vpack.c.bf16 %v561, %v560
    %v737 = vld [vmem:[#allocation8] sm:$0xff]
    %v738 = vld [vmem:[#allocation8 + $0x8] sm:$0xff]
    %v739 = vld [vmem:[#allocation8 + $0x10] sm:$0xff]
    %v740 = vld [vmem:[#allocation8 + $0x18] sm:$0xff]
    %v741 = vld [vmem:[#allocation8 + $0x20] sm:$0xff]
    %v742 = vld [vmem:[#allocation8 + $0x28] sm:$0xff]
    %v743 = vld [vmem:[#allocation8 + $0x30] sm:$0xff]
    %v744 = vld [vmem:[#allocation8 + $0x38] sm:$0xff]
    %v745 = vld [vmem:[#allocation8 + $0x40] sm:$0xff]
    %v746 = vld [vmem:[#allocation8 + $0x48] sm:$0xff]
    %v747 = vld [vmem:[#allocation8 + $0x50] sm:$0xff]
    %v748 = vld [vmem:[#allocation8 + $0x58] sm:$0xff]
    %v749 = vld [vmem:[#allocation8 + $0x60] sm:$0xff]
    %v750 = vld [vmem:[#allocation8 + $0x68] sm:$0xff]
    %v751 = vld [vmem:[#allocation8 + $0x70] sm:$0xff]
    %v752 = vld [vmem:[#allocation8 + $0x78] sm:$0xff]
    %v769 = vunpack.c.l.b16 %v737
    %v770 = vunpack.c.h.b16 %v737
    %v771 = vunpack.c.l.b16 %v738
    %v772 = vunpack.c.h.b16 %v738
    %v773 = vunpack.c.l.b16 %v739
    %v774 = vunpack.c.h.b16 %v739
    %v775 = vunpack.c.l.b16 %v740
    %v776 = vunpack.c.h.b16 %v740
    %v777 = vunpack.c.l.b16 %v741
    %v778 = vunpack.c.h.b16 %v741
    %v779 = vunpack.c.l.b16 %v742
    %v780 = vunpack.c.h.b16 %v742
    %v781 = vunpack.c.l.b16 %v743
    %v782 = vunpack.c.h.b16 %v743
    %v783 = vunpack.c.l.b16 %v744
    %v784 = vunpack.c.h.b16 %v744
    %v785 = vunpack.c.l.b16 %v745
    %v786 = vunpack.c.h.b16 %v745
    %v787 = vunpack.c.l.b16 %v746
    %v788 = vunpack.c.h.b16 %v746
    %v789 = vunpack.c.l.b16 %v747
    %v790 = vunpack.c.h.b16 %v747
    %v791 = vunpack.c.l.b16 %v748
    %v792 = vunpack.c.h.b16 %v748
    %v793 = vunpack.c.l.b16 %v749
    %v794 = vunpack.c.h.b16 %v749
    %v795 = vunpack.c.l.b16 %v750
    %v796 = vunpack.c.h.b16 %v750
    %v797 = vunpack.c.l.b16 %v751
    %v798 = vunpack.c.h.b16 %v751
    %v799 = vunpack.c.l.b16 %v752
    %v800 = vunpack.c.h.b16 %v752
    %v801 = vpack.c.b16 %v771, %v769
    %v802 = vpack.c.b16 %v772, %v770
    %v803 = vpack.c.b16 %v775, %v773
    %v804 = vpack.c.b16 %v776, %v774
    %v805 = vpack.c.b16 %v779, %v777
    %v806 = vpack.c.b16 %v780, %v778
    %v807 = vpack.c.b16 %v783, %v781
    %v808 = vpack.c.b16 %v784, %v782
    %v809 = vpack.c.b16 %v787, %v785
    %v810 = vpack.c.b16 %v788, %v786
    %v811 = vpack.c.b16 %v791, %v789
    %v812 = vpack.c.b16 %v792, %v790
    %v813 = vpack.c.b16 %v795, %v793
    %v814 = vpack.c.b16 %v796, %v794
    %v815 = vpack.c.b16 %v799, %v797
    %v816 = vpack.c.b16 %v800, %v798
    %833 = vmatprep.subr.bf16.mxu0 %v802
    %834 = vmatpush1.bf16.msra.mxu0 %v801
    %835 = vmatprep.subr.bf16.mxu0 %v804
    %836 = vmatpush1.bf16.msra.mxu0 %v803
    %837 = vmatprep.subr.bf16.mxu0 %v806
    %838 = vmatpush1.bf16.msra.mxu0 %v805
    %839 = vmatprep.subr.bf16.mxu0 %v808
    %840 = vmatpush1.bf16.msra.mxu0 %v807
    %841 = vmatprep.subr.bf16.mxu0 %v810
    %842 = vmatpush1.bf16.msra.mxu0 %v809
    %843 = vmatprep.subr.bf16.mxu0 %v812
    %844 = vmatpush1.bf16.msra.mxu0 %v811
    %845 = vmatprep.subr.bf16.mxu0 %v814
    %846 = vmatpush1.bf16.msra.mxu0 %v813
    %847 = vmatprep.subr.bf16.mxu0 %v816
    %848 = vmatpush1.bf16.msra.mxu0 %v815
    %849 = vmatprep.subr.bf16.mxu0 0
    %850 = vmatpush1.bf16.msra.mxu0 0
    %851 = vmatprep.subr.bf16.mxu0 0
    %852 = vmatpush1.bf16.msra.mxu0 0
    %853 = vmatprep.subr.bf16.mxu0 0
    %854 = vmatpush1.bf16.msra.mxu0 0
    %855 = vmatprep.subr.bf16.mxu0 0
    %856 = vmatpush1.bf16.msra.mxu0 0
    %857 = vmatprep.subr.bf16.mxu0 0
    %858 = vmatpush1.bf16.msra.mxu0 0
    %859 = vmatprep.subr.bf16.mxu0 0
    %860 = vmatpush1.bf16.msra.mxu0 0
    %861 = vmatprep.subr.bf16.mxu0 0
    %862 = vmatpush1.bf16.msra.mxu0 0
    %863 = vmatprep.subr.bf16.mxu0 0
    %864 = vmatpush1.bf16.msra.mxu0 0
    %865 = vmatprep.mubr.bf16.mxu0 0
    %866 = vmatmul.mubr.bf16.gmra.mrb[0].mxu0 %v731
    %v867 = vpop.f32.mrb[0].mxu0
    %v868 = vadd.f32 0.0, %v867
    %v869 = vpop.f32.mrb[0].mxu0
    %v870 = vadd.f32 0.0, %v869
    %v871 = vpop.f32.mrb[0].mxu0
    %v872 = vadd.f32 0.0, %v871
    %v873 = vpop.f32.mrb[0].mxu0
    %v874 = vadd.f32 0.0, %v873
    %875 = vmatprep.mubr.bf16.mxu0 0
    %876 = vmatmul.mubr.bf16.gmra.mrb[0].mxu0 %v732
    %v877 = vpop.f32.mrb[0].mxu0
    %v878 = vadd.f32 0.0, %v877
    %v879 = vpop.f32.mrb[0].mxu0
    %v880 = vadd.f32 0.0, %v879
    %v881 = vpop.f32.mrb[0].mxu0
    %v882 = vadd.f32 0.0, %v881
    %v883 = vpop.f32.mrb[0].mxu0
    %v884 = vadd.f32 0.0, %v883
    %885 = vmatprep.mubr.bf16.mxu0 0
    %886 = vmatmul.mubr.bf16.gmra.mrb[0].mxu0 %v733
    %v887 = vpop.f32.mrb[0].mxu0
    %v888 = vadd.f32 0.0, %v887
    %v889 = vpop.f32.mrb[0].mxu0
    %v890 = vadd.f32 0.0, %v889
    %v891 = vpop.f32.mrb[0].mxu0
    %v892 = vadd.f32 0.0, %v891
    %v893 = vpop.f32.mrb[0].mxu0
    %v894 = vadd.f32 0.0, %v893
    %895 = vmatprep.mubr.bf16.mxu0 0
    %896 = vmatmul.mubr.bf16.gmra.mrb[0].mxu0 %v734
    %v897 = vpop.f32.mrb[0].mxu0
    %v898 = vadd.f32 0.0, %v897
    %v899 = vpop.f32.mrb[0].mxu0
    %v900 = vadd.f32 0.0, %v899
    %v901 = vpop.f32.mrb[0].mxu0
    %v902 = vadd.f32 0.0, %v901
    %v903 = vpop.f32.mrb[0].mxu0
    %v904 = vadd.f32 0.0, %v903
    %905 = vmatprep.mubr.bf16.mxu0 0
    %906 = vmatmul.mubr.bf16.gmra.mrb[0].mxu0 %v735
    %v907 = vpop.f32.mrb[0].mxu0
    %v908 = vadd.f32 0.0, %v907
    %v909 = vpop.f32.mrb[0].mxu0
    %v910 = vadd.f32 0.0, %v909
    %v911 = vpop.f32.mrb[0].mxu0
    %v912 = vadd.f32 0.0, %v911
    %v913 = vpop.f32.mrb[0].mxu0
    %v914 = vadd.f32 0.0, %v913
    %915 = vmatprep.mubr.bf16.mxu0 0
    %916 = vmatmul.mubr.bf16.gmra.mrb[0].mxu0 %v736
    %v917 = vpop.f32.mrb[0].mxu0
    %v918 = vadd.f32 0.0, %v917
    %v919 = vpop.f32.mrb[0].mxu0
    %v920 = vadd.f32 0.0, %v919
    %v921 = vpop.f32.mrb[0].mxu0
    %v922 = vadd.f32 0.0, %v921
    %v923 = vpop.f32.mrb[0].mxu0
    %v924 = vadd.f32 0.0, %v923
    %925 = vdwg.mxu0
    %v926 = vpack.c.bf16 %v672, %v669
    %v927 = vpack.c.bf16 %v680, %v677
    %v928 = vpack.c.bf16 %v688, %v685
    %v929 = vpack.c.bf16 %v696, %v693
    %v930 = vpack.c.bf16 %v872, %v868
    %v931 = vpack.c.bf16 %v882, %v878
    %v932 = vpack.c.bf16 %v892, %v888
    %vm933 = vcmask 261120
    %v935 = vsel %vm933, %v926, 0
    %v938 = vsel %vm933, %v927, 0
    %v941 = vsel %vm933, %v928, 0
    %v944 = vsel %vm933, %v929, 0
    %v947 = vsel %vm933, %v930, 0
    %v950 = vsel %vm933, %v931, 0
    %v953 = vsel %vm933, %v932, 0
    %955 = vmatprep.subr.bf16.mxu0 0
    %956 = vmatpush1.bf16.xpose.msra.mxu0 %v947
    %957 = vmatprep.subr.bf16.mxu0 0
    %958 = vmatpush1.bf16.xpose.msra.mxu0 %v950
    %959 = vmatprep.subr.bf16.mxu0 0
    %960 = vmatpush1.bf16.xpose.msra.mxu0 %v953
    %961 = vmatprep.subr.bf16.mxu0 0
    %962 = vmatpush1.bf16.xpose.msra.mxu0 0
    %963 = vmatprep.subr.bf16.mxu0 0
    %964 = vmatpush1.bf16.xpose.msra.mxu0 0
    %965 = vmatprep.subr.bf16.mxu0 0
    %966 = vmatpush1.bf16.xpose.msra.mxu0 0
    %967 = vmatprep.subr.bf16.mxu0 0
    %968 = vmatpush1.bf16.xpose.msra.mxu0 0
    %969 = vmatprep.subr.bf16.mxu0 0
    %970 = vmatpush1.bf16.xpose.msra.mxu0 0
    %971 = vmatprep.subr.bf16.mxu0 0
    %972 = vmatpush1.bf16.xpose.msra.mxu0 0
    %973 = vmatprep.subr.bf16.mxu0 0
    %974 = vmatpush1.bf16.xpose.msra.mxu0 0
    %975 = vmatprep.subr.bf16.mxu0 0
    %976 = vmatpush1.bf16.xpose.msra.mxu0 0
    %977 = vmatprep.subr.bf16.mxu0 0
    %978 = vmatpush1.bf16.xpose.msra.mxu0 0
    %979 = vmatprep.subr.bf16.mxu0 0
    %980 = vmatpush1.bf16.xpose.msra.mxu0 0
    %981 = vmatprep.subr.bf16.mxu0 0
    %982 = vmatpush1.bf16.xpose.msra.mxu0 0
    %983 = vmatprep.subr.bf16.mxu0 0
    %984 = vmatpush1.bf16.xpose.msra.mxu0 0
    %985 = vmatprep.subr.bf16.mxu0 0
    %986 = vmatpush1.bf16.xpose.msra.mxu0 0
    %987 = vmatprep.mubr.bf16.mxu0 0
    %988 = vmatmul.mubr.bf16.gmra.mrb[0].mxu0 %v935
    %v989 = vpop.f32.mrb[0].mxu0
    %v990 = vadd.f32 0.0, %v989
    %v991 = vpop.f32.mrb[0].mxu0
    %v992 = vpop.f32.mrb[0].mxu0
    %v993 = vadd.f32 0.0, %v992
    %v994 = vpop.f32.mrb[0].mxu0
    %995 = vmatprep.mubr.bf16.mxu0 0
    %996 = vmatmul.mubr.bf16.gmra.mrb[0].mxu0 %v938
    %v997 = vpop.f32.mrb[0].mxu0
    %v998 = vadd.f32 0.0, %v997
    %v999 = vpop.f32.mrb[0].mxu0
    %v1000 = vpop.f32.mrb[0].mxu0
    %v1001 = vadd.f32 0.0, %v1000
    %v1002 = vpop.f32.mrb[0].mxu0
    %1003 = vmatprep.mubr.bf16.mxu0 0
    %1004 = vmatmul.mubr.bf16.gmra.mrb[0].mxu0 %v941
    %v1005 = vpop.f32.mrb[0].mxu0
    %v1006 = vadd.f32 0.0, %v1005
    %v1007 = vpop.f32.mrb[0].mxu0
    %v1008 = vpop.f32.mrb[0].mxu0
    %v1009 = vadd.f32 0.0, %v1008
    %v1010 = vpop.f32.mrb[0].mxu0
    %1011 = vmatprep.mubr.bf16.mxu0 0
    %1012 = vmatmul.mubr.bf16.gmra.mrb[0].mxu0 %v944
    %v1013 = vpop.f32.mrb[0].mxu0
    %v1014 = vadd.f32 0.0, %v1013
    %v1015 = vpop.f32.mrb[0].mxu0
    %v1016 = vpop.f32.mrb[0].mxu0
    %v1017 = vadd.f32 0.0, %v1016
    %v1018 = vpop.f32.mrb[0].mxu0
    %1019 = vdwg.mxu0
    %v1020 = vmul.f32 %v990, 0.17677669
    %v1021 = vmul.f32 %v993, 0.17677669
    %v1022 = vmul.f32 %v998, 0.17677669
    %v1023 = vmul.f32 %v1001, 0.17677669
    %v1024 = vmul.f32 %v1006, 0.17677669
    %v1025 = vmul.f32 %v1009, 0.17677669
    %v1026 = vmul.f32 %v1014, 0.17677669
    %v1027 = vmul.f32 %v1017, 0.17677669
    %vm1028 = vcmask 392192
    %v1029 = vsel %vm1028, %v1020, -inf
    %1030 = vmax.xlane.f32.xlu0 %v1029
    %v1031 = vpop.xlane.xlu0 %1030
    %v1032 = vsel %vm1028, %v1021, -inf
    %1033 = vmax.xlane.f32.xlu0 %v1032
    %v1034 = vpop.xlane.xlu0 %1033
    %v1035 = vsel %vm1028, %v1022, -inf
    %1036 = vmax.xlane.f32.xlu0 %v1035
    %v1037 = vpop.xlane.xlu0 %1036
    %v1038 = vsel %vm1028, %v1023, -inf
    %1039 = vmax.xlane.f32.xlu0 %v1038
    %v1040 = vpop.xlane.xlu0 %1039
    %v1041 = vsel %vm1028, %v1024, -inf
    %1042 = vmax.xlane.f32.xlu0 %v1041
    %v1043 = vpop.xlane.xlu0 %1042
    %v1044 = vsel %vm1028, %v1025, -inf
    %1045 = vmax.xlane.f32.xlu0 %v1044
    %v1046 = vpop.xlane.xlu0 %1045
    %v1047 = vsel %vm1028, %v1026, -inf
    %1048 = vmax.xlane.f32.xlu0 %v1047
    %v1049 = vpop.xlane.xlu0 %1048
    %v1050 = vsel %vm1028, %v1027, -inf
    %1051 = vmax.xlane.f32.xlu0 %v1050
    %v1052 = vpop.xlane.xlu0 %1051
    %v1053 = vsub.f32 %v1020, %v1031
    %v1054 = vsub.f32 %v1021, %v1034
    %v1055 = vsub.f32 %v1022, %v1037
    %v1056 = vsub.f32 %v1023, %v1040
    %v1057 = vsub.f32 %v1024, %v1043
    %v1058 = vsub.f32 %v1025, %v1046
    %v1059 = vsub.f32 %v1026, %v1049
    %v1060 = vsub.f32 %v1027, %v1052
    %v1061 = vmul.f32 %v1053, 1.442695
    %v1062 = vpow.pop %v1061
    %v1063 = vmul.f32 %v1054, 1.442695
    %v1064 = vpow.pop %v1063
    %v1065 = vmul.f32 %v1055, 1.442695
    %v1066 = vpow.pop %v1065
    %v1067 = vmul.f32 %v1056, 1.442695
    %v1068 = vpow.pop %v1067
    %v1069 = vmul.f32 %v1057, 1.442695
    %v1070 = vpow.pop %v1069
    %v1071 = vmul.f32 %v1058, 1.442695
    %v1072 = vpow.pop %v1071
    %v1073 = vmul.f32 %v1059, 1.442695
    %v1074 = vpow.pop %v1073
    %v1075 = vmul.f32 %v1060, 1.442695
    %v1076 = vpow.pop %v1075
    %v1077 = vsel %vm1028, %v1062, 0.0
    %1078 = vadd.xlane.f32.xlu0 %v1077
    %v1079 = vpop.xlane.xlu0 %1078
    %v1080 = vsel %vm1028, %v1064, 0.0
    %1081 = vadd.xlane.f32.xlu0 %v1080
    %v1082 = vpop.xlane.xlu0 %1081
    %v1083 = vsel %vm1028, %v1066, 0.0
    %1084 = vadd.xlane.f32.xlu0 %v1083
    %v1085 = vpop.xlane.xlu0 %1084
    %v1086 = vsel %vm1028, %v1068, 0.0
    %1087 = vadd.xlane.f32.xlu0 %v1086
    %v1088 = vpop.xlane.xlu0 %1087
    %v1089 = vsel %vm1028, %v1070, 0.0
    %1090 = vadd.xlane.f32.xlu0 %v1089
    %v1091 = vpop.xlane.xlu0 %1090
    %v1092 = vsel %vm1028, %v1072, 0.0
    %1093 = vadd.xlane.f32.xlu0 %v1092
    %v1094 = vpop.xlane.xlu0 %1093
    %v1095 = vsel %vm1028, %v1074, 0.0
    %1096 = vadd.xlane.f32.xlu0 %v1095
    %v1097 = vpop.xlane.xlu0 %1096
    %v1098 = vsel %vm1028, %v1076, 0.0
    %1099 = vadd.xlane.f32.xlu0 %v1098
    %v1100 = vpop.xlane.xlu0 %1099
    %v1101 = vrcp.pop %v1079
    %v1102 = vrcp.pop %v1082
    %v1103 = vrcp.pop %v1085
    %v1104 = vrcp.pop %v1088
    %v1105 = vrcp.pop %v1091
    %v1106 = vrcp.pop %v1094
    %v1107 = vrcp.pop %v1097
    %v1108 = vrcp.pop %v1100
    %v1109 = vmul.f32 %v1062, %v1101
    %v1110 = vmul.f32 %v1064, %v1102
    %v1111 = vmul.f32 %v1066, %v1103
    %v1112 = vmul.f32 %v1068, %v1104
    %v1113 = vmul.f32 %v1070, %v1105
    %v1114 = vmul.f32 %v1072, %v1106
    %v1115 = vmul.f32 %v1074, %v1107
    %v1116 = vmul.f32 %v1076, %v1108
    %v1117 = vpack.c.bf16 %v1110, %v1109
    %v1118 = vpack.c.bf16 %v1112, %v1111
    %v1119 = vpack.c.bf16 %v1114, %v1113
    %v1120 = vpack.c.bf16 %v1116, %v1115
    %v1121 = vpack.c.bf16 %v874, %v870
    %v1122 = vpack.c.bf16 %v884, %v880
    %v1123 = vpack.c.bf16 %v894, %v890
    %v1125 = vsel %vm1028, %v1117, 0
    %v1128 = vsel %vm1028, %v1118, 0
    %v1131 = vsel %vm1028, %v1119, 0
    %v1134 = vsel %vm1028, %v1120, 0
    %1136 = vmatprep.subr.bf16.mxu0 0
    %1137 = vmatpush1.bf16.msra.mxu0 %v1121
    %1138 = vmatprep.subr.bf16.mxu0 0
    %1139 = vmatpush1.bf16.msra.mxu0 %v1122
    %1140 = vmatprep.subr.bf16.mxu0 0
    %1141 = vmatpush1.bf16.msra.mxu0 %v1123
    %1142 = vmatprep.subr.bf16.mxu0 0
    %1143 = vmatpush1.bf16.msra.mxu0 0
    %1144 = vmatprep.subr.bf16.mxu0 0
    %1145 = vmatpush1.bf16.msra.mxu0 0
    %1146 = vmatprep.subr.bf16.mxu0 0
    %1147 = vmatpush1.bf16.msra.mxu0 0
    %1148 = vmatprep.subr.bf16.mxu0 0
    %1149 = vmatpush1.bf16.msra.mxu0 0
    %1150 = vmatprep.subr.bf16.mxu0 0
    %1151 = vmatpush1.bf16.msra.mxu0 0
    %1152 = vmatprep.subr.bf16.mxu0 0
    %1153 = vmatpush1.bf16.msra.mxu0 0
    %1154 = vmatprep.subr.bf16.mxu0 0
    %1155 = vmatpush1.bf16.msra.mxu0 0
    %1156 = vmatprep.subr.bf16.mxu0 0
    %1157 = vmatpush1.bf16.msra.mxu0 0
    %1158 = vmatprep.subr.bf16.mxu0 0
    %1159 = vmatpush1.bf16.msra.mxu0 0
    %1160 = vmatprep.subr.bf16.mxu0 0
    %1161 = vmatpush1.bf16.msra.mxu0 0
    %1162 = vmatprep.subr.bf16.mxu0 0
    %1163 = vmatpush1.bf16.msra.mxu0 0
    %1164 = vmatprep.subr.bf16.mxu0 0
    %1165 = vmatpush1.bf16.msra.mxu0 0
    %1166 = vmatprep.subr.bf16.mxu0 0
    %1167 = vmatpush1.bf16.msra.mxu0 0
    %1168 = vmatprep.mubr.bf16.mxu0 0
    %1169 = vmatmul.mubr.bf16.gmra.mrb[0].mxu0 %v1125
    %v1170 = vpop.f32.mrb[0].mxu0
    %v1171 = vadd.f32 0.0, %v1170
    %v1172 = vpop.f32.mrb[0].mxu0
    %v1173 = vpop.f32.mrb[0].mxu0
    %v1174 = vadd.f32 0.0, %v1173
    %v1175 = vpop.f32.mrb[0].mxu0
    %1176 = vmatprep.mubr.bf16.mxu0 0
    %1177 = vmatmul.mubr.bf16.gmra.mrb[0].mxu0 %v1128
    %v1178 = vpop.f32.mrb[0].mxu0
    %v1179 = vadd.f32 0.0, %v1178
    %v1180 = vpop.f32.mrb[0].mxu0
    %v1181 = vpop.f32.mrb[0].mxu0
    %v1182 = vadd.f32 0.0, %v1181
    %v1183 = vpop.f32.mrb[0].mxu0
    %1184 = vmatprep.mubr.bf16.mxu0 0
    %1185 = vmatmul.mubr.bf16.gmra.mrb[0].mxu0 %v1131
    %v1186 = vpop.f32.mrb[0].mxu0
    %v1187 = vadd.f32 0.0, %v1186
    %v1188 = vpop.f32.mrb[0].mxu0
    %v1189 = vpop.f32.mrb[0].mxu0
    %v1190 = vadd.f32 0.0, %v1189
    %v1191 = vpop.f32.mrb[0].mxu0
    %1192 = vmatprep.mubr.bf16.mxu0 0
    %1193 = vmatmul.mubr.bf16.gmra.mrb[0].mxu0 %v1134
    %v1194 = vpop.f32.mrb[0].mxu0
    %v1195 = vadd.f32 0.0, %v1194
    %v1196 = vpop.f32.mrb[0].mxu0
    %v1197 = vpop.f32.mrb[0].mxu0
    %v1198 = vadd.f32 0.0, %v1197
    %v1199 = vpop.f32.mrb[0].mxu0
    %1200 = vdwg.mxu0
    %1205 = vrot.lane.b32.xlu0 %v926, 96
    %v1206 = vpop.permute.xlu0 %1205
    %1207 = vrot.lane.b32.xlu0 %v927, 96
    %v1208 = vpop.permute.xlu0 %1207
    %1209 = vrot.lane.b32.xlu0 %v928, 96
    %v1210 = vpop.permute.xlu0 %1209
    %1211 = vrot.lane.b32.xlu0 %v929, 96
    %v1212 = vpop.permute.xlu0 %1211
    %1216 = vrot.lane.b32.xlu0 %v930, 96
    %v1217 = vpop.permute.xlu0 %1216
    %1218 = vrot.lane.b32.xlu0 %v931, 96
    %v1219 = vpop.permute.xlu0 %1218
    %1220 = vrot.lane.b32.xlu0 %v932, 96
    %v1221 = vpop.permute.xlu0 %1220
    %v1223 = vsel %vm933, %v1206, 0
    %v1226 = vsel %vm933, %v1208, 0
    %v1229 = vsel %vm933, %v1210, 0
    %v1232 = vsel %vm933, %v1212, 0
    %v1235 = vsel %vm933, %v1217, 0
    %v1238 = vsel %vm933, %v1219, 0
    %v1241 = vsel %vm933, %v1221, 0
    %1243 = vmatprep.subr.bf16.mxu0 0
    %1244 = vmatpush1.bf16.xpose.msra.mxu0 %v1235
    %1245 = vmatprep.subr.bf16.mxu0 0
    %1246 = vmatpush1.bf16.xpose.msra.mxu0 %v1238
    %1247 = vmatprep.subr.bf16.mxu0 0
    %1248 = vmatpush1.bf16.xpose.msra.mxu0 %v1241
    %1249 = vmatprep.subr.bf16.mxu0 0
    %1250 = vmatpush1.bf16.xpose.msra.mxu0 0
    %1251 = vmatprep.subr.bf16.mxu0 0
    %1252 = vmatpush1.bf16.xpose.msra.mxu0 0
    %1253 = vmatprep.subr.bf16.mxu0 0
    %1254 = vmatpush1.bf16.xpose.msra.mxu0 0
    %1255 = vmatprep.subr.bf16.mxu0 0
    %1256 = vmatpush1.bf16.xpose.msra.mxu0 0
    %1257 = vmatprep.subr.bf16.mxu0 0
    %1258 = vmatpush1.bf16.xpose.msra.mxu0 0
    %1259 = vmatprep.subr.bf16.mxu0 0
    %1260 = vmatpush1.bf16.xpose.msra.mxu0 0
    %1261 = vmatprep.subr.bf16.mxu0 0
    %1262 = vmatpush1.bf16.xpose.msra.mxu0 0
    %1263 = vmatprep.subr.bf16.mxu0 0
    %1264 = vmatpush1.bf16.xpose.msra.mxu0 0
    %1265 = vmatprep.subr.bf16.mxu0 0
    %1266 = vmatpush1.bf16.xpose.msra.mxu0 0
    %1267 = vmatprep.subr.bf16.mxu0 0
    %1268 = vmatpush1.bf16.xpose.msra.mxu0 0
    %1269 = vmatprep.subr.bf16.mxu0 0
    %1270 = vmatpush1.bf16.xpose.msra.mxu0 0
    %1271 = vmatprep.subr.bf16.mxu0 0
    %1272 = vmatpush1.bf16.xpose.msra.mxu0 0
    %1273 = vmatprep.subr.bf16.mxu0 0
    %1274 = vmatpush1.bf16.xpose.msra.mxu0 0
    %1275 = vmatprep.mubr.bf16.mxu0 0
    %1276 = vmatmul.mubr.bf16.gmra.mrb[0].mxu0 %v1223
    %v1277 = vpop.f32.mrb[0].mxu0
    %v1278 = vadd.f32 0.0, %v1277
    %v1279 = vpop.f32.mrb[0].mxu0
    %v1280 = vpop.f32.mrb[0].mxu0
    %v1281 = vadd.f32 0.0, %v1280
    %v1282 = vpop.f32.mrb[0].mxu0
    %1283 = vmatprep.mubr.bf16.mxu0 0
    %1284 = vmatmul.mubr.bf16.gmra.mrb[0].mxu0 %v1226
    %v1285 = vpop.f32.mrb[0].mxu0
    %v1286 = vadd.f32 0.0, %v1285
    %v1287 = vpop.f32.mrb[0].mxu0
    %v1288 = vpop.f32.mrb[0].mxu0
    %v1289 = vadd.f32 0.0, %v1288
    %v1290 = vpop.f32.mrb[0].mxu0
    %1291 = vmatprep.mubr.bf16.mxu0 0
    %1292 = vmatmul.mubr.bf16.gmra.mrb[0].mxu0 %v1229
    %v1293 = vpop.f32.mrb[0].mxu0
    %v1294 = vadd.f32 0.0, %v1293
    %v1295 = vpop.f32.mrb[0].mxu0
    %v1296 = vpop.f32.mrb[0].mxu0
    %v1297 = vadd.f32 0.0, %v1296
    %v1298 = vpop.f32.mrb[0].mxu0
    %1299 = vmatprep.mubr.bf16.mxu0 0
    %1300 = vmatmul.mubr.bf16.gmra.mrb[0].mxu0 %v1232
    %v1301 = vpop.f32.mrb[0].mxu0
    %v1302 = vadd.f32 0.0, %v1301
    %v1303 = vpop.f32.mrb[0].mxu0
    %v1304 = vpop.f32.mrb[0].mxu0
    %v1305 = vadd.f32 0.0, %v1304
    %v1306 = vpop.f32.mrb[0].mxu0
    %1307 = vdwg.mxu0
    %v1308 = vmul.f32 %v1278, 0.17677669
    %v1309 = vmul.f32 %v1281, 0.17677669
    %v1310 = vmul.f32 %v1286, 0.17677669
    %v1311 = vmul.f32 %v1289, 0.17677669
    %v1312 = vmul.f32 %v1294, 0.17677669
    %v1313 = vmul.f32 %v1297, 0.17677669
    %v1314 = vmul.f32 %v1302, 0.17677669
    %v1315 = vmul.f32 %v1305, 0.17677669
    %v1316 = vsel %vm1028, %v1308, -inf
    %1317 = vmax.xlane.f32.xlu0 %v1316
    %v1318 = vpop.xlane.xlu0 %1317
    %v1319 = vsel %vm1028, %v1309, -inf
    %1320 = vmax.xlane.f32.xlu0 %v1319
    %v1321 = vpop.xlane.xlu0 %1320
    %v1322 = vsel %vm1028, %v1310, -inf
    %1323 = vmax.xlane.f32.xlu0 %v1322
    %v1324 = vpop.xlane.xlu0 %1323
    %v1325 = vsel %vm1028, %v1311, -inf
    %1326 = vmax.xlane.f32.xlu0 %v1325
    %v1327 = vpop.xlane.xlu0 %1326
    %v1328 = vsel %vm1028, %v1312, -inf
    %1329 = vmax.xlane.f32.xlu0 %v1328
    %v1330 = vpop.xlane.xlu0 %1329
    %v1331 = vsel %vm1028, %v1313, -inf
    %1332 = vmax.xlane.f32.xlu0 %v1331
    %v1333 = vpop.xlane.xlu0 %1332
    %v1334 = vsel %vm1028, %v1314, -inf
    %1335 = vmax.xlane.f32.xlu0 %v1334
    %v1336 = vpop.xlane.xlu0 %1335
    %v1337 = vsel %vm1028, %v1315, -inf
    %1338 = vmax.xlane.f32.xlu0 %v1337
    %v1339 = vpop.xlane.xlu0 %1338
    %v1340 = vsub.f32 %v1308, %v1318
    %v1341 = vsub.f32 %v1309, %v1321
    %v1342 = vsub.f32 %v1310, %v1324
    %v1343 = vsub.f32 %v1311, %v1327
    %v1344 = vsub.f32 %v1312, %v1330
    %v1345 = vsub.f32 %v1313, %v1333
    %v1346 = vsub.f32 %v1314, %v1336
    %v1347 = vsub.f32 %v1315, %v1339
    %v1348 = vmul.f32 %v1340, 1.442695
    %v1349 = vpow.pop %v1348
    %v1350 = vmul.f32 %v1341, 1.442695
    %v1351 = vpow.pop %v1350
    %v1352 = vmul.f32 %v1342, 1.442695
    %v1353 = vpow.pop %v1352
    %v1354 = vmul.f32 %v1343, 1.442695
    %v1355 = vpow.pop %v1354
    %v1356 = vmul.f32 %v1344, 1.442695
    %v1357 = vpow.pop %v1356
    %v1358 = vmul.f32 %v1345, 1.442695
    %v1359 = vpow.pop %v1358
    %v1360 = vmul.f32 %v1346, 1.442695
    %v1361 = vpow.pop %v1360
    %v1362 = vmul.f32 %v1347, 1.442695
    %v1363 = vpow.pop %v1362
    %v1364 = vsel %vm1028, %v1349, 0.0
    %1365 = vadd.xlane.f32.xlu0 %v1364
    %v1366 = vpop.xlane.xlu0 %1365
    %v1367 = vsel %vm1028, %v1351, 0.0
    %1368 = vadd.xlane.f32.xlu0 %v1367
    %v1369 = vpop.xlane.xlu0 %1368
    %v1370 = vsel %vm1028, %v1353, 0.0
    %1371 = vadd.xlane.f32.xlu0 %v1370
    %v1372 = vpop.xlane.xlu0 %1371
    %v1373 = vsel %vm1028, %v1355, 0.0
    %1374 = vadd.xlane.f32.xlu0 %v1373
    %v1375 = vpop.xlane.xlu0 %1374
    %v1376 = vsel %vm1028, %v1357, 0.0
    %1377 = vadd.xlane.f32.xlu0 %v1376
    %v1378 = vpop.xlane.xlu0 %1377
    %v1379 = vsel %vm1028, %v1359, 0.0
    %1380 = vadd.xlane.f32.xlu0 %v1379
    %v1381 = vpop.xlane.xlu0 %1380
    %v1382 = vsel %vm1028, %v1361, 0.0
    %1383 = vadd.xlane.f32.xlu0 %v1382
    %v1384 = vpop.xlane.xlu0 %1383
    %v1385 = vsel %vm1028, %v1363, 0.0
    %1386 = vadd.xlane.f32.xlu0 %v1385
    %v1387 = vpop.xlane.xlu0 %1386
    %v1388 = vrcp.pop %v1366
    %v1389 = vrcp.pop %v1369
    %v1390 = vrcp.pop %v1372
    %v1391 = vrcp.pop %v1375
    %v1392 = vrcp.pop %v1378
    %v1393 = vrcp.pop %v1381
    %v1394 = vrcp.pop %v1384
    %v1395 = vrcp.pop %v1387
    %v1396 = vmul.f32 %v1349, %v1388
    %v1397 = vmul.f32 %v1351, %v1389
    %v1398 = vmul.f32 %v1353, %v1390
    %v1399 = vmul.f32 %v1355, %v1391
    %v1400 = vmul.f32 %v1357, %v1392
    %v1401 = vmul.f32 %v1359, %v1393
    %v1402 = vmul.f32 %v1361, %v1394
    %v1403 = vmul.f32 %v1363, %v1395
    %v1404 = vpack.c.bf16 %v1397, %v1396
    %v1405 = vpack.c.bf16 %v1399, %v1398
    %v1406 = vpack.c.bf16 %v1401, %v1400
    %v1407 = vpack.c.bf16 %v1403, %v1402
    %1411 = vrot.lane.b32.xlu0 %v1121, 96
    %v1412 = vpop.permute.xlu0 %1411
    %1413 = vrot.lane.b32.xlu0 %v1122, 96
    %v1414 = vpop.permute.xlu0 %1413
    %1415 = vrot.lane.b32.xlu0 %v1123, 96
    %v1416 = vpop.permute.xlu0 %1415
    %v1421 = vsel %vm1028, %v1404, 0
    %v1424 = vsel %vm1028, %v1405, 0
    %v1427 = vsel %vm1028, %v1406, 0
    %v1430 = vsel %vm1028, %v1407, 0
    %1432 = vmatprep.subr.bf16.mxu0 0
    %1433 = vmatpush1.bf16.msra.mxu0 %v1412
    %1434 = vmatprep.subr.bf16.mxu0 0
    %1435 = vmatpush1.bf16.msra.mxu0 %v1414
    %1436 = vmatprep.subr.bf16.mxu0 0
    %1437 = vmatpush1.bf16.msra.mxu0 %v1416
    %1438 = vmatprep.subr.bf16.mxu0 0
    %1439 = vmatpush1.bf16.msra.mxu0 0
    %1440 = vmatprep.subr.bf16.mxu0 0
    %1441 = vmatpush1.bf16.msra.mxu0 0
    %1442 = vmatprep.subr.bf16.mxu0 0
    %1443 = vmatpush1.bf16.msra.mxu0 0
    %1444 = vmatprep.subr.bf16.mxu0 0
    %1445 = vmatpush1.bf16.msra.mxu0 0
    %1446 = vmatprep.subr.bf16.mxu0 0
    %1447 = vmatpush1.bf16.msra.mxu0 0
    %1448 = vmatprep.subr.bf16.mxu0 0
    %1449 = vmatpush1.bf16.msra.mxu0 0
    %1450 = vmatprep.subr.bf16.mxu0 0
    %1451 = vmatpush1.bf16.msra.mxu0 0
    %1452 = vmatprep.subr.bf16.mxu0 0
    %1453 = vmatpush1.bf16.msra.mxu0 0
    %1454 = vmatprep.subr.bf16.mxu0 0
    %1455 = vmatpush1.bf16.msra.mxu0 0
    %1456 = vmatprep.subr.bf16.mxu0 0
    %1457 = vmatpush1.bf16.msra.mxu0 0
    %1458 = vmatprep.subr.bf16.mxu0 0
    %1459 = vmatpush1.bf16.msra.mxu0 0
    %1460 = vmatprep.subr.bf16.mxu0 0
    %1461 = vmatpush1.bf16.msra.mxu0 0
    %1462 = vmatprep.subr.bf16.mxu0 0
    %1463 = vmatpush1.bf16.msra.mxu0 0
    %1464 = vmatprep.mubr.bf16.mxu0 0
    %1465 = vmatmul.mubr.bf16.gmra.mrb[0].mxu0 %v1421
    %v1466 = vpop.f32.mrb[0].mxu0
    %v1467 = vadd.f32 0.0, %v1466
    %v1468 = vpop.f32.mrb[0].mxu0
    %v1469 = vpop.f32.mrb[0].mxu0
    %v1470 = vadd.f32 0.0, %v1469
    %v1471 = vpop.f32.mrb[0].mxu0
    %1472 = vmatprep.mubr.bf16.mxu0 0
    %1473 = vmatmul.mubr.bf16.gmra.mrb[0].mxu0 %v1424
    %v1474 = vpop.f32.mrb[0].mxu0
    %v1475 = vadd.f32 0.0, %v1474
    %v1476 = vpop.f32.mrb[0].mxu0
    %v1477 = vpop.f32.mrb[0].mxu0
    %v1478 = vadd.f32 0.0, %v1477
    %v1479 = vpop.f32.mrb[0].mxu0
    %1480 = vmatprep.mubr.bf16.mxu0 0
    %1481 = vmatmul.mubr.bf16.gmra.mrb[0].mxu0 %v1427
    %v1482 = vpop.f32.mrb[0].mxu0
    %v1483 = vadd.f32 0.0, %v1482
    %v1484 = vpop.f32.mrb[0].mxu0
    %v1485 = vpop.f32.mrb[0].mxu0
    %v1486 = vadd.f32 0.0, %v1485
    %v1487 = vpop.f32.mrb[0].mxu0
    %1488 = vmatprep.mubr.bf16.mxu0 0
    %1489 = vmatmul.mubr.bf16.gmra.mrb[0].mxu0 %v1430
    %v1490 = vpop.f32.mrb[0].mxu0
    %v1491 = vadd.f32 0.0, %v1490
    %v1492 = vpop.f32.mrb[0].mxu0
    %v1493 = vpop.f32.mrb[0].mxu0
    %v1494 = vadd.f32 0.0, %v1493
    %v1495 = vpop.f32.mrb[0].mxu0
    %1496 = vdwg.mxu0
    %1497 = vrot.lane.b32.xlu0 %v926, 64
    %v1498 = vpop.permute.xlu0 %1497
    %1499 = vrot.lane.b32.xlu0 %v927, 64
    %v1500 = vpop.permute.xlu0 %1499
    %1501 = vrot.lane.b32.xlu0 %v928, 64
    %v1502 = vpop.permute.xlu0 %1501
    %1503 = vrot.lane.b32.xlu0 %v929, 64
    %v1504 = vpop.permute.xlu0 %1503
    %1505 = vrot.lane.b32.xlu0 %v930, 64
    %v1506 = vpop.permute.xlu0 %1505
    %1507 = vrot.lane.b32.xlu0 %v931, 64
    %v1508 = vpop.permute.xlu0 %1507
    %1509 = vrot.lane.b32.xlu0 %v932, 64
    %v1510 = vpop.permute.xlu0 %1509
    %v1512 = vsel %vm933, %v1498, 0
    %v1515 = vsel %vm933, %v1500, 0
    %v1518 = vsel %vm933, %v1502, 0
    %v1521 = vsel %vm933, %v1504, 0
    %v1524 = vsel %vm933, %v1506, 0
    %v1527 = vsel %vm933, %v1508, 0
    %v1530 = vsel %vm933, %v1510, 0
    %1532 = vmatprep.subr.bf16.mxu0 0
    %1533 = vmatpush1.bf16.xpose.msra.mxu0 %v1524
    %1534 = vmatprep.subr.bf16.mxu0 0
    %1535 = vmatpush1.bf16.xpose.msra.mxu0 %v1527
    %1536 = vmatprep.subr.bf16.mxu0 0
    %1537 = vmatpush1.bf16.xpose.msra.mxu0 %v1530
    %1538 = vmatprep.subr.bf16.mxu0 0
    %1539 = vmatpush1.bf16.xpose.msra.mxu0 0
    %1540 = vmatprep.subr.bf16.mxu0 0
    %1541 = vmatpush1.bf16.xpose.msra.mxu0 0
    %1542 = vmatprep.subr.bf16.mxu0 0
    %1543 = vmatpush1.bf16.xpose.msra.mxu0 0
    %1544 = vmatprep.subr.bf16.mxu0 0
    %1545 = vmatpush1.bf16.xpose.msra.mxu0 0
    %1546 = vmatprep.subr.bf16.mxu0 0
    %1547 = vmatpush1.bf16.xpose.msra.mxu0 0
    %1548 = vmatprep.subr.bf16.mxu0 0
    %1549 = vmatpush1.bf16.xpose.msra.mxu0 0
    %1550 = vmatprep.subr.bf16.mxu0 0
    %1551 = vmatpush1.bf16.xpose.msra.mxu0 0
    %1552 = vmatprep.subr.bf16.mxu0 0
    %1553 = vmatpush1.bf16.xpose.msra.mxu0 0
    %1554 = vmatprep.subr.bf16.mxu0 0
    %1555 = vmatpush1.bf16.xpose.msra.mxu0 0
    %1556 = vmatprep.subr.bf16.mxu0 0
    %1557 = vmatpush1.bf16.xpose.msra.mxu0 0
    %1558 = vmatprep.subr.bf16.mxu0 0
    %1559 = vmatpush1.bf16.xpose.msra.mxu0 0
    %1560 = vmatprep.subr.bf16.mxu0 0
    %1561 = vmatpush1.bf16.xpose.msra.mxu0 0
    %1562 = vmatprep.subr.bf16.mxu0 0
    %1563 = vmatpush1.bf16.xpose.msra.mxu0 0
    %1564 = vmatprep.mubr.bf16.mxu0 0
    %1565 = vmatmul.mubr.bf16.gmra.mrb[0].mxu0 %v1512
    %v1566 = vpop.f32.mrb[0].mxu0
    %v1567 = vadd.f32 0.0, %v1566
    %v1568 = vpop.f32.mrb[0].mxu0
    %v1569 = vpop.f32.mrb[0].mxu0
    %v1570 = vadd.f32 0.0, %v1569
    %v1571 = vpop.f32.mrb[0].mxu0
    %1572 = vmatprep.mubr.bf16.mxu0 0
    %1573 = vmatmul.mubr.bf16.gmra.mrb[0].mxu0 %v1515
    %v1574 = vpop.f32.mrb[0].mxu0
    %v1575 = vadd.f32 0.0, %v1574
    %v1576 = vpop.f32.mrb[0].mxu0
    %v1577 = vpop.f32.mrb[0].mxu0
    %v1578 = vadd.f32 0.0, %v1577
    %v1579 = vpop.f32.mrb[0].mxu0
    %1580 = vmatprep.mubr.bf16.mxu0 0
    %1581 = vmatmul.mubr.bf16.gmra.mrb[0].mxu0 %v1518
    %v1582 = vpop.f32.mrb[0].mxu0
    %v1583 = vadd.f32 0.0, %v1582
    %v1584 = vpop.f32.mrb[0].mxu0
    %v1585 = vpop.f32.mrb[0].mxu0
    %v1586 = vadd.f32 0.0, %v1585
    %v1587 = vpop.f32.mrb[0].mxu0
    %1588 = vmatprep.mubr.bf16.mxu0 0
    %1589 = vmatmul.mubr.bf16.gmra.mrb[0].mxu0 %v1521
    %v1590 = vpop.f32.mrb[0].mxu0
    %v1591 = vadd.f32 0.0, %v1590
    %v1592 = vpop.f32.mrb[0].mxu0
    %v1593 = vpop.f32.mrb[0].mxu0
    %v1594 = vadd.f32 0.0, %v1593
    %v1595 = vpop.f32.mrb[0].mxu0
    %1596 = vdwg.mxu0
    %v1597 = vmul.f32 %v1567, 0.17677669
    %v1598 = vmul.f32 %v1570, 0.17677669
    %v1599 = vmul.f32 %v1575, 0.17677669
    %v1600 = vmul.f32 %v1578, 0.17677669
    %v1601 = vmul.f32 %v1583, 0.17677669
    %v1602 = vmul.f32 %v1586, 0.17677669
    %v1603 = vmul.f32 %v1591, 0.17677669
    %v1604 = vmul.f32 %v1594, 0.17677669
    %v1605 = vsel %vm1028, %v1597, -inf
    %1606 = vmax.xlane.f32.xlu0 %v1605
    %v1607 = vpop.xlane.xlu0 %1606
    %v1608 = vsel %vm1028, %v1598, -inf
    %1609 = vmax.xlane.f32.xlu0 %v1608
    %v1610 = vpop.xlane.xlu0 %1609
    %v1611 = vsel %vm1028, %v1599, -inf
    %1612 = vmax.xlane.f32.xlu0 %v1611
    %v1613 = vpop.xlane.xlu0 %1612
    %v1614 = vsel %vm1028, %v1600, -inf
    %1615 = vmax.xlane.f32.xlu0 %v1614
    %v1616 = vpop.xlane.xlu0 %1615
    %v1617 = vsel %vm1028, %v1601, -inf
    %1618 = vmax.xlane.f32.xlu0 %v1617
    %v1619 = vpop.xlane.xlu0 %1618
    %v1620 = vsel %vm1028, %v1602, -inf
    %1621 = vmax.xlane.f32.xlu0 %v1620
    %v1622 = vpop.xlane.xlu0 %1621
    %v1623 = vsel %vm1028, %v1603, -inf
    %1624 = vmax.xlane.f32.xlu0 %v1623
    %v1625 = vpop.xlane.xlu0 %1624
    %v1626 = vsel %vm1028, %v1604, -inf
    %1627 = vmax.xlane.f32.xlu0 %v1626
    %v1628 = vpop.xlane.xlu0 %1627
    %v1629 = vsub.f32 %v1597, %v1607
    %v1630 = vsub.f32 %v1598, %v1610
    %v1631 = vsub.f32 %v1599, %v1613
    %v1632 = vsub.f32 %v1600, %v1616
    %v1633 = vsub.f32 %v1601, %v1619
    %v1634 = vsub.f32 %v1602, %v1622
    %v1635 = vsub.f32 %v1603, %v1625
    %v1636 = vsub.f32 %v1604, %v1628
    %v1637 = vmul.f32 %v1629, 1.442695
    %v1638 = vpow.pop %v1637
    %v1639 = vmul.f32 %v1630, 1.442695
    %v1640 = vpow.pop %v1639
    %v1641 = vmul.f32 %v1631, 1.442695
    %v1642 = vpow.pop %v1641
    %v1643 = vmul.f32 %v1632, 1.442695
    %v1644 = vpow.pop %v1643
    %v1645 = vmul.f32 %v1633, 1.442695
    %v1646 = vpow.pop %v1645
    %v1647 = vmul.f32 %v1634, 1.442695
    %v1648 = vpow.pop %v1647
    %v1649 = vmul.f32 %v1635, 1.442695
    %v1650 = vpow.pop %v1649
    %v1651 = vmul.f32 %v1636, 1.442695
    %v1652 = vpow.pop %v1651
    %v1653 = vsel %vm1028, %v1638, 0.0
    %1654 = vadd.xlane.f32.xlu0 %v1653
    %v1655 = vpop.xlane.xlu0 %1654
    %v1656 = vsel %vm1028, %v1640, 0.0
    %1657 = vadd.xlane.f32.xlu0 %v1656
    %v1658 = vpop.xlane.xlu0 %1657
    %v1659 = vsel %vm1028, %v1642, 0.0
    %1660 = vadd.xlane.f32.xlu0 %v1659
    %v1661 = vpop.xlane.xlu0 %1660
    %v1662 = vsel %vm1028, %v1644, 0.0
    %1663 = vadd.xlane.f32.xlu0 %v1662
    %v1664 = vpop.xlane.xlu0 %1663
    %v1665 = vsel %vm1028, %v1646, 0.0
    %1666 = vadd.xlane.f32.xlu0 %v1665
    %v1667 = vpop.xlane.xlu0 %1666
    %v1668 = vsel %vm1028, %v1648, 0.0
    %1669 = vadd.xlane.f32.xlu0 %v1668
    %v1670 = vpop.xlane.xlu0 %1669
    %v1671 = vsel %vm1028, %v1650, 0.0
    %1672 = vadd.xlane.f32.xlu0 %v1671
    %v1673 = vpop.xlane.xlu0 %1672
    %v1674 = vsel %vm1028, %v1652, 0.0
    %1675 = vadd.xlane.f32.xlu0 %v1674
    %v1676 = vpop.xlane.xlu0 %1675
    %v1677 = vrcp.pop %v1655
    %v1678 = vrcp.pop %v1658
    %v1679 = vrcp.pop %v1661
    %v1680 = vrcp.pop %v1664
    %v1681 = vrcp.pop %v1667
    %v1682 = vrcp.pop %v1670
    %v1683 = vrcp.pop %v1673
    %v1684 = vrcp.pop %v1676
    %v1685 = vmul.f32 %v1638, %v1677
    %v1686 = vmul.f32 %v1640, %v1678
    %v1687 = vmul.f32 %v1642, %v1679
    %v1688 = vmul.f32 %v1644, %v1680
    %v1689 = vmul.f32 %v1646, %v1681
    %v1690 = vmul.f32 %v1648, %v1682
    %v1691 = vmul.f32 %v1650, %v1683
    %v1692 = vmul.f32 %v1652, %v1684
    %v1693 = vpack.c.bf16 %v1686, %v1685
    %v1694 = vpack.c.bf16 %v1688, %v1687
    %v1695 = vpack.c.bf16 %v1690, %v1689
    %v1696 = vpack.c.bf16 %v1692, %v1691
    %1697 = vrot.lane.b32.xlu0 %v1121, 64
    %v1698 = vpop.permute.xlu0 %1697
    %1699 = vrot.lane.b32.xlu0 %v1122, 64
    %v1700 = vpop.permute.xlu0 %1699
    %1701 = vrot.lane.b32.xlu0 %v1123, 64
    %v1702 = vpop.permute.xlu0 %1701
    %v1707 = vsel %vm1028, %v1693, 0
    %v1710 = vsel %vm1028, %v1694, 0
    %v1713 = vsel %vm1028, %v1695, 0
    %v1716 = vsel %vm1028, %v1696, 0
    %1718 = vmatprep.subr.bf16.mxu0 0
    %1719 = vmatpush1.bf16.msra.mxu0 %v1698
    %1720 = vmatprep.subr.bf16.mxu0 0
    %1721 = vmatpush1.bf16.msra.mxu0 %v1700
    %1722 = vmatprep.subr.bf16.mxu0 0
    %1723 = vmatpush1.bf16.msra.mxu0 %v1702
    %1724 = vmatprep.subr.bf16.mxu0 0
    %1725 = vmatpush1.bf16.msra.mxu0 0
    %1726 = vmatprep.subr.bf16.mxu0 0
    %1727 = vmatpush1.bf16.msra.mxu0 0
    %1728 = vmatprep.subr.bf16.mxu0 0
    %1729 = vmatpush1.bf16.msra.mxu0 0
    %1730 = vmatprep.subr.bf16.mxu0 0
    %1731 = vmatpush1.bf16.msra.mxu0 0
    %1732 = vmatprep.subr.bf16.mxu0 0
    %1733 = vmatpush1.bf16.msra.mxu0 0
    %1734 = vmatprep.subr.bf16.mxu0 0
    %1735 = vmatpush1.bf16.msra.mxu0 0
    %1736 = vmatprep.subr.bf16.mxu0 0
    %1737 = vmatpush1.bf16.msra.mxu0 0
    %1738 = vmatprep.subr.bf16.mxu0 0
    %1739 = vmatpush1.bf16.msra.mxu0 0
    %1740 = vmatprep.subr.bf16.mxu0 0
    %1741 = vmatpush1.bf16.msra.mxu0 0
    %1742 = vmatprep.subr.bf16.mxu0 0
    %1743 = vmatpush1.bf16.msra.mxu0 0
    %1744 = vmatprep.subr.bf16.mxu0 0
    %1745 = vmatpush1.bf16.msra.mxu0 0
    %1746 = vmatprep.subr.bf16.mxu0 0
    %1747 = vmatpush1.bf16.msra.mxu0 0
    %1748 = vmatprep.subr.bf16.mxu0 0
    %1749 = vmatpush1.bf16.msra.mxu0 0
    %1750 = vmatprep.mubr.bf16.mxu0 0
    %1751 = vmatmul.mubr.bf16.gmra.mrb[0].mxu0 %v1707
    %v1752 = vpop.f32.mrb[0].mxu0
    %v1753 = vadd.f32 0.0, %v1752
    %v1754 = vpop.f32.mrb[0].mxu0
    %v1755 = vpop.f32.mrb[0].mxu0
    %v1756 = vadd.f32 0.0, %v1755
    %v1757 = vpop.f32.mrb[0].mxu0
    %1758 = vmatprep.mubr.bf16.mxu0 0
    %1759 = vmatmul.mubr.bf16.gmra.mrb[0].mxu0 %v1710
    %v1760 = vpop.f32.mrb[0].mxu0
    %v1761 = vadd.f32 0.0, %v1760
    %v1762 = vpop.f32.mrb[0].mxu0
    %v1763 = vpop.f32.mrb[0].mxu0
    %v1764 = vadd.f32 0.0, %v1763
    %v1765 = vpop.f32.mrb[0].mxu0
    %1766 = vmatprep.mubr.bf16.mxu0 0
    %1767 = vmatmul.mubr.bf16.gmra.mrb[0].mxu0 %v1713
    %v1768 = vpop.f32.mrb[0].mxu0
    %v1769 = vadd.f32 0.0, %v1768
    %v1770 = vpop.f32.mrb[0].mxu0
    %v1771 = vpop.f32.mrb[0].mxu0
    %v1772 = vadd.f32 0.0, %v1771
    %v1773 = vpop.f32.mrb[0].mxu0
    %1774 = vmatprep.mubr.bf16.mxu0 0
    %1775 = vmatmul.mubr.bf16.gmra.mrb[0].mxu0 %v1716
    %v1776 = vpop.f32.mrb[0].mxu0
    %v1777 = vadd.f32 0.0, %v1776
    %v1778 = vpop.f32.mrb[0].mxu0
    %v1779 = vpop.f32.mrb[0].mxu0
    %v1780 = vadd.f32 0.0, %v1779
    %v1781 = vpop.f32.mrb[0].mxu0
    %1782 = vdwg.mxu0
    %1783 = vrot.lane.b32.xlu0 %v926, 32
    %v1784 = vpop.permute.xlu0 %1783
    %1785 = vrot.lane.b32.xlu0 %v927, 32
    %v1786 = vpop.permute.xlu0 %1785
    %1787 = vrot.lane.b32.xlu0 %v928, 32
    %v1788 = vpop.permute.xlu0 %1787
    %1789 = vrot.lane.b32.xlu0 %v929, 32
    %v1790 = vpop.permute.xlu0 %1789
    %1791 = vrot.lane.b32.xlu0 %v930, 32
    %v1792 = vpop.permute.xlu0 %1791
    %1793 = vrot.lane.b32.xlu0 %v931, 32
    %v1794 = vpop.permute.xlu0 %1793
    %1795 = vrot.lane.b32.xlu0 %v932, 32
    %v1796 = vpop.permute.xlu0 %1795
    %v1798 = vsel %vm933, %v1784, 0
    %v1801 = vsel %vm933, %v1786, 0
    %v1804 = vsel %vm933, %v1788, 0
    %v1807 = vsel %vm933, %v1790, 0
    %v1810 = vsel %vm933, %v1792, 0
    %v1813 = vsel %vm933, %v1794, 0
    %v1816 = vsel %vm933, %v1796, 0
    %1818 = vmatprep.subr.bf16.mxu0 0
    %1819 = vmatpush1.bf16.xpose.msra.mxu0 %v1810
    %1820 = vmatprep.subr.bf16.mxu0 0
    %1821 = vmatpush1.bf16.xpose.msra.mxu0 %v1813
    %1822 = vmatprep.subr.bf16.mxu0 0
    %1823 = vmatpush1.bf16.xpose.msra.mxu0 %v1816
    %1824 = vmatprep.subr.bf16.mxu0 0
    %1825 = vmatpush1.bf16.xpose.msra.mxu0 0
    %1826 = vmatprep.subr.bf16.mxu0 0
    %1827 = vmatpush1.bf16.xpose.msra.mxu0 0
    %1828 = vmatprep.subr.bf16.mxu0 0
    %1829 = vmatpush1.bf16.xpose.msra.mxu0 0
    %1830 = vmatprep.subr.bf16.mxu0 0
    %1831 = vmatpush1.bf16.xpose.msra.mxu0 0
    %1832 = vmatprep.subr.bf16.mxu0 0
    %1833 = vmatpush1.bf16.xpose.msra.mxu0 0
    %1834 = vmatprep.subr.bf16.mxu0 0
    %1835 = vmatpush1.bf16.xpose.msra.mxu0 0
    %1836 = vmatprep.subr.bf16.mxu0 0
    %1837 = vmatpush1.bf16.xpose.msra.mxu0 0
    %1838 = vmatprep.subr.bf16.mxu0 0
    %1839 = vmatpush1.bf16.xpose.msra.mxu0 0
    %1840 = vmatprep.subr.bf16.mxu0 0
    %1841 = vmatpush1.bf16.xpose.msra.mxu0 0
    %1842 = vmatprep.subr.bf16.mxu0 0
    %1843 = vmatpush1.bf16.xpose.msra.mxu0 0
    %1844 = vmatprep.subr.bf16.mxu0 0
    %1845 = vmatpush1.bf16.xpose.msra.mxu0 0
    %1846 = vmatprep.subr.bf16.mxu0 0
    %1847 = vmatpush1.bf16.xpose.msra.mxu0 0
    %1848 = vmatprep.subr.bf16.mxu0 0
    %1849 = vmatpush1.bf16.xpose.msra.mxu0 0
    %1850 = vmatprep.mubr.bf16.mxu0 0
    %1851 = vmatmul.mubr.bf16.gmra.mrb[0].mxu0 %v1798
    %v1852 = vpop.f32.mrb[0].mxu0
    %v1853 = vadd.f32 0.0, %v1852
    %v1854 = vpop.f32.mrb[0].mxu0
    %v1855 = vpop.f32.mrb[0].mxu0
    %v1856 = vadd.f32 0.0, %v1855
    %v1857 = vpop.f32.mrb[0].mxu0
    %1858 = vmatprep.mubr.bf16.mxu0 0
    %1859 = vmatmul.mubr.bf16.gmra.mrb[0].mxu0 %v1801
    %v1860 = vpop.f32.mrb[0].mxu0
    %v1861 = vadd.f32 0.0, %v1860
    %v1862 = vpop.f32.mrb[0].mxu0
    %v1863 = vpop.f32.mrb[0].mxu0
    %v1864 = vadd.f32 0.0, %v1863
    %v1865 = vpop.f32.mrb[0].mxu0
    %1866 = vmatprep.mubr.bf16.mxu0 0
    %1867 = vmatmul.mubr.bf16.gmra.mrb[0].mxu0 %v1804
    %v1868 = vpop.f32.mrb[0].mxu0
    %v1869 = vadd.f32 0.0, %v1868
    %v1870 = vpop.f32.mrb[0].mxu0
    %v1871 = vpop.f32.mrb[0].mxu0
    %v1872 = vadd.f32 0.0, %v1871
    %v1873 = vpop.f32.mrb[0].mxu0
    %1874 = vmatprep.mubr.bf16.mxu0 0
    %1875 = vmatmul.mubr.bf16.gmra.mrb[0].mxu0 %v1807
    %v1876 = vpop.f32.mrb[0].mxu0
    %v1877 = vadd.f32 0.0, %v1876
    %v1878 = vpop.f32.mrb[0].mxu0
    %v1879 = vpop.f32.mrb[0].mxu0
    %v1880 = vadd.f32 0.0, %v1879
    %v1881 = vpop.f32.mrb[0].mxu0
    %1882 = vdwg.mxu0
    %v1883 = vmul.f32 %v1853, 0.17677669
    %v1884 = vmul.f32 %v1856, 0.17677669
    %v1885 = vmul.f32 %v1861, 0.17677669
    %v1886 = vmul.f32 %v1864, 0.17677669
    %v1887 = vmul.f32 %v1869, 0.17677669
    %v1888 = vmul.f32 %v1872, 0.17677669
    %v1889 = vmul.f32 %v1877, 0.17677669
    %v1890 = vmul.f32 %v1880, 0.17677669
    %v1891 = vsel %vm1028, %v1883, -inf
    %1892 = vmax.xlane.f32.xlu0 %v1891
    %v1893 = vpop.xlane.xlu0 %1892
    %v1894 = vsel %vm1028, %v1884, -inf
    %1895 = vmax.xlane.f32.xlu0 %v1894
    %v1896 = vpop.xlane.xlu0 %1895
    %v1897 = vsel %vm1028, %v1885, -inf
    %1898 = vmax.xlane.f32.xlu0 %v1897
    %v1899 = vpop.xlane.xlu0 %1898
    %v1900 = vsel %vm1028, %v1886, -inf
    %1901 = vmax.xlane.f32.xlu0 %v1900
    %v1902 = vpop.xlane.xlu0 %1901
    %v1903 = vsel %vm1028, %v1887, -inf
    %1904 = vmax.xlane.f32.xlu0 %v1903
    %v1905 = vpop.xlane.xlu0 %1904
    %v1906 = vsel %vm1028, %v1888, -inf
    %1907 = vmax.xlane.f32.xlu0 %v1906
    %v1908 = vpop.xlane.xlu0 %1907
    %v1909 = vsel %vm1028, %v1889, -inf
    %1910 = vmax.xlane.f32.xlu0 %v1909
    %v1911 = vpop.xlane.xlu0 %1910
    %v1912 = vsel %vm1028, %v1890, -inf
    %1913 = vmax.xlane.f32.xlu0 %v1912
    %v1914 = vpop.xlane.xlu0 %1913
    %v1915 = vsub.f32 %v1883, %v1893
    %v1916 = vsub.f32 %v1884, %v1896
    %v1917 = vsub.f32 %v1885, %v1899
    %v1918 = vsub.f32 %v1886, %v1902
    %v1919 = vsub.f32 %v1887, %v1905
    %v1920 = vsub.f32 %v1888, %v1908
    %v1921 = vsub.f32 %v1889, %v1911
    %v1922 = vsub.f32 %v1890, %v1914
    %v1923 = vmul.f32 %v1915, 1.442695
    %v1924 = vpow.pop %v1923
    %v1925 = vmul.f32 %v1916, 1.442695
    %v1926 = vpow.pop %v1925
    %v1927 = vmul.f32 %v1917, 1.442695
    %v1928 = vpow.pop %v1927
    %v1929 = vmul.f32 %v1918, 1.442695
    %v1930 = vpow.pop %v1929
    %v1931 = vmul.f32 %v1919, 1.442695
    %v1932 = vpow.pop %v1931
    %v1933 = vmul.f32 %v1920, 1.442695
    %v1934 = vpow.pop %v1933
    %v1935 = vmul.f32 %v1921, 1.442695
    %v1936 = vpow.pop %v1935
    %v1937 = vmul.f32 %v1922, 1.442695
    %v1938 = vpow.pop %v1937
    %v1939 = vsel %vm1028, %v1924, 0.0
    %1940 = vadd.xlane.f32.xlu0 %v1939
    %v1941 = vpop.xlane.xlu0 %1940
    %v1942 = vsel %vm1028, %v1926, 0.0
    %1943 = vadd.xlane.f32.xlu0 %v1942
    %v1944 = vpop.xlane.xlu0 %1943
    %v1945 = vsel %vm1028, %v1928, 0.0
    %1946 = vadd.xlane.f32.xlu0 %v1945
    %v1947 = vpop.xlane.xlu0 %1946
    %v1948 = vsel %vm1028, %v1930, 0.0
    %1949 = vadd.xlane.f32.xlu0 %v1948
    %v1950 = vpop.xlane.xlu0 %1949
    %v1951 = vsel %vm1028, %v1932, 0.0
    %1952 = vadd.xlane.f32.xlu0 %v1951
    %v1953 = vpop.xlane.xlu0 %1952
    %v1954 = vsel %vm1028, %v1934, 0.0
    %1955 = vadd.xlane.f32.xlu0 %v1954
    %v1956 = vpop.xlane.xlu0 %1955
    %v1957 = vsel %vm1028, %v1936, 0.0
    %1958 = vadd.xlane.f32.xlu0 %v1957
    %v1959 = vpop.xlane.xlu0 %1958
    %v1960 = vsel %vm1028, %v1938, 0.0
    %1961 = vadd.xlane.f32.xlu0 %v1960
    %v1962 = vpop.xlane.xlu0 %1961
    %v1963 = vrcp.pop %v1941
    %v1964 = vrcp.pop %v1944
    %v1965 = vrcp.pop %v1947
    %v1966 = vrcp.pop %v1950
    %v1967 = vrcp.pop %v1953
    %v1968 = vrcp.pop %v1956
    %v1969 = vrcp.pop %v1959
    %v1970 = vrcp.pop %v1962
    %v1971 = vmul.f32 %v1924, %v1963
    %v1972 = vmul.f32 %v1926, %v1964
    %v1973 = vmul.f32 %v1928, %v1965
    %v1974 = vmul.f32 %v1930, %v1966
    %v1975 = vmul.f32 %v1932, %v1967
    %v1976 = vmul.f32 %v1934, %v1968
    %v1977 = vmul.f32 %v1936, %v1969
    %v1978 = vmul.f32 %v1938, %v1970
    %v1979 = vpack.c.bf16 %v1972, %v1971
    %v1980 = vpack.c.bf16 %v1974, %v1973
    %v1981 = vpack.c.bf16 %v1976, %v1975
    %v1982 = vpack.c.bf16 %v1978, %v1977
    %1983 = vrot.lane.b32.xlu0 %v1121, 32
    %v1984 = vpop.permute.xlu0 %1983
    %1985 = vrot.lane.b32.xlu0 %v1122, 32
    %v1986 = vpop.permute.xlu0 %1985
    %1987 = vrot.lane.b32.xlu0 %v1123, 32
    %v1988 = vpop.permute.xlu0 %1987
    %v1993 = vsel %vm1028, %v1979, 0
    %v1996 = vsel %vm1028, %v1980, 0
    %v1999 = vsel %vm1028, %v1981, 0
    %v2002 = vsel %vm1028, %v1982, 0
    %2004 = vmatprep.subr.bf16.mxu0 0
    %2005 = vmatpush1.bf16.msra.mxu0 %v1984
    %2006 = vmatprep.subr.bf16.mxu0 0
    %2007 = vmatpush1.bf16.msra.mxu0 %v1986
    %2008 = vmatprep.subr.bf16.mxu0 0
    %2009 = vmatpush1.bf16.msra.mxu0 %v1988
    %2010 = vmatprep.subr.bf16.mxu0 0
    %2011 = vmatpush1.bf16.msra.mxu0 0
    %2012 = vmatprep.subr.bf16.mxu0 0
    %2013 = vmatpush1.bf16.msra.mxu0 0
    %2014 = vmatprep.subr.bf16.mxu0 0
    %2015 = vmatpush1.bf16.msra.mxu0 0
    %2016 = vmatprep.subr.bf16.mxu0 0
    %2017 = vmatpush1.bf16.msra.mxu0 0
    %2018 = vmatprep.subr.bf16.mxu0 0
    %2019 = vmatpush1.bf16.msra.mxu0 0
    %2020 = vmatprep.subr.bf16.mxu0 0
    %2021 = vmatpush1.bf16.msra.mxu0 0
    %2022 = vmatprep.subr.bf16.mxu0 0
    %2023 = vmatpush1.bf16.msra.mxu0 0
    %2024 = vmatprep.subr.bf16.mxu0 0
    %2025 = vmatpush1.bf16.msra.mxu0 0
    %2026 = vmatprep.subr.bf16.mxu0 0
    %2027 = vmatpush1.bf16.msra.mxu0 0
    %2028 = vmatprep.subr.bf16.mxu0 0
    %2029 = vmatpush1.bf16.msra.mxu0 0
    %2030 = vmatprep.subr.bf16.mxu0 0
    %2031 = vmatpush1.bf16.msra.mxu0 0
    %2032 = vmatprep.subr.bf16.mxu0 0
    %2033 = vmatpush1.bf16.msra.mxu0 0
    %2034 = vmatprep.subr.bf16.mxu0 0
    %2035 = vmatpush1.bf16.msra.mxu0 0
    %2036 = vmatprep.mubr.bf16.mxu0 0
    %2037 = vmatmul.mubr.bf16.gmra.mrb[0].mxu0 %v1993
    %v2038 = vpop.f32.mrb[0].mxu0
    %v2039 = vadd.f32 0.0, %v2038
    %v2040 = vpop.f32.mrb[0].mxu0
    %v2041 = vpop.f32.mrb[0].mxu0
    %v2042 = vadd.f32 0.0, %v2041
    %v2043 = vpop.f32.mrb[0].mxu0
    %2044 = vmatprep.mubr.bf16.mxu0 0
    %2045 = vmatmul.mubr.bf16.gmra.mrb[0].mxu0 %v1996
    %v2046 = vpop.f32.mrb[0].mxu0
    %v2047 = vadd.f32 0.0, %v2046
    %v2048 = vpop.f32.mrb[0].mxu0
    %v2049 = vpop.f32.mrb[0].mxu0
    %v2050 = vadd.f32 0.0, %v2049
    %v2051 = vpop.f32.mrb[0].mxu0
    %2052 = vmatprep.mubr.bf16.mxu0 0
    %2053 = vmatmul.mubr.bf16.gmra.mrb[0].mxu0 %v1999
    %v2054 = vpop.f32.mrb[0].mxu0
    %v2055 = vadd.f32 0.0, %v2054
    %v2056 = vpop.f32.mrb[0].mxu0
    %v2057 = vpop.f32.mrb[0].mxu0
    %v2058 = vadd.f32 0.0, %v2057
    %v2059 = vpop.f32.mrb[0].mxu0
    %2060 = vmatprep.mubr.bf16.mxu0 0
    %2061 = vmatmul.mubr.bf16.gmra.mrb[0].mxu0 %v2002
    %v2062 = vpop.f32.mrb[0].mxu0
    %v2063 = vadd.f32 0.0, %v2062
    %v2064 = vpop.f32.mrb[0].mxu0
    %v2065 = vpop.f32.mrb[0].mxu0
    %v2066 = vadd.f32 0.0, %v2065
    %v2067 = vpop.f32.mrb[0].mxu0
    %2068 = vdwg.mxu0
    %2077 = vrot.lane.b32.xlu0 %v1467, 32
    %v2078 = vpop.permute.xlu0 %2077
    %2079 = vrot.lane.b32.xlu0 %v1470, 32
    %v2080 = vpop.permute.xlu0 %2079
    %2081 = vrot.lane.b32.xlu0 %v1475, 32
    %v2082 = vpop.permute.xlu0 %2081
    %2083 = vrot.lane.b32.xlu0 %v1478, 32
    %v2084 = vpop.permute.xlu0 %2083
    %2085 = vrot.lane.b32.xlu0 %v1483, 32
    %v2086 = vpop.permute.xlu0 %2085
    %2087 = vrot.lane.b32.xlu0 %v1486, 32
    %v2088 = vpop.permute.xlu0 %2087
    %2089 = vrot.lane.b32.xlu0 %v1491, 32
    %v2090 = vpop.permute.xlu0 %2089
    %2091 = vrot.lane.b32.xlu0 %v1494, 32
    %v2092 = vpop.permute.xlu0 %2091
    %2109 = vrot.lane.b32.xlu0 %v1753, 64
    %v2110 = vpop.permute.xlu0 %2109
    %2111 = vrot.lane.b32.xlu0 %v1756, 64
    %v2112 = vpop.permute.xlu0 %2111
    %2113 = vrot.lane.b32.xlu0 %v1761, 64
    %v2114 = vpop.permute.xlu0 %2113
    %2115 = vrot.lane.b32.xlu0 %v1764, 64
    %v2116 = vpop.permute.xlu0 %2115
    %2117 = vrot.lane.b32.xlu0 %v1769, 64
    %v2118 = vpop.permute.xlu0 %2117
    %2119 = vrot.lane.b32.xlu0 %v1772, 64
    %v2120 = vpop.permute.xlu0 %2119
    %2121 = vrot.lane.b32.xlu0 %v1777, 64
    %v2122 = vpop.permute.xlu0 %2121
    %2123 = vrot.lane.b32.xlu0 %v1780, 64
    %v2124 = vpop.permute.xlu0 %2123
    %2141 = vrot.lane.b32.xlu0 %v2039, 96
    %v2142 = vpop.permute.xlu0 %2141
    %2143 = vrot.lane.b32.xlu0 %v2042, 96
    %v2144 = vpop.permute.xlu0 %2143
    %2145 = vrot.lane.b32.xlu0 %v2047, 96
    %v2146 = vpop.permute.xlu0 %2145
    %2147 = vrot.lane.b32.xlu0 %v2050, 96
    %v2148 = vpop.permute.xlu0 %2147
    %2149 = vrot.lane.b32.xlu0 %v2055, 96
    %v2150 = vpop.permute.xlu0 %2149
    %2151 = vrot.lane.b32.xlu0 %v2058, 96
    %v2152 = vpop.permute.xlu0 %2151
    %2153 = vrot.lane.b32.xlu0 %v2063, 96
    %v2154 = vpop.permute.xlu0 %2153
    %2155 = vrot.lane.b32.xlu0 %v2066, 96
    %v2156 = vpop.permute.xlu0 %2155
    %v2165 = vsel %vm933, %v1171, %v2078
    %v2166 = vsel %vm933, %v1174, %v2080
    %v2167 = vsel %vm933, %v1179, %v2082
    %v2168 = vsel %vm933, %v1182, %v2084
    %v2169 = vsel %vm933, %v1187, %v2086
    %v2170 = vsel %vm933, %v1190, %v2088
    %v2171 = vsel %vm933, %v1195, %v2090
    %v2172 = vsel %vm933, %v1198, %v2092
    %vm2173 = vcmask 523264
    %v2174 = vsel %vm2173, %v2165, %v2110
    %v2175 = vsel %vm2173, %v2166, %v2112
    %v2176 = vsel %vm2173, %v2167, %v2114
    %v2177 = vsel %vm2173, %v2168, %v2116
    %v2178 = vsel %vm2173, %v2169, %v2118
    %v2179 = vsel %vm2173, %v2170, %v2120
    %v2180 = vsel %vm2173, %v2171, %v2122
    %v2181 = vsel %vm2173, %v2172, %v2124
    %vm2182 = vcmask 785408
    %v2183 = vsel %vm2182, %v2174, %v2142
    %v2184 = vsel %vm2182, %v2175, %v2144
    %v2185 = vsel %vm2182, %v2176, %v2146
    %v2186 = vsel %vm2182, %v2177, %v2148
    %v2187 = vsel %vm2182, %v2178, %v2150
    %v2188 = vsel %vm2182, %v2179, %v2152
    %v2189 = vsel %vm2182, %v2180, %v2154
    %v2190 = vsel %vm2182, %v2181, %v2156
    %v2191 = vpack.c.bf16 %v704, %v701
    %v2192 = vpack.c.bf16 %v712, %v709
    %v2193 = vpack.c.bf16 %v720, %v717
    %v2194 = vpack.c.bf16 %v728, %v725
    %v2195 = vpack.c.bf16 %v902, %v898
    %v2196 = vpack.c.bf16 %v912, %v908
    %v2197 = vpack.c.bf16 %v922, %v918
    %v2199 = vsel %vm933, %v2191, 0
    %v2202 = vsel %vm933, %v2192, 0
    %v2205 = vsel %vm933, %v2193, 0
    %v2208 = vsel %vm933, %v2194, 0
    %v2211 = vsel %vm933, %v2195, 0
    %v2214 = vsel %vm933, %v2196, 0
    %v2217 = vsel %vm933, %v2197, 0
    %2219 = vmatprep.subr.bf16.mxu0 0
    %2220 = vmatpush1.bf16.xpose.msra.mxu0 %v2211
    %2221 = vmatprep.subr.bf16.mxu0 0
    %2222 = vmatpush1.bf16.xpose.msra.mxu0 %v2214
    %2223 = vmatprep.subr.bf16.mxu0 0
    %2224 = vmatpush1.bf16.xpose.msra.mxu0 %v2217
    %2225 = vmatprep.subr.bf16.mxu0 0
    %2226 = vmatpush1.bf16.xpose.msra.mxu0 0
    %2227 = vmatprep.subr.bf16.mxu0 0
    %2228 = vmatpush1.bf16.xpose.msra.mxu0 0
    %2229 = vmatprep.subr.bf16.mxu0 0
    %2230 = vmatpush1.bf16.xpose.msra.mxu0 0
    %2231 = vmatprep.subr.bf16.mxu0 0
    %2232 = vmatpush1.bf16.xpose.msra.mxu0 0
    %2233 = vmatprep.subr.bf16.mxu0 0
    %2234 = vmatpush1.bf16.xpose.msra.mxu0 0
    %2235 = vmatprep.subr.bf16.mxu0 0
    %2236 = vmatpush1.bf16.xpose.msra.mxu0 0
    %2237 = vmatprep.subr.bf16.mxu0 0
    %2238 = vmatpush1.bf16.xpose.msra.mxu0 0
    %2239 = vmatprep.subr.bf16.mxu0 0
    %2240 = vmatpush1.bf16.xpose.msra.mxu0 0
    %2241 = vmatprep.subr.bf16.mxu0 0
    %2242 = vmatpush1.bf16.xpose.msra.mxu0 0
    %2243 = vmatprep.subr.bf16.mxu0 0
    %2244 = vmatpush1.bf16.xpose.msra.mxu0 0
    %2245 = vmatprep.subr.bf16.mxu0 0
    %2246 = vmatpush1.bf16.xpose.msra.mxu0 0
    %2247 = vmatprep.subr.bf16.mxu0 0
    %2248 = vmatpush1.bf16.xpose.msra.mxu0 0
    %2249 = vmatprep.subr.bf16.mxu0 0
    %2250 = vmatpush1.bf16.xpose.msra.mxu0 0
    %2251 = vmatprep.mubr.bf16.mxu0 0
    %2252 = vmatmul.mubr.bf16.gmra.mrb[0].mxu0 %v2199
    %v2253 = vpop.f32.mrb[0].mxu0
    %v2254 = vadd.f32 0.0, %v2253
    %v2255 = vpop.f32.mrb[0].mxu0
    %v2256 = vpop.f32.mrb[0].mxu0
    %v2257 = vadd.f32 0.0, %v2256
    %v2258 = vpop.f32.mrb[0].mxu0
    %2259 = vmatprep.mubr.bf16.mxu0 0
    %2260 = vmatmul.mubr.bf16.gmra.mrb[0].mxu0 %v2202
    %v2261 = vpop.f32.mrb[0].mxu0
    %v2262 = vadd.f32 0.0, %v2261
    %v2263 = vpop.f32.mrb[0].mxu0
    %v2264 = vpop.f32.mrb[0].mxu0
    %v2265 = vadd.f32 0.0, %v2264
    %v2266 = vpop.f32.mrb[0].mxu0
    %2267 = vmatprep.mubr.bf16.mxu0 0
    %2268 = vmatmul.mubr.bf16.gmra.mrb[0].mxu0 %v2205
    %v2269 = vpop.f32.mrb[0].mxu0
    %v2270 = vadd.f32 0.0, %v2269
    %v2271 = vpop.f32.mrb[0].mxu0
    %v2272 = vpop.f32.mrb[0].mxu0
    %v2273 = vadd.f32 0.0, %v2272
    %v2274 = vpop.f32.mrb[0].mxu0
    %2275 = vmatprep.mubr.bf16.mxu0 0
    %2276 = vmatmul.mubr.bf16.gmra.mrb[0].mxu0 %v2208
    %v2277 = vpop.f32.mrb[0].mxu0
    %v2278 = vadd.f32 0.0, %v2277
    %v2279 = vpop.f32.mrb[0].mxu0
    %v2280 = vpop.f32.mrb[0].mxu0
    %v2281 = vadd.f32 0.0, %v2280
    %v2282 = vpop.f32.mrb[0].mxu0
    %2283 = vdwg.mxu0
    %v2284 = vmul.f32 %v2254, 0.17677669
    %v2285 = vmul.f32 %v2257, 0.17677669
    %v2286 = vmul.f32 %v2262, 0.17677669
    %v2287 = vmul.f32 %v2265, 0.17677669
    %v2288 = vmul.f32 %v2270, 0.17677669
    %v2289 = vmul.f32 %v2273, 0.17677669
    %v2290 = vmul.f32 %v2278, 0.17677669
    %v2291 = vmul.f32 %v2281, 0.17677669
    %v2292 = vsel %vm1028, %v2284, -inf
    %2293 = vmax.xlane.f32.xlu0 %v2292
    %v2294 = vpop.xlane.xlu0 %2293
    %v2295 = vsel %vm1028, %v2285, -inf
    %2296 = vmax.xlane.f32.xlu0 %v2295
    %v2297 = vpop.xlane.xlu0 %2296
    %v2298 = vsel %vm1028, %v2286, -inf
    %2299 = vmax.xlane.f32.xlu0 %v2298
    %v2300 = vpop.xlane.xlu0 %2299
    %v2301 = vsel %vm1028, %v2287, -inf
    %2302 = vmax.xlane.f32.xlu0 %v2301
    %v2303 = vpop.xlane.xlu0 %2302
    %v2304 = vsel %vm1028, %v2288, -inf
    %2305 = vmax.xlane.f32.xlu0 %v2304
    %v2306 = vpop.xlane.xlu0 %2305
    %v2307 = vsel %vm1028, %v2289, -inf
    %2308 = vmax.xlane.f32.xlu0 %v2307
    %v2309 = vpop.xlane.xlu0 %2308
    %v2310 = vsel %vm1028, %v2290, -inf
    %2311 = vmax.xlane.f32.xlu0 %v2310
    %v2312 = vpop.xlane.xlu0 %2311
    %v2313 = vsel %vm1028, %v2291, -inf
    %2314 = vmax.xlane.f32.xlu0 %v2313
    %v2315 = vpop.xlane.xlu0 %2314
    %v2316 = vsub.f32 %v2284, %v2294
    %v2317 = vsub.f32 %v2285, %v2297
    %v2318 = vsub.f32 %v2286, %v2300
    %v2319 = vsub.f32 %v2287, %v2303
    %v2320 = vsub.f32 %v2288, %v2306
    %v2321 = vsub.f32 %v2289, %v2309
    %v2322 = vsub.f32 %v2290, %v2312
    %v2323 = vsub.f32 %v2291, %v2315
    %v2324 = vmul.f32 %v2316, 1.442695
    %v2325 = vpow.pop %v2324
    %v2326 = vmul.f32 %v2317, 1.442695
    %v2327 = vpow.pop %v2326
    %v2328 = vmul.f32 %v2318, 1.442695
    %v2329 = vpow.pop %v2328
    %v2330 = vmul.f32 %v2319, 1.442695
    %v2331 = vpow.pop %v2330
    %v2332 = vmul.f32 %v2320, 1.442695
    %v2333 = vpow.pop %v2332
    %v2334 = vmul.f32 %v2321, 1.442695
    %v2335 = vpow.pop %v2334
    %v2336 = vmul.f32 %v2322, 1.442695
    %v2337 = vpow.pop %v2336
    %v2338 = vmul.f32 %v2323, 1.442695
    %v2339 = vpow.pop %v2338
    %v2340 = vsel %vm1028, %v2325, 0.0
    %2341 = vadd.xlane.f32.xlu0 %v2340
    %v2342 = vpop.xlane.xlu0 %2341
    %v2343 = vsel %vm1028, %v2327, 0.0
    %2344 = vadd.xlane.f32.xlu0 %v2343
    %v2345 = vpop.xlane.xlu0 %2344
    %v2346 = vsel %vm1028, %v2329, 0.0
    %2347 = vadd.xlane.f32.xlu0 %v2346
    %v2348 = vpop.xlane.xlu0 %2347
    %v2349 = vsel %vm1028, %v2331, 0.0
    %2350 = vadd.xlane.f32.xlu0 %v2349
    %v2351 = vpop.xlane.xlu0 %2350
    %v2352 = vsel %vm1028, %v2333, 0.0
    %2353 = vadd.xlane.f32.xlu0 %v2352
    %v2354 = vpop.xlane.xlu0 %2353
    %v2355 = vsel %vm1028, %v2335, 0.0
    %2356 = vadd.xlane.f32.xlu0 %v2355
    %v2357 = vpop.xlane.xlu0 %2356
    %v2358 = vsel %vm1028, %v2337, 0.0
    %2359 = vadd.xlane.f32.xlu0 %v2358
    %v2360 = vpop.xlane.xlu0 %2359
    %v2361 = vsel %vm1028, %v2339, 0.0
    %2362 = vadd.xlane.f32.xlu0 %v2361
    %v2363 = vpop.xlane.xlu0 %2362
    %v2364 = vrcp.pop %v2342
    %v2365 = vrcp.pop %v2345
    %v2366 = vrcp.pop %v2348
    %v2367 = vrcp.pop %v2351
    %v2368 = vrcp.pop %v2354
    %v2369 = vrcp.pop %v2357
    %v2370 = vrcp.pop %v2360
    %v2371 = vrcp.pop %v2363
    %v2372 = vmul.f32 %v2325, %v2364
    %v2373 = vmul.f32 %v2327, %v2365
    %v2374 = vmul.f32 %v2329, %v2366
    %v2375 = vmul.f32 %v2331, %v2367
    %v2376 = vmul.f32 %v2333, %v2368
    %v2377 = vmul.f32 %v2335, %v2369
    %v2378 = vmul.f32 %v2337, %v2370
    %v2379 = vmul.f32 %v2339, %v2371
    %v2380 = vpack.c.bf16 %v2373, %v2372
    %v2381 = vpack.c.bf16 %v2375, %v2374
    %v2382 = vpack.c.bf16 %v2377, %v2376
    %v2383 = vpack.c.bf16 %v2379, %v2378
    %v2384 = vpack.c.bf16 %v904, %v900
    %v2385 = vpack.c.bf16 %v914, %v910
    %v2386 = vpack.c.bf16 %v924, %v920
    %v2388 = vsel %vm1028, %v2380, 0
    %v2391 = vsel %vm1028, %v2381, 0
    %v2394 = vsel %vm1028, %v2382, 0
    %v2397 = vsel %vm1028, %v2383, 0
    %2399 = vmatprep.subr.bf16.mxu0 0
    %2400 = vmatpush1.bf16.msra.mxu0 %v2384
    %2401 = vmatprep.subr.bf16.mxu0 0
    %2402 = vmatpush1.bf16.msra.mxu0 %v2385
    %2403 = vmatprep.subr.bf16.mxu0 0
    %2404 = vmatpush1.bf16.msra.mxu0 %v2386
    %2405 = vmatprep.subr.bf16.mxu0 0
    %2406 = vmatpush1.bf16.msra.mxu0 0
    %2407 = vmatprep.subr.bf16.mxu0 0
    %2408 = vmatpush1.bf16.msra.mxu0 0
    %2409 = vmatprep.subr.bf16.mxu0 0
    %2410 = vmatpush1.bf16.msra.mxu0 0
    %2411 = vmatprep.subr.bf16.mxu0 0
    %2412 = vmatpush1.bf16.msra.mxu0 0
    %2413 = vmatprep.subr.bf16.mxu0 0
    %2414 = vmatpush1.bf16.msra.mxu0 0
    %2415 = vmatprep.subr.bf16.mxu0 0
    %2416 = vmatpush1.bf16.msra.mxu0 0
    %2417 = vmatprep.subr.bf16.mxu0 0
    %2418 = vmatpush1.bf16.msra.mxu0 0
    %2419 = vmatprep.subr.bf16.mxu0 0
    %2420 = vmatpush1.bf16.msra.mxu0 0
    %2421 = vmatprep.subr.bf16.mxu0 0
    %2422 = vmatpush1.bf16.msra.mxu0 0
    %2423 = vmatprep.subr.bf16.mxu0 0
    %2424 = vmatpush1.bf16.msra.mxu0 0
    %2425 = vmatprep.subr.bf16.mxu0 0
    %2426 = vmatpush1.bf16.msra.mxu0 0
    %2427 = vmatprep.subr.bf16.mxu0 0
    %2428 = vmatpush1.bf16.msra.mxu0 0
    %2429 = vmatprep.subr.bf16.mxu0 0
    %2430 = vmatpush1.bf16.msra.mxu0 0
    %2431 = vmatprep.mubr.bf16.mxu0 0
    %2432 = vmatmul.mubr.bf16.gmra.mrb[0].mxu0 %v2388
    %v2433 = vpop.f32.mrb[0].mxu0
    %v2434 = vadd.f32 0.0, %v2433
    %v2435 = vpop.f32.mrb[0].mxu0
    %v2436 = vpop.f32.mrb[0].mxu0
    %v2437 = vadd.f32 0.0, %v2436
    %v2438 = vpop.f32.mrb[0].mxu0
    %2439 = vmatprep.mubr.bf16.mxu0 0
    %2440 = vmatmul.mubr.bf16.gmra.mrb[0].mxu0 %v2391
    %v2441 = vpop.f32.mrb[0].mxu0
    %v2442 = vadd.f32 0.0, %v2441
    %v2443 = vpop.f32.mrb[0].mxu0
    %v2444 = vpop.f32.mrb[0].mxu0
    %v2445 = vadd.f32 0.0, %v2444
    %v2446 = vpop.f32.mrb[0].mxu0
    %2447 = vmatprep.mubr.bf16.mxu0 0
    %2448 = vmatmul.mubr.bf16.gmra.mrb[0].mxu0 %v2394
    %v2449 = vpop.f32.mrb[0].mxu0
    %v2450 = vadd.f32 0.0, %v2449
    %v2451 = vpop.f32.mrb[0].mxu0
    %v2452 = vpop.f32.mrb[0].mxu0
    %v2453 = vadd.f32 0.0, %v2452
    %v2454 = vpop.f32.mrb[0].mxu0
    %2455 = vmatprep.mubr.bf16.mxu0 0
    %2456 = vmatmul.mubr.bf16.gmra.mrb[0].mxu0 %v2397
    %v2457 = vpop.f32.mrb[0].mxu0
    %v2458 = vadd.f32 0.0, %v2457
    %v2459 = vpop.f32.mrb[0].mxu0
    %v2460 = vpop.f32.mrb[0].mxu0
    %v2461 = vadd.f32 0.0, %v2460
    %v2462 = vpop.f32.mrb[0].mxu0
    %2463 = vdwg.mxu0
    %2468 = vrot.lane.b32.xlu0 %v2191, 96
    %v2469 = vpop.permute.xlu0 %2468
    %2470 = vrot.lane.b32.xlu0 %v2192, 96
    %v2471 = vpop.permute.xlu0 %2470
    %2472 = vrot.lane.b32.xlu0 %v2193, 96
    %v2473 = vpop.permute.xlu0 %2472
    %2474 = vrot.lane.b32.xlu0 %v2194, 96
    %v2475 = vpop.permute.xlu0 %2474
    %2479 = vrot.lane.b32.xlu0 %v2195, 96
    %v2480 = vpop.permute.xlu0 %2479
    %2481 = vrot.lane.b32.xlu0 %v2196, 96
    %v2482 = vpop.permute.xlu0 %2481
    %2483 = vrot.lane.b32.xlu0 %v2197, 96
    %v2484 = vpop.permute.xlu0 %2483
    %v2486 = vsel %vm933, %v2469, 0
    %v2489 = vsel %vm933, %v2471, 0
    %v2492 = vsel %vm933, %v2473, 0
    %v2495 = vsel %vm933, %v2475, 0
    %v2498 = vsel %vm933, %v2480, 0
    %v2501 = vsel %vm933, %v2482, 0
    %v2504 = vsel %vm933, %v2484, 0
    %2506 = vmatprep.subr.bf16.mxu0 0
    %2507 = vmatpush1.bf16.xpose.msra.mxu0 %v2498
    %2508 = vmatprep.subr.bf16.mxu0 0
    %2509 = vmatpush1.bf16.xpose.msra.mxu0 %v2501
    %2510 = vmatprep.subr.bf16.mxu0 0
    %2511 = vmatpush1.bf16.xpose.msra.mxu0 %v2504
    %2512 = vmatprep.subr.bf16.mxu0 0
    %2513 = vmatpush1.bf16.xpose.msra.mxu0 0
    %2514 = vmatprep.subr.bf16.mxu0 0
    %2515 = vmatpush1.bf16.xpose.msra.mxu0 0
    %2516 = vmatprep.subr.bf16.mxu0 0
    %2517 = vmatpush1.bf16.xpose.msra.mxu0 0
    %2518 = vmatprep.subr.bf16.mxu0 0
    %2519 = vmatpush1.bf16.xpose.msra.mxu0 0
    %2520 = vmatprep.subr.bf16.mxu0 0
    %2521 = vmatpush1.bf16.xpose.msra.mxu0 0
    %2522 = vmatprep.subr.bf16.mxu0 0
    %2523 = vmatpush1.bf16.xpose.msra.mxu0 0
    %2524 = vmatprep.subr.bf16.mxu0 0
    %2525 = vmatpush1.bf16.xpose.msra.mxu0 0
    %2526 = vmatprep.subr.bf16.mxu0 0
    %2527 = vmatpush1.bf16.xpose.msra.mxu0 0
    %2528 = vmatprep.subr.bf16.mxu0 0
    %2529 = vmatpush1.bf16.xpose.msra.mxu0 0
    %2530 = vmatprep.subr.bf16.mxu0 0
    %2531 = vmatpush1.bf16.xpose.msra.mxu0 0
    %2532 = vmatprep.subr.bf16.mxu0 0
    %2533 = vmatpush1.bf16.xpose.msra.mxu0 0
    %2534 = vmatprep.subr.bf16.mxu0 0
    %2535 = vmatpush1.bf16.xpose.msra.mxu0 0
    %2536 = vmatprep.subr.bf16.mxu0 0
    %2537 = vmatpush1.bf16.xpose.msra.mxu0 0
    %2538 = vmatprep.mubr.bf16.mxu0 0
    %2539 = vmatmul.mubr.bf16.gmra.mrb[0].mxu0 %v2486
    %v2540 = vpop.f32.mrb[0].mxu0
    %v2541 = vadd.f32 0.0, %v2540
    %v2542 = vpop.f32.mrb[0].mxu0
    %v2543 = vpop.f32.mrb[0].mxu0
    %v2544 = vadd.f32 0.0, %v2543
    %v2545 = vpop.f32.mrb[0].mxu0
    %2546 = vmatprep.mubr.bf16.mxu0 0
    %2547 = vmatmul.mubr.bf16.gmra.mrb[0].mxu0 %v2489
    %v2548 = vpop.f32.mrb[0].mxu0
    %v2549 = vadd.f32 0.0, %v2548
    %v2550 = vpop.f32.mrb[0].mxu0
    %v2551 = vpop.f32.mrb[0].mxu0
    %v2552 = vadd.f32 0.0, %v2551
    %v2553 = vpop.f32.mrb[0].mxu0
    %2554 = vmatprep.mubr.bf16.mxu0 0
    %2555 = vmatmul.mubr.bf16.gmra.mrb[0].mxu0 %v2492
    %v2556 = vpop.f32.mrb[0].mxu0
    %v2557 = vadd.f32 0.0, %v2556
    %v2558 = vpop.f32.mrb[0].mxu0
    %v2559 = vpop.f32.mrb[0].mxu0
    %v2560 = vadd.f32 0.0, %v2559
    %v2561 = vpop.f32.mrb[0].mxu0
    %2562 = vmatprep.mubr.bf16.mxu0 0
    %2563 = vmatmul.mubr.bf16.gmra.mrb[0].mxu0 %v2495
    %v2564 = vpop.f32.mrb[0].mxu0
    %v2565 = vadd.f32 0.0, %v2564
    %v2566 = vpop.f32.mrb[0].mxu0
    %v2567 = vpop.f32.mrb[0].mxu0
    %v2568 = vadd.f32 0.0, %v2567
    %v2569 = vpop.f32.mrb[0].mxu0
    %2570 = vdwg.mxu0
    %v2571 = vmul.f32 %v2541, 0.17677669
    %v2572 = vmul.f32 %v2544, 0.17677669
    %v2573 = vmul.f32 %v2549, 0.17677669
    %v2574 = vmul.f32 %v2552, 0.17677669
    %v2575 = vmul.f32 %v2557, 0.17677669
    %v2576 = vmul.f32 %v2560, 0.17677669
    %v2577 = vmul.f32 %v2565, 0.17677669
    %v2578 = vmul.f32 %v2568, 0.17677669
    %v2579 = vsel %vm1028, %v2571, -inf
    %2580 = vmax.xlane.f32.xlu0 %v2579
    %v2581 = vpop.xlane.xlu0 %2580
    %v2582 = vsel %vm1028, %v2572, -inf
    %2583 = vmax.xlane.f32.xlu0 %v2582
    %v2584 = vpop.xlane.xlu0 %2583
    %v2585 = vsel %vm1028, %v2573, -inf
    %2586 = vmax.xlane.f32.xlu0 %v2585
    %v2587 = vpop.xlane.xlu0 %2586
    %v2588 = vsel %vm1028, %v2574, -inf
    %2589 = vmax.xlane.f32.xlu0 %v2588
    %v2590 = vpop.xlane.xlu0 %2589
    %v2591 = vsel %vm1028, %v2575, -inf
    %2592 = vmax.xlane.f32.xlu0 %v2591
    %v2593 = vpop.xlane.xlu0 %2592
    %v2594 = vsel %vm1028, %v2576, -inf
    %2595 = vmax.xlane.f32.xlu0 %v2594
    %v2596 = vpop.xlane.xlu0 %2595
    %v2597 = vsel %vm1028, %v2577, -inf
    %2598 = vmax.xlane.f32.xlu0 %v2597
    %v2599 = vpop.xlane.xlu0 %2598
    %v2600 = vsel %vm1028, %v2578, -inf
    %2601 = vmax.xlane.f32.xlu0 %v2600
    %v2602 = vpop.xlane.xlu0 %2601
    %v2603 = vsub.f32 %v2571, %v2581
    %v2604 = vsub.f32 %v2572, %v2584
    %v2605 = vsub.f32 %v2573, %v2587
    %v2606 = vsub.f32 %v2574, %v2590
    %v2607 = vsub.f32 %v2575, %v2593
    %v2608 = vsub.f32 %v2576, %v2596
    %v2609 = vsub.f32 %v2577, %v2599
    %v2610 = vsub.f32 %v2578, %v2602
    %v2611 = vmul.f32 %v2603, 1.442695
    %v2612 = vpow.pop %v2611
    %v2613 = vmul.f32 %v2604, 1.442695
    %v2614 = vpow.pop %v2613
    %v2615 = vmul.f32 %v2605, 1.442695
    %v2616 = vpow.pop %v2615
    %v2617 = vmul.f32 %v2606, 1.442695
    %v2618 = vpow.pop %v2617
    %v2619 = vmul.f32 %v2607, 1.442695
    %v2620 = vpow.pop %v2619
    %v2621 = vmul.f32 %v2608, 1.442695
    %v2622 = vpow.pop %v2621
    %v2623 = vmul.f32 %v2609, 1.442695
    %v2624 = vpow.pop %v2623
    %v2625 = vmul.f32 %v2610, 1.442695
    %v2626 = vpow.pop %v2625
    %v2627 = vsel %vm1028, %v2612, 0.0
    %2628 = vadd.xlane.f32.xlu0 %v2627
    %v2629 = vpop.xlane.xlu0 %2628
    %v2630 = vsel %vm1028, %v2614, 0.0
    %2631 = vadd.xlane.f32.xlu0 %v2630
    %v2632 = vpop.xlane.xlu0 %2631
    %v2633 = vsel %vm1028, %v2616, 0.0
    %2634 = vadd.xlane.f32.xlu0 %v2633
    %v2635 = vpop.xlane.xlu0 %2634
    %v2636 = vsel %vm1028, %v2618, 0.0
    %2637 = vadd.xlane.f32.xlu0 %v2636
    %v2638 = vpop.xlane.xlu0 %2637
    %v2639 = vsel %vm1028, %v2620, 0.0
    %2640 = vadd.xlane.f32.xlu0 %v2639
    %v2641 = vpop.xlane.xlu0 %2640
    %v2642 = vsel %vm1028, %v2622, 0.0
    %2643 = vadd.xlane.f32.xlu0 %v2642
    %v2644 = vpop.xlane.xlu0 %2643
    %v2645 = vsel %vm1028, %v2624, 0.0
    %2646 = vadd.xlane.f32.xlu0 %v2645
    %v2647 = vpop.xlane.xlu0 %2646
    %v2648 = vsel %vm1028, %v2626, 0.0
    %2649 = vadd.xlane.f32.xlu0 %v2648
    %v2650 = vpop.xlane.xlu0 %2649
    %v2651 = vrcp.pop %v2629
    %v2652 = vrcp.pop %v2632
    %v2653 = vrcp.pop %v2635
    %v2654 = vrcp.pop %v2638
    %v2655 = vrcp.pop %v2641
    %v2656 = vrcp.pop %v2644
    %v2657 = vrcp.pop %v2647
    %v2658 = vrcp.pop %v2650
    %v2659 = vmul.f32 %v2612, %v2651
    %v2660 = vmul.f32 %v2614, %v2652
    %v2661 = vmul.f32 %v2616, %v2653
    %v2662 = vmul.f32 %v2618, %v2654
    %v2663 = vmul.f32 %v2620, %v2655
    %v2664 = vmul.f32 %v2622, %v2656
    %v2665 = vmul.f32 %v2624, %v2657
    %v2666 = vmul.f32 %v2626, %v2658
    %v2667 = vpack.c.bf16 %v2660, %v2659
    %v2668 = vpack.c.bf16 %v2662, %v2661
    %v2669 = vpack.c.bf16 %v2664, %v2663
    %v2670 = vpack.c.bf16 %v2666, %v2665
    %2674 = vrot.lane.b32.xlu0 %v2384, 96
    %v2675 = vpop.permute.xlu0 %2674
    %2676 = vrot.lane.b32.xlu0 %v2385, 96
    %v2677 = vpop.permute.xlu0 %2676
    %2678 = vrot.lane.b32.xlu0 %v2386, 96
    %v2679 = vpop.permute.xlu0 %2678
    %v2684 = vsel %vm1028, %v2667, 0
    %v2687 = vsel %vm1028, %v2668, 0
    %v2690 = vsel %vm1028, %v2669, 0
    %v2693 = vsel %vm1028, %v2670, 0
    %2695 = vmatprep.subr.bf16.mxu0 0
    %2696 = vmatpush1.bf16.msra.mxu0 %v2675
    %2697 = vmatprep.subr.bf16.mxu0 0
    %2698 = vmatpush1.bf16.msra.mxu0 %v2677
    %2699 = vmatprep.subr.bf16.mxu0 0
    %2700 = vmatpush1.bf16.msra.mxu0 %v2679
    %2701 = vmatprep.subr.bf16.mxu0 0
    %2702 = vmatpush1.bf16.msra.mxu0 0
    %2703 = vmatprep.subr.bf16.mxu0 0
    %2704 = vmatpush1.bf16.msra.mxu0 0
    %2705 = vmatprep.subr.bf16.mxu0 0
    %2706 = vmatpush1.bf16.msra.mxu0 0
    %2707 = vmatprep.subr.bf16.mxu0 0
    %2708 = vmatpush1.bf16.msra.mxu0 0
    %2709 = vmatprep.subr.bf16.mxu0 0
    %2710 = vmatpush1.bf16.msra.mxu0 0
    %2711 = vmatprep.subr.bf16.mxu0 0
    %2712 = vmatpush1.bf16.msra.mxu0 0
    %2713 = vmatprep.subr.bf16.mxu0 0
    %2714 = vmatpush1.bf16.msra.mxu0 0
    %2715 = vmatprep.subr.bf16.mxu0 0
    %2716 = vmatpush1.bf16.msra.mxu0 0
    %2717 = vmatprep.subr.bf16.mxu0 0
    %2718 = vmatpush1.bf16.msra.mxu0 0
    %2719 = vmatprep.subr.bf16.mxu0 0
    %2720 = vmatpush1.bf16.msra.mxu0 0
    %2721 = vmatprep.subr.bf16.mxu0 0
    %2722 = vmatpush1.bf16.msra.mxu0 0
    %2723 = vmatprep.subr.bf16.mxu0 0
    %2724 = vmatpush1.bf16.msra.mxu0 0
    %2725 = vmatprep.subr.bf16.mxu0 0
    %2726 = vmatpush1.bf16.msra.mxu0 0
    %2727 = vmatprep.mubr.bf16.mxu0 0
    %2728 = vmatmul.mubr.bf16.gmra.mrb[0].mxu0 %v2684
    %v2729 = vpop.f32.mrb[0].mxu0
    %v2730 = vadd.f32 0.0, %v2729
    %v2731 = vpop.f32.mrb[0].mxu0
    %v2732 = vpop.f32.mrb[0].mxu0
    %v2733 = vadd.f32 0.0, %v2732
    %v2734 = vpop.f32.mrb[0].mxu0
    %2735 = vmatprep.mubr.bf16.mxu0 0
    %2736 = vmatmul.mubr.bf16.gmra.mrb[0].mxu0 %v2687
    %v2737 = vpop.f32.mrb[0].mxu0
    %v2738 = vadd.f32 0.0, %v2737
    %v2739 = vpop.f32.mrb[0].mxu0
    %v2740 = vpop.f32.mrb[0].mxu0
    %v2741 = vadd.f32 0.0, %v2740
    %v2742 = vpop.f32.mrb[0].mxu0
    %2743 = vmatprep.mubr.bf16.mxu0 0
    %2744 = vmatmul.mubr.bf16.gmra.mrb[0].mxu0 %v2690
    %v2745 = vpop.f32.mrb[0].mxu0
    %v2746 = vadd.f32 0.0, %v2745
    %v2747 = vpop.f32.mrb[0].mxu0
    %v2748 = vpop.f32.mrb[0].mxu0
    %v2749 = vadd.f32 0.0, %v2748
    %v2750 = vpop.f32.mrb[0].mxu0
    %2751 = vmatprep.mubr.bf16.mxu0 0
    %2752 = vmatmul.mubr.bf16.gmra.mrb[0].mxu0 %v2693
    %v2753 = vpop.f32.mrb[0].mxu0
    %v2754 = vadd.f32 0.0, %v2753
    %v2755 = vpop.f32.mrb[0].mxu0
    %v2756 = vpop.f32.mrb[0].mxu0
    %v2757 = vadd.f32 0.0, %v2756
    %v2758 = vpop.f32.mrb[0].mxu0
    %2759 = vdwg.mxu0
    %2760 = vrot.lane.b32.xlu0 %v2191, 64
    %v2761 = vpop.permute.xlu0 %2760
    %2762 = vrot.lane.b32.xlu0 %v2192, 64
    %v2763 = vpop.permute.xlu0 %2762
    %2764 = vrot.lane.b32.xlu0 %v2193, 64
    %v2765 = vpop.permute.xlu0 %2764
    %2766 = vrot.lane.b32.xlu0 %v2194, 64
    %v2767 = vpop.permute.xlu0 %2766
    %2768 = vrot.lane.b32.xlu0 %v2195, 64
    %v2769 = vpop.permute.xlu0 %2768
    %2770 = vrot.lane.b32.xlu0 %v2196, 64
    %v2771 = vpop.permute.xlu0 %2770
    %2772 = vrot.lane.b32.xlu0 %v2197, 64
    %v2773 = vpop.permute.xlu0 %2772
    %v2775 = vsel %vm933, %v2761, 0
    %v2778 = vsel %vm933, %v2763, 0
    %v2781 = vsel %vm933, %v2765, 0
    %v2784 = vsel %vm933, %v2767, 0
    %v2787 = vsel %vm933, %v2769, 0
    %v2790 = vsel %vm933, %v2771, 0
    %v2793 = vsel %vm933, %v2773, 0
    %2795 = vmatprep.subr.bf16.mxu0 0
    %2796 = vmatpush1.bf16.xpose.msra.mxu0 %v2787
    %2797 = vmatprep.subr.bf16.mxu0 0
    %2798 = vmatpush1.bf16.xpose.msra.mxu0 %v2790
    %2799 = vmatprep.subr.bf16.mxu0 0
    %2800 = vmatpush1.bf16.xpose.msra.mxu0 %v2793
    %2801 = vmatprep.subr.bf16.mxu0 0
    %2802 = vmatpush1.bf16.xpose.msra.mxu0 0
    %2803 = vmatprep.subr.bf16.mxu0 0
    %2804 = vmatpush1.bf16.xpose.msra.mxu0 0
    %2805 = vmatprep.subr.bf16.mxu0 0
    %2806 = vmatpush1.bf16.xpose.msra.mxu0 0
    %2807 = vmatprep.subr.bf16.mxu0 0
    %2808 = vmatpush1.bf16.xpose.msra.mxu0 0
    %2809 = vmatprep.subr.bf16.mxu0 0
    %2810 = vmatpush1.bf16.xpose.msra.mxu0 0
    %2811 = vmatprep.subr.bf16.mxu0 0
    %2812 = vmatpush1.bf16.xpose.msra.mxu0 0
    %2813 = vmatprep.subr.bf16.mxu0 0
    %2814 = vmatpush1.bf16.xpose.msra.mxu0 0
    %2815 = vmatprep.subr.bf16.mxu0 0
    %2816 = vmatpush1.bf16.xpose.msra.mxu0 0
    %2817 = vmatprep.subr.bf16.mxu0 0
    %2818 = vmatpush1.bf16.xpose.msra.mxu0 0
    %2819 = vmatprep.subr.bf16.mxu0 0
    %2820 = vmatpush1.bf16.xpose.msra.mxu0 0
    %2821 = vmatprep.subr.bf16.mxu0 0
    %2822 = vmatpush1.bf16.xpose.msra.mxu0 0
    %2823 = vmatprep.subr.bf16.mxu0 0
    %2824 = vmatpush1.bf16.xpose.msra.mxu0 0
    %2825 = vmatprep.subr.bf16.mxu0 0
    %2826 = vmatpush1.bf16.xpose.msra.mxu0 0
    %2827 = vmatprep.mubr.bf16.mxu0 0
    %2828 = vmatmul.mubr.bf16.gmra.mrb[0].mxu0 %v2775
    %v2829 = vpop.f32.mrb[0].mxu0
    %v2830 = vadd.f32 0.0, %v2829
    %v2831 = vpop.f32.mrb[0].mxu0
    %v2832 = vpop.f32.mrb[0].mxu0
    %v2833 = vadd.f32 0.0, %v2832
    %v2834 = vpop.f32.mrb[0].mxu0
    %2835 = vmatprep.mubr.bf16.mxu0 0
    %2836 = vmatmul.mubr.bf16.gmra.mrb[0].mxu0 %v2778
    %v2837 = vpop.f32.mrb[0].mxu0
    %v2838 = vadd.f32 0.0, %v2837
    %v2839 = vpop.f32.mrb[0].mxu0
    %v2840 = vpop.f32.mrb[0].mxu0
    %v2841 = vadd.f32 0.0, %v2840
    %v2842 = vpop.f32.mrb[0].mxu0
    %2843 = vmatprep.mubr.bf16.mxu0 0
    %2844 = vmatmul.mubr.bf16.gmra.mrb[0].mxu0 %v2781
    %v2845 = vpop.f32.mrb[0].mxu0
    %v2846 = vadd.f32 0.0, %v2845
    %v2847 = vpop.f32.mrb[0].mxu0
    %v2848 = vpop.f32.mrb[0].mxu0
    %v2849 = vadd.f32 0.0, %v2848
    %v2850 = vpop.f32.mrb[0].mxu0
    %2851 = vmatprep.mubr.bf16.mxu0 0
    %2852 = vmatmul.mubr.bf16.gmra.mrb[0].mxu0 %v2784
    %v2853 = vpop.f32.mrb[0].mxu0
    %v2854 = vadd.f32 0.0, %v2853
    %v2855 = vpop.f32.mrb[0].mxu0
    %v2856 = vpop.f32.mrb[0].mxu0
    %v2857 = vadd.f32 0.0, %v2856
    %v2858 = vpop.f32.mrb[0].mxu0
    %2859 = vdwg.mxu0
    %v2860 = vmul.f32 %v2830, 0.17677669
    %v2861 = vmul.f32 %v2833, 0.17677669
    %v2862 = vmul.f32 %v2838, 0.17677669
    %v2863 = vmul.f32 %v2841, 0.17677669
    %v2864 = vmul.f32 %v2846, 0.17677669
    %v2865 = vmul.f32 %v2849, 0.17677669
    %v2866 = vmul.f32 %v2854, 0.17677669
    %v2867 = vmul.f32 %v2857, 0.17677669
    %v2868 = vsel %vm1028, %v2860, -inf
    %2869 = vmax.xlane.f32.xlu0 %v2868
    %v2870 = vpop.xlane.xlu0 %2869
    %v2871 = vsel %vm1028, %v2861, -inf
    %2872 = vmax.xlane.f32.xlu0 %v2871
    %v2873 = vpop.xlane.xlu0 %2872
    %v2874 = vsel %vm1028, %v2862, -inf
    %2875 = vmax.xlane.f32.xlu0 %v2874
    %v2876 = vpop.xlane.xlu0 %2875
    %v2877 = vsel %vm1028, %v2863, -inf
    %2878 = vmax.xlane.f32.xlu0 %v2877
    %v2879 = vpop.xlane.xlu0 %2878
    %v2880 = vsel %vm1028, %v2864, -inf
    %2881 = vmax.xlane.f32.xlu0 %v2880
    %v2882 = vpop.xlane.xlu0 %2881
    %v2883 = vsel %vm1028, %v2865, -inf
    %2884 = vmax.xlane.f32.xlu0 %v2883
    %v2885 = vpop.xlane.xlu0 %2884
    %v2886 = vsel %vm1028, %v2866, -inf
    %2887 = vmax.xlane.f32.xlu0 %v2886
    %v2888 = vpop.xlane.xlu0 %2887
    %v2889 = vsel %vm1028, %v2867, -inf
    %2890 = vmax.xlane.f32.xlu0 %v2889
    %v2891 = vpop.xlane.xlu0 %2890
    %v2892 = vsub.f32 %v2860, %v2870
    %v2893 = vsub.f32 %v2861, %v2873
    %v2894 = vsub.f32 %v2862, %v2876
    %v2895 = vsub.f32 %v2863, %v2879
    %v2896 = vsub.f32 %v2864, %v2882
    %v2897 = vsub.f32 %v2865, %v2885
    %v2898 = vsub.f32 %v2866, %v2888
    %v2899 = vsub.f32 %v2867, %v2891
    %v2900 = vmul.f32 %v2892, 1.442695
    %v2901 = vpow.pop %v2900
    %v2902 = vmul.f32 %v2893, 1.442695
    %v2903 = vpow.pop %v2902
    %v2904 = vmul.f32 %v2894, 1.442695
    %v2905 = vpow.pop %v2904
    %v2906 = vmul.f32 %v2895, 1.442695
    %v2907 = vpow.pop %v2906
    %v2908 = vmul.f32 %v2896, 1.442695
    %v2909 = vpow.pop %v2908
    %v2910 = vmul.f32 %v2897, 1.442695
    %v2911 = vpow.pop %v2910
    %v2912 = vmul.f32 %v2898, 1.442695
    %v2913 = vpow.pop %v2912
    %v2914 = vmul.f32 %v2899, 1.442695
    %v2915 = vpow.pop %v2914
    %v2916 = vsel %vm1028, %v2901, 0.0
    %2917 = vadd.xlane.f32.xlu0 %v2916
    %v2918 = vpop.xlane.xlu0 %2917
    %v2919 = vsel %vm1028, %v2903, 0.0
    %2920 = vadd.xlane.f32.xlu0 %v2919
    %v2921 = vpop.xlane.xlu0 %2920
    %v2922 = vsel %vm1028, %v2905, 0.0
    %2923 = vadd.xlane.f32.xlu0 %v2922
    %v2924 = vpop.xlane.xlu0 %2923
    %v2925 = vsel %vm1028, %v2907, 0.0
    %2926 = vadd.xlane.f32.xlu0 %v2925
    %v2927 = vpop.xlane.xlu0 %2926
    %v2928 = vsel %vm1028, %v2909, 0.0
    %2929 = vadd.xlane.f32.xlu0 %v2928
    %v2930 = vpop.xlane.xlu0 %2929
    %v2931 = vsel %vm1028, %v2911, 0.0
    %2932 = vadd.xlane.f32.xlu0 %v2931
    %v2933 = vpop.xlane.xlu0 %2932
    %v2934 = vsel %vm1028, %v2913, 0.0
    %2935 = vadd.xlane.f32.xlu0 %v2934
    %v2936 = vpop.xlane.xlu0 %2935
    %v2937 = vsel %vm1028, %v2915, 0.0
    %2938 = vadd.xlane.f32.xlu0 %v2937
    %v2939 = vpop.xlane.xlu0 %2938
    %v2940 = vrcp.pop %v2918
    %v2941 = vrcp.pop %v2921
    %v2942 = vrcp.pop %v2924
    %v2943 = vrcp.pop %v2927
    %v2944 = vrcp.pop %v2930
    %v2945 = vrcp.pop %v2933
    %v2946 = vrcp.pop %v2936
    %v2947 = vrcp.pop %v2939
    %v2948 = vmul.f32 %v2901, %v2940
    %v2949 = vmul.f32 %v2903, %v2941
    %v2950 = vmul.f32 %v2905, %v2942
    %v2951 = vmul.f32 %v2907, %v2943
    %v2952 = vmul.f32 %v2909, %v2944
    %v2953 = vmul.f32 %v2911, %v2945
    %v2954 = vmul.f32 %v2913, %v2946
    %v2955 = vmul.f32 %v2915, %v2947
    %v2956 = vpack.c.bf16 %v2949, %v2948
    %v2957 = vpack.c.bf16 %v2951, %v2950
    %v2958 = vpack.c.bf16 %v2953, %v2952
    %v2959 = vpack.c.bf16 %v2955, %v2954
    %2960 = vrot.lane.b32.xlu0 %v2384, 64
    %v2961 = vpop.permute.xlu0 %2960
    %2962 = vrot.lane.b32.xlu0 %v2385, 64
    %v2963 = vpop.permute.xlu0 %2962
    %2964 = vrot.lane.b32.xlu0 %v2386, 64
    %v2965 = vpop.permute.xlu0 %2964
    %v2970 = vsel %vm1028, %v2956, 0
    %v2973 = vsel %vm1028, %v2957, 0
    %v2976 = vsel %vm1028, %v2958, 0
    %v2979 = vsel %vm1028, %v2959, 0
    %2981 = vmatprep.subr.bf16.mxu0 0
    %2982 = vmatpush1.bf16.msra.mxu0 %v2961
    %2983 = vmatprep.subr.bf16.mxu0 0
    %2984 = vmatpush1.bf16.msra.mxu0 %v2963
    %2985 = vmatprep.subr.bf16.mxu0 0
    %2986 = vmatpush1.bf16.msra.mxu0 %v2965
    %2987 = vmatprep.subr.bf16.mxu0 0
    %2988 = vmatpush1.bf16.msra.mxu0 0
    %2989 = vmatprep.subr.bf16.mxu0 0
    %2990 = vmatpush1.bf16.msra.mxu0 0
    %2991 = vmatprep.subr.bf16.mxu0 0
    %2992 = vmatpush1.bf16.msra.mxu0 0
    %2993 = vmatprep.subr.bf16.mxu0 0
    %2994 = vmatpush1.bf16.msra.mxu0 0
    %2995 = vmatprep.subr.bf16.mxu0 0
    %2996 = vmatpush1.bf16.msra.mxu0 0
    %2997 = vmatprep.subr.bf16.mxu0 0
    %2998 = vmatpush1.bf16.msra.mxu0 0
    %2999 = vmatprep.subr.bf16.mxu0 0
    %3000 = vmatpush1.bf16.msra.mxu0 0
    %3001 = vmatprep.subr.bf16.mxu0 0
    %3002 = vmatpush1.bf16.msra.mxu0 0
    %3003 = vmatprep.subr.bf16.mxu0 0
    %3004 = vmatpush1.bf16.msra.mxu0 0
    %3005 = vmatprep.subr.bf16.mxu0 0
    %3006 = vmatpush1.bf16.msra.mxu0 0
    %3007 = vmatprep.subr.bf16.mxu0 0
    %3008 = vmatpush1.bf16.msra.mxu0 0
    %3009 = vmatprep.subr.bf16.mxu0 0
    %3010 = vmatpush1.bf16.msra.mxu0 0
    %3011 = vmatprep.subr.bf16.mxu0 0
    %3012 = vmatpush1.bf16.msra.mxu0 0
    %3013 = vmatprep.mubr.bf16.mxu0 0
    %3014 = vmatmul.mubr.bf16.gmra.mrb[0].mxu0 %v2970
    %v3015 = vpop.f32.mrb[0].mxu0
    %v3016 = vadd.f32 0.0, %v3015
    %v3017 = vpop.f32.mrb[0].mxu0
    %v3018 = vpop.f32.mrb[0].mxu0
    %v3019 = vadd.f32 0.0, %v3018
    %v3020 = vpop.f32.mrb[0].mxu0
    %3021 = vmatprep.mubr.bf16.mxu0 0
    %3022 = vmatmul.mubr.bf16.gmra.mrb[0].mxu0 %v2973
    %v3023 = vpop.f32.mrb[0].mxu0
    %v3024 = vadd.f32 0.0, %v3023
    %v3025 = vpop.f32.mrb[0].mxu0
    %v3026 = vpop.f32.mrb[0].mxu0
    %v3027 = vadd.f32 0.0, %v3026
    %v3028 = vpop.f32.mrb[0].mxu0
    %3029 = vmatprep.mubr.bf16.mxu0 0
    %3030 = vmatmul.mubr.bf16.gmra.mrb[0].mxu0 %v2976
    %v3031 = vpop.f32.mrb[0].mxu0
    %v3032 = vadd.f32 0.0, %v3031
    %v3033 = vpop.f32.mrb[0].mxu0
    %v3034 = vpop.f32.mrb[0].mxu0
    %v3035 = vadd.f32 0.0, %v3034
    %v3036 = vpop.f32.mrb[0].mxu0
    %3037 = vmatprep.mubr.bf16.mxu0 0
    %3038 = vmatmul.mubr.bf16.gmra.mrb[0].mxu0 %v2979
    %v3039 = vpop.f32.mrb[0].mxu0
    %v3040 = vadd.f32 0.0, %v3039
    %v3041 = vpop.f32.mrb[0].mxu0
    %v3042 = vpop.f32.mrb[0].mxu0
    %v3043 = vadd.f32 0.0, %v3042
    %v3044 = vpop.f32.mrb[0].mxu0
    %3045 = vdwg.mxu0
    %3046 = vrot.lane.b32.xlu0 %v2191, 32
    %v3047 = vpop.permute.xlu0 %3046
    %3048 = vrot.lane.b32.xlu0 %v2192, 32
    %v3049 = vpop.permute.xlu0 %3048
    %3050 = vrot.lane.b32.xlu0 %v2193, 32
    %v3051 = vpop.permute.xlu0 %3050
    %3052 = vrot.lane.b32.xlu0 %v2194, 32
    %v3053 = vpop.permute.xlu0 %3052
    %3054 = vrot.lane.b32.xlu0 %v2195, 32
    %v3055 = vpop.permute.xlu0 %3054
    %3056 = vrot.lane.b32.xlu0 %v2196, 32
    %v3057 = vpop.permute.xlu0 %3056
    %3058 = vrot.lane.b32.xlu0 %v2197, 32
    %v3059 = vpop.permute.xlu0 %3058
    %v3061 = vsel %vm933, %v3047, 0
    %v3064 = vsel %vm933, %v3049, 0
    %v3067 = vsel %vm933, %v3051, 0
    %v3070 = vsel %vm933, %v3053, 0
    %v3073 = vsel %vm933, %v3055, 0
    %v3076 = vsel %vm933, %v3057, 0
    %v3079 = vsel %vm933, %v3059, 0
    %3081 = vmatprep.subr.bf16.mxu0 0
    %3082 = vmatpush1.bf16.xpose.msra.mxu0 %v3073
    %3083 = vmatprep.subr.bf16.mxu0 0
    %3084 = vmatpush1.bf16.xpose.msra.mxu0 %v3076
    %3085 = vmatprep.subr.bf16.mxu0 0
    %3086 = vmatpush1.bf16.xpose.msra.mxu0 %v3079
    %3087 = vmatprep.subr.bf16.mxu0 0
    %3088 = vmatpush1.bf16.xpose.msra.mxu0 0
    %3089 = vmatprep.subr.bf16.mxu0 0
    %3090 = vmatpush1.bf16.xpose.msra.mxu0 0
    %3091 = vmatprep.subr.bf16.mxu0 0
    %3092 = vmatpush1.bf16.xpose.msra.mxu0 0
    %3093 = vmatprep.subr.bf16.mxu0 0
    %3094 = vmatpush1.bf16.xpose.msra.mxu0 0
    %3095 = vmatprep.subr.bf16.mxu0 0
    %3096 = vmatpush1.bf16.xpose.msra.mxu0 0
    %3097 = vmatprep.subr.bf16.mxu0 0
    %3098 = vmatpush1.bf16.xpose.msra.mxu0 0
    %3099 = vmatprep.subr.bf16.mxu0 0
    %3100 = vmatpush1.bf16.xpose.msra.mxu0 0
    %3101 = vmatprep.subr.bf16.mxu0 0
    %3102 = vmatpush1.bf16.xpose.msra.mxu0 0
    %3103 = vmatprep.subr.bf16.mxu0 0
    %3104 = vmatpush1.bf16.xpose.msra.mxu0 0
    %3105 = vmatprep.subr.bf16.mxu0 0
    %3106 = vmatpush1.bf16.xpose.msra.mxu0 0
    %3107 = vmatprep.subr.bf16.mxu0 0
    %3108 = vmatpush1.bf16.xpose.msra.mxu0 0
    %3109 = vmatprep.subr.bf16.mxu0 0
    %3110 = vmatpush1.bf16.xpose.msra.mxu0 0
    %3111 = vmatprep.subr.bf16.mxu0 0
    %3112 = vmatpush1.bf16.xpose.msra.mxu0 0
    %3113 = vmatprep.mubr.bf16.mxu0 0
    %3114 = vmatmul.mubr.bf16.gmra.mrb[0].mxu0 %v3061
    %v3115 = vpop.f32.mrb[0].mxu0
    %v3116 = vadd.f32 0.0, %v3115
    %v3117 = vpop.f32.mrb[0].mxu0
    %v3118 = vpop.f32.mrb[0].mxu0
    %v3119 = vadd.f32 0.0, %v3118
    %v3120 = vpop.f32.mrb[0].mxu0
    %3121 = vmatprep.mubr.bf16.mxu0 0
    %3122 = vmatmul.mubr.bf16.gmra.mrb[0].mxu0 %v3064
    %v3123 = vpop.f32.mrb[0].mxu0
    %v3124 = vadd.f32 0.0, %v3123
    %v3125 = vpop.f32.mrb[0].mxu0
    %v3126 = vpop.f32.mrb[0].mxu0
    %v3127 = vadd.f32 0.0, %v3126
    %v3128 = vpop.f32.mrb[0].mxu0
    %3129 = vmatprep.mubr.bf16.mxu0 0
    %3130 = vmatmul.mubr.bf16.gmra.mrb[0].mxu0 %v3067
    %v3131 = vpop.f32.mrb[0].mxu0
    %v3132 = vadd.f32 0.0, %v3131
    %v3133 = vpop.f32.mrb[0].mxu0
    %v3134 = vpop.f32.mrb[0].mxu0
    %v3135 = vadd.f32 0.0, %v3134
    %v3136 = vpop.f32.mrb[0].mxu0
    %3137 = vmatprep.mubr.bf16.mxu0 0
    %3138 = vmatmul.mubr.bf16.gmra.mrb[0].mxu0 %v3070
    %v3139 = vpop.f32.mrb[0].mxu0
    %v3140 = vadd.f32 0.0, %v3139
    %v3141 = vpop.f32.mrb[0].mxu0
    %v3142 = vpop.f32.mrb[0].mxu0
    %v3143 = vadd.f32 0.0, %v3142
    %v3144 = vpop.f32.mrb[0].mxu0
    %3145 = vdwg.mxu0
    %v3146 = vmul.f32 %v3116, 0.17677669
    %v3147 = vmul.f32 %v3119, 0.17677669
    %v3148 = vmul.f32 %v3124, 0.17677669
    %v3149 = vmul.f32 %v3127, 0.17677669
    %v3150 = vmul.f32 %v3132, 0.17677669
    %v3151 = vmul.f32 %v3135, 0.17677669
    %v3152 = vmul.f32 %v3140, 0.17677669
    %v3153 = vmul.f32 %v3143, 0.17677669
    %v3154 = vsel %vm1028, %v3146, -inf
    %3155 = vmax.xlane.f32.xlu0 %v3154
    %v3156 = vpop.xlane.xlu0 %3155
    %v3157 = vsel %vm1028, %v3147, -inf
    %3158 = vmax.xlane.f32.xlu0 %v3157
    %v3159 = vpop.xlane.xlu0 %3158
    %v3160 = vsel %vm1028, %v3148, -inf
    %3161 = vmax.xlane.f32.xlu0 %v3160
    %v3162 = vpop.xlane.xlu0 %3161
    %v3163 = vsel %vm1028, %v3149, -inf
    %3164 = vmax.xlane.f32.xlu0 %v3163
    %v3165 = vpop.xlane.xlu0 %3164
    %v3166 = vsel %vm1028, %v3150, -inf
    %3167 = vmax.xlane.f32.xlu0 %v3166
    %v3168 = vpop.xlane.xlu0 %3167
    %v3169 = vsel %vm1028, %v3151, -inf
    %3170 = vmax.xlane.f32.xlu0 %v3169
    %v3171 = vpop.xlane.xlu0 %3170
    %v3172 = vsel %vm1028, %v3152, -inf
    %3173 = vmax.xlane.f32.xlu0 %v3172
    %v3174 = vpop.xlane.xlu0 %3173
    %v3175 = vsel %vm1028, %v3153, -inf
    %3176 = vmax.xlane.f32.xlu0 %v3175
    %v3177 = vpop.xlane.xlu0 %3176
    %v3178 = vsub.f32 %v3146, %v3156
    %v3179 = vsub.f32 %v3147, %v3159
    %v3180 = vsub.f32 %v3148, %v3162
    %v3181 = vsub.f32 %v3149, %v3165
    %v3182 = vsub.f32 %v3150, %v3168
    %v3183 = vsub.f32 %v3151, %v3171
    %v3184 = vsub.f32 %v3152, %v3174
    %v3185 = vsub.f32 %v3153, %v3177
    %v3186 = vmul.f32 %v3178, 1.442695
    %v3187 = vpow.pop %v3186
    %v3188 = vmul.f32 %v3179, 1.442695
    %v3189 = vpow.pop %v3188
    %v3190 = vmul.f32 %v3180, 1.442695
    %v3191 = vpow.pop %v3190
    %v3192 = vmul.f32 %v3181, 1.442695
    %v3193 = vpow.pop %v3192
    %v3194 = vmul.f32 %v3182, 1.442695
    %v3195 = vpow.pop %v3194
    %v3196 = vmul.f32 %v3183, 1.442695
    %v3197 = vpow.pop %v3196
    %v3198 = vmul.f32 %v3184, 1.442695
    %v3199 = vpow.pop %v3198
    %v3200 = vmul.f32 %v3185, 1.442695
    %v3201 = vpow.pop %v3200
    %v3202 = vsel %vm1028, %v3187, 0.0
    %3203 = vadd.xlane.f32.xlu0 %v3202
    %v3204 = vpop.xlane.xlu0 %3203
    %v3205 = vsel %vm1028, %v3189, 0.0
    %3206 = vadd.xlane.f32.xlu0 %v3205
    %v3207 = vpop.xlane.xlu0 %3206
    %v3208 = vsel %vm1028, %v3191, 0.0
    %3209 = vadd.xlane.f32.xlu0 %v3208
    %v3210 = vpop.xlane.xlu0 %3209
    %v3211 = vsel %vm1028, %v3193, 0.0
    %3212 = vadd.xlane.f32.xlu0 %v3211
    %v3213 = vpop.xlane.xlu0 %3212
    %v3214 = vsel %vm1028, %v3195, 0.0
    %3215 = vadd.xlane.f32.xlu0 %v3214
    %v3216 = vpop.xlane.xlu0 %3215
    %v3217 = vsel %vm1028, %v3197, 0.0
    %3218 = vadd.xlane.f32.xlu0 %v3217
    %v3219 = vpop.xlane.xlu0 %3218
    %v3220 = vsel %vm1028, %v3199, 0.0
    %3221 = vadd.xlane.f32.xlu0 %v3220
    %v3222 = vpop.xlane.xlu0 %3221
    %v3223 = vsel %vm1028, %v3201, 0.0
    %3224 = vadd.xlane.f32.xlu0 %v3223
    %v3225 = vpop.xlane.xlu0 %3224
    %v3226 = vrcp.pop %v3204
    %v3227 = vrcp.pop %v3207
    %v3228 = vrcp.pop %v3210
    %v3229 = vrcp.pop %v3213
    %v3230 = vrcp.pop %v3216
    %v3231 = vrcp.pop %v3219
    %v3232 = vrcp.pop %v3222
    %v3233 = vrcp.pop %v3225
    %v3234 = vmul.f32 %v3187, %v3226
    %v3235 = vmul.f32 %v3189, %v3227
    %v3236 = vmul.f32 %v3191, %v3228
    %v3237 = vmul.f32 %v3193, %v3229
    %v3238 = vmul.f32 %v3195, %v3230
    %v3239 = vmul.f32 %v3197, %v3231
    %v3240 = vmul.f32 %v3199, %v3232
    %v3241 = vmul.f32 %v3201, %v3233
    %v3242 = vpack.c.bf16 %v3235, %v3234
    %v3243 = vpack.c.bf16 %v3237, %v3236
    %v3244 = vpack.c.bf16 %v3239, %v3238
    %v3245 = vpack.c.bf16 %v3241, %v3240
    %3246 = vrot.lane.b32.xlu0 %v2384, 32
    %v3247 = vpop.permute.xlu0 %3246
    %3248 = vrot.lane.b32.xlu0 %v2385, 32
    %v3249 = vpop.permute.xlu0 %3248
    %3250 = vrot.lane.b32.xlu0 %v2386, 32
    %v3251 = vpop.permute.xlu0 %3250
    %v3256 = vsel %vm1028, %v3242, 0
    %v3259 = vsel %vm1028, %v3243, 0
    %v3262 = vsel %vm1028, %v3244, 0
    %v3265 = vsel %vm1028, %v3245, 0
    %3267 = vmatprep.subr.bf16.mxu0 0
    %3268 = vmatpush1.bf16.msra.mxu0 %v3247
    %3269 = vmatprep.subr.bf16.mxu0 0
    %3270 = vmatpush1.bf16.msra.mxu0 %v3249
    %3271 = vmatprep.subr.bf16.mxu0 0
    %3272 = vmatpush1.bf16.msra.mxu0 %v3251
    %3273 = vmatprep.subr.bf16.mxu0 0
    %3274 = vmatpush1.bf16.msra.mxu0 0
    %3275 = vmatprep.subr.bf16.mxu0 0
    %3276 = vmatpush1.bf16.msra.mxu0 0
    %3277 = vmatprep.subr.bf16.mxu0 0
    %3278 = vmatpush1.bf16.msra.mxu0 0
    %3279 = vmatprep.subr.bf16.mxu0 0
    %3280 = vmatpush1.bf16.msra.mxu0 0
    %3281 = vmatprep.subr.bf16.mxu0 0
    %3282 = vmatpush1.bf16.msra.mxu0 0
    %3283 = vmatprep.subr.bf16.mxu0 0
    %3284 = vmatpush1.bf16.msra.mxu0 0
    %3285 = vmatprep.subr.bf16.mxu0 0
    %3286 = vmatpush1.bf16.msra.mxu0 0
    %3287 = vmatprep.subr.bf16.mxu0 0
    %3288 = vmatpush1.bf16.msra.mxu0 0
    %3289 = vmatprep.subr.bf16.mxu0 0
    %3290 = vmatpush1.bf16.msra.mxu0 0
    %3291 = vmatprep.subr.bf16.mxu0 0
    %3292 = vmatpush1.bf16.msra.mxu0 0
    %3293 = vmatprep.subr.bf16.mxu0 0
    %3294 = vmatpush1.bf16.msra.mxu0 0
    %3295 = vmatprep.subr.bf16.mxu0 0
    %3296 = vmatpush1.bf16.msra.mxu0 0
    %3297 = vmatprep.subr.bf16.mxu0 0
    %3298 = vmatpush1.bf16.msra.mxu0 0
    %3299 = vmatprep.mubr.bf16.mxu0 0
    %3300 = vmatmul.mubr.bf16.gmra.mrb[0].mxu0 %v3256
    %v3301 = vpop.f32.mrb[0].mxu0
    %v3302 = vadd.f32 0.0, %v3301
    %v3303 = vpop.f32.mrb[0].mxu0
    %v3304 = vpop.f32.mrb[0].mxu0
    %v3305 = vadd.f32 0.0, %v3304
    %v3306 = vpop.f32.mrb[0].mxu0
    %3307 = vmatprep.mubr.bf16.mxu0 0
    %3308 = vmatmul.mubr.bf16.gmra.mrb[0].mxu0 %v3259
    %v3309 = vpop.f32.mrb[0].mxu0
    %v3310 = vadd.f32 0.0, %v3309
    %v3311 = vpop.f32.mrb[0].mxu0
    %v3312 = vpop.f32.mrb[0].mxu0
    %v3313 = vadd.f32 0.0, %v3312
    %v3314 = vpop.f32.mrb[0].mxu0
    %3315 = vmatprep.mubr.bf16.mxu0 0
    %3316 = vmatmul.mubr.bf16.gmra.mrb[0].mxu0 %v3262
    %v3317 = vpop.f32.mrb[0].mxu0
    %v3318 = vadd.f32 0.0, %v3317
    %v3319 = vpop.f32.mrb[0].mxu0
    %v3320 = vpop.f32.mrb[0].mxu0
    %v3321 = vadd.f32 0.0, %v3320
    %v3322 = vpop.f32.mrb[0].mxu0
    %3323 = vmatprep.mubr.bf16.mxu0 0
    %3324 = vmatmul.mubr.bf16.gmra.mrb[0].mxu0 %v3265
    %v3325 = vpop.f32.mrb[0].mxu0
    %v3326 = vadd.f32 0.0, %v3325
    %v3327 = vpop.f32.mrb[0].mxu0
    %v3328 = vpop.f32.mrb[0].mxu0
    %v3329 = vadd.f32 0.0, %v3328
    %v3330 = vpop.f32.mrb[0].mxu0
    %3331 = vdwg.mxu0
    %3340 = vrot.lane.b32.xlu0 %v2730, 32
    %v3341 = vpop.permute.xlu0 %3340
    %3342 = vrot.lane.b32.xlu0 %v2733, 32
    %v3343 = vpop.permute.xlu0 %3342
    %3344 = vrot.lane.b32.xlu0 %v2738, 32
    %v3345 = vpop.permute.xlu0 %3344
    %3346 = vrot.lane.b32.xlu0 %v2741, 32
    %v3347 = vpop.permute.xlu0 %3346
    %3348 = vrot.lane.b32.xlu0 %v2746, 32
    %v3349 = vpop.permute.xlu0 %3348
    %3350 = vrot.lane.b32.xlu0 %v2749, 32
    %v3351 = vpop.permute.xlu0 %3350
    %3352 = vrot.lane.b32.xlu0 %v2754, 32
    %v3353 = vpop.permute.xlu0 %3352
    %3354 = vrot.lane.b32.xlu0 %v2757, 32
    %v3355 = vpop.permute.xlu0 %3354
    %3372 = vrot.lane.b32.xlu0 %v3016, 64
    %v3373 = vpop.permute.xlu0 %3372
    %3374 = vrot.lane.b32.xlu0 %v3019, 64
    %v3375 = vpop.permute.xlu0 %3374
    %3376 = vrot.lane.b32.xlu0 %v3024, 64
    %v3377 = vpop.permute.xlu0 %3376
    %3378 = vrot.lane.b32.xlu0 %v3027, 64
    %v3379 = vpop.permute.xlu0 %3378
    %3380 = vrot.lane.b32.xlu0 %v3032, 64
    %v3381 = vpop.permute.xlu0 %3380
    %3382 = vrot.lane.b32.xlu0 %v3035, 64
    %v3383 = vpop.permute.xlu0 %3382
    %3384 = vrot.lane.b32.xlu0 %v3040, 64
    %v3385 = vpop.permute.xlu0 %3384
    %3386 = vrot.lane.b32.xlu0 %v3043, 64
    %v3387 = vpop.permute.xlu0 %3386
    %3404 = vrot.lane.b32.xlu0 %v3302, 96
    %v3405 = vpop.permute.xlu0 %3404
    %3406 = vrot.lane.b32.xlu0 %v3305, 96
    %v3407 = vpop.permute.xlu0 %3406
    %3408 = vrot.lane.b32.xlu0 %v3310, 96
    %v3409 = vpop.permute.xlu0 %3408
    %3410 = vrot.lane.b32.xlu0 %v3313, 96
    %v3411 = vpop.permute.xlu0 %3410
    %3412 = vrot.lane.b32.xlu0 %v3318, 96
    %v3413 = vpop.permute.xlu0 %3412
    %3414 = vrot.lane.b32.xlu0 %v3321, 96
    %v3415 = vpop.permute.xlu0 %3414
    %3416 = vrot.lane.b32.xlu0 %v3326, 96
    %v3417 = vpop.permute.xlu0 %3416
    %3418 = vrot.lane.b32.xlu0 %v3329, 96
    %v3419 = vpop.permute.xlu0 %3418
    %v3428 = vsel %vm933, %v2434, %v3341
    %v3429 = vsel %vm933, %v2437, %v3343
    %v3430 = vsel %vm933, %v2442, %v3345
    %v3431 = vsel %vm933, %v2445, %v3347
    %v3432 = vsel %vm933, %v2450, %v3349
    %v3433 = vsel %vm933, %v2453, %v3351
    %v3434 = vsel %vm933, %v2458, %v3353
    %v3435 = vsel %vm933, %v2461, %v3355
    %v3436 = vsel %vm2173, %v3428, %v3373
    %v3437 = vsel %vm2173, %v3429, %v3375
    %v3438 = vsel %vm2173, %v3430, %v3377
    %v3439 = vsel %vm2173, %v3431, %v3379
    %v3440 = vsel %vm2173, %v3432, %v3381
    %v3441 = vsel %vm2173, %v3433, %v3383
    %v3442 = vsel %vm2173, %v3434, %v3385
    %v3443 = vsel %vm2173, %v3435, %v3387
    %v3444 = vsel %vm2182, %v3436, %v3405
    %v3445 = vsel %vm2182, %v3437, %v3407
    %v3446 = vsel %vm2182, %v3438, %v3409
    %v3447 = vsel %vm2182, %v3439, %v3411
    %v3448 = vsel %vm2182, %v3440, %v3413
    %v3449 = vsel %vm2182, %v3441, %v3415
    %v3450 = vsel %vm2182, %v3442, %v3417
    %v3451 = vsel %vm2182, %v3443, %v3419
    %v3452 = vpack.c.bf16 %v2184, %v2183
    %v3453 = vpack.c.bf16 %v2186, %v2185
    %v3454 = vpack.c.bf16 %v2188, %v2187
    %v3455 = vpack.c.bf16 %v2190, %v2189
    %v3456 = vpack.c.bf16 %v3445, %v3444
    %v3457 = vpack.c.bf16 %v3447, %v3446
    %v3458 = vpack.c.bf16 %v3449, %v3448
    %v3459 = vpack.c.bf16 %v3451, %v3450
    %v3460 = vld [vmem:[#allocation10] sm:$0xf]
    %v3461 = vld [vmem:[#allocation10 + $0x4] sm:$0xf]
    %v3462 = vld [vmem:[#allocation10 + $0x8] sm:$0xf]
    %v3463 = vld [vmem:[#allocation10 + $0xc] sm:$0xf]
    %v3464 = vld [vmem:[#allocation10 + $0x10] sm:$0xf]
    %v3465 = vld [vmem:[#allocation10 + $0x14] sm:$0xf]
    %v3466 = vld [vmem:[#allocation10 + $0x18] sm:$0xf]
    %v3467 = vld [vmem:[#allocation10 + $0x1c] sm:$0xf]
    %v3468 = vld [vmem:[#allocation10 + $0x20] sm:$0xf]
    %v3469 = vld [vmem:[#allocation10 + $0x24] sm:$0xf]
    %v3470 = vld [vmem:[#allocation10 + $0x28] sm:$0xf]
    %v3471 = vld [vmem:[#allocation10 + $0x2c] sm:$0xf]
    %v3472 = vld [vmem:[#allocation10 + $0x30] sm:$0xf]
    %v3473 = vld [vmem:[#allocation10 + $0x34] sm:$0xf]
    %v3474 = vld [vmem:[#allocation10 + $0x38] sm:$0xf]
    %v3475 = vld [vmem:[#allocation10 + $0x3c] sm:$0xf]
    %v3492 = vunpack.c.l.b16 %v3460
    %v3493 = vunpack.c.l.b16 %v3461
    %v3494 = vunpack.c.l.b16 %v3462
    %v3495 = vunpack.c.l.b16 %v3463
    %v3496 = vunpack.c.l.b16 %v3464
    %v3497 = vunpack.c.l.b16 %v3465
    %v3498 = vunpack.c.l.b16 %v3466
    %v3499 = vunpack.c.l.b16 %v3467
    %v3500 = vunpack.c.l.b16 %v3468
    %v3501 = vunpack.c.l.b16 %v3469
    %v3502 = vunpack.c.l.b16 %v3470
    %v3503 = vunpack.c.l.b16 %v3471
    %v3504 = vunpack.c.l.b16 %v3472
    %v3505 = vunpack.c.l.b16 %v3473
    %v3506 = vunpack.c.l.b16 %v3474
    %v3507 = vunpack.c.l.b16 %v3475
    %v3508 = vpack.c.b16 %v3493, %v3492
    %v3509 = vpack.c.b16 %v3495, %v3494
    %v3510 = vpack.c.b16 %v3497, %v3496
    %v3511 = vpack.c.b16 %v3499, %v3498
    %v3512 = vpack.c.b16 %v3501, %v3500
    %v3513 = vpack.c.b16 %v3503, %v3502
    %v3514 = vpack.c.b16 %v3505, %v3504
    %v3515 = vpack.c.b16 %v3507, %v3506
    %3524 = vmatprep.subr.bf16.mxu0 0
    %3525 = vmatpush1.bf16.msra.mxu0 %v3508
    %3526 = vmatprep.subr.bf16.mxu0 0
    %3527 = vmatpush1.bf16.msra.mxu0 %v3509
    %3528 = vmatprep.subr.bf16.mxu0 0
    %3529 = vmatpush1.bf16.msra.mxu0 %v3510
    %3530 = vmatprep.subr.bf16.mxu0 0
    %3531 = vmatpush1.bf16.msra.mxu0 %v3511
    %3532 = vmatprep.subr.bf16.mxu0 0
    %3533 = vmatpush1.bf16.msra.mxu0 %v3512
    %3534 = vmatprep.subr.bf16.mxu0 0
    %3535 = vmatpush1.bf16.msra.mxu0 %v3513
    %3536 = vmatprep.subr.bf16.mxu0 0
    %3537 = vmatpush1.bf16.msra.mxu0 %v3514
    %3538 = vmatprep.subr.bf16.mxu0 0
    %3539 = vmatpush1.bf16.msra.mxu0 %v3515
    %3540 = vmatprep.subr.bf16.mxu0 0
    %3541 = vmatpush1.bf16.msra.mxu0 0
    %3542 = vmatprep.subr.bf16.mxu0 0
    %3543 = vmatpush1.bf16.msra.mxu0 0
    %3544 = vmatprep.subr.bf16.mxu0 0
    %3545 = vmatpush1.bf16.msra.mxu0 0
    %3546 = vmatprep.subr.bf16.mxu0 0
    %3547 = vmatpush1.bf16.msra.mxu0 0
    %3548 = vmatprep.subr.bf16.mxu0 0
    %3549 = vmatpush1.bf16.msra.mxu0 0
    %3550 = vmatprep.subr.bf16.mxu0 0
    %3551 = vmatpush1.bf16.msra.mxu0 0
    %3552 = vmatprep.subr.bf16.mxu0 0
    %3553 = vmatpush1.bf16.msra.mxu0 0
    %3554 = vmatprep.subr.bf16.mxu0 0
    %3555 = vmatpush1.bf16.msra.mxu0 0
    %3556 = vmatprep.mubr.bf16.mxu0 0
    %3557 = vmatmul.mubr.bf16.gmra.mrb[0].mxu0 %v3452
    %v3558 = vpop.f32.mrb[0].mxu0
    %v3559 = vadd.f32 0.0, %v3558
    %v3560 = vpop.f32.mrb[0].mxu0
    %v3561 = vpop.f32.mrb[0].mxu0
    %v3562 = vadd.f32 0.0, %v3561
    %v3563 = vpop.f32.mrb[0].mxu0
    %3564 = vmatprep.mubr.bf16.mxu0 0
    %3565 = vmatmul.mubr.bf16.gmra.mrb[0].mxu0 %v3453
    %v3566 = vpop.f32.mrb[0].mxu0
    %v3567 = vadd.f32 0.0, %v3566
    %v3568 = vpop.f32.mrb[0].mxu0
    %v3569 = vpop.f32.mrb[0].mxu0
    %v3570 = vadd.f32 0.0, %v3569
    %v3571 = vpop.f32.mrb[0].mxu0
    %3572 = vmatprep.mubr.bf16.mxu0 0
    %3573 = vmatmul.mubr.bf16.gmra.mrb[0].mxu0 %v3454
    %v3574 = vpop.f32.mrb[0].mxu0
    %v3575 = vadd.f32 0.0, %v3574
    %v3576 = vpop.f32.mrb[0].mxu0
    %v3577 = vpop.f32.mrb[0].mxu0
    %v3578 = vadd.f32 0.0, %v3577
    %v3579 = vpop.f32.mrb[0].mxu0
    %3580 = vmatprep.mubr.bf16.mxu0 0
    %3581 = vmatmul.mubr.bf16.gmra.mrb[0].mxu0 %v3455
    %v3582 = vpop.f32.mrb[0].mxu0
    %v3583 = vadd.f32 0.0, %v3582
    %v3584 = vpop.f32.mrb[0].mxu0
    %v3585 = vpop.f32.mrb[0].mxu0
    %v3586 = vadd.f32 0.0, %v3585
    %v3587 = vpop.f32.mrb[0].mxu0
    %3588 = vmatprep.mubr.bf16.mxu0 0
    %3589 = vmatmul.mubr.bf16.gmra.mrb[0].mxu0 %v3456
    %v3590 = vpop.f32.mrb[0].mxu0
    %v3591 = vadd.f32 0.0, %v3590
    %v3592 = vpop.f32.mrb[0].mxu0
    %v3593 = vpop.f32.mrb[0].mxu0
    %v3594 = vadd.f32 0.0, %v3593
    %v3595 = vpop.f32.mrb[0].mxu0
    %3596 = vmatprep.mubr.bf16.mxu0 0
    %3597 = vmatmul.mubr.bf16.gmra.mrb[0].mxu0 %v3457
    %v3598 = vpop.f32.mrb[0].mxu0
    %v3599 = vadd.f32 0.0, %v3598
    %v3600 = vpop.f32.mrb[0].mxu0
    %v3601 = vpop.f32.mrb[0].mxu0
    %v3602 = vadd.f32 0.0, %v3601
    %v3603 = vpop.f32.mrb[0].mxu0
    %3604 = vmatprep.mubr.bf16.mxu0 0
    %3605 = vmatmul.mubr.bf16.gmra.mrb[0].mxu0 %v3458
    %v3606 = vpop.f32.mrb[0].mxu0
    %v3607 = vadd.f32 0.0, %v3606
    %v3608 = vpop.f32.mrb[0].mxu0
    %v3609 = vpop.f32.mrb[0].mxu0
    %v3610 = vadd.f32 0.0, %v3609
    %v3611 = vpop.f32.mrb[0].mxu0
    %3612 = vmatprep.mubr.bf16.mxu0 0
    %3613 = vmatmul.mubr.bf16.gmra.mrb[0].mxu0 %v3459
    %v3614 = vpop.f32.mrb[0].mxu0
    %v3615 = vadd.f32 0.0, %v3614
    %v3616 = vpop.f32.mrb[0].mxu0
    %v3617 = vpop.f32.mrb[0].mxu0
    %v3618 = vadd.f32 0.0, %v3617
    %v3619 = vpop.f32.mrb[0].mxu0
    %3620 = vdwg.mxu0
    %v3621 = vadd.f32 %v141, %v3559
    %v3622 = vadd.f32 %v142, %v3562
    %v3623 = vadd.f32 %v143, %v3567
    %v3624 = vadd.f32 %v144, %v3570
    %v3625 = vadd.f32 %v145, %v3575
    %v3626 = vadd.f32 %v146, %v3578
    %v3627 = vadd.f32 %v147, %v3583
    %v3628 = vadd.f32 %v148, %v3586
    %v3629 = vadd.f32 %v149, %v3591
    %v3630 = vadd.f32 %v150, %v3594
    %v3631 = vadd.f32 %v151, %v3599
    %v3632 = vadd.f32 %v152, %v3602
    %v3633 = vadd.f32 %v153, %v3607
    %v3634 = vadd.f32 %v154, %v3610
    %v3635 = vadd.f32 %v155, %v3615
    %v3636 = vadd.f32 %v156, %v3618
    %v3637 = vld [vmem:[%s11] sm:$0x1]
    %v3638 = vld [vmem:[%s12] sm:$0x1]
    %3639 = vadd.xlane.f32.xlu0 %v3621
    %v3640 = vpop.xlane.xlu0 %3639
    %3641 = vadd.xlane.f32.xlu0 %v3622
    %v3642 = vpop.xlane.xlu0 %3641
    %3643 = vadd.xlane.f32.xlu0 %v3623
    %v3644 = vpop.xlane.xlu0 %3643
    %3645 = vadd.xlane.f32.xlu0 %v3624
    %v3646 = vpop.xlane.xlu0 %3645
    %3647 = vadd.xlane.f32.xlu0 %v3625
    %v3648 = vpop.xlane.xlu0 %3647
    %3649 = vadd.xlane.f32.xlu0 %v3626
    %v3650 = vpop.xlane.xlu0 %3649
    %3651 = vadd.xlane.f32.xlu0 %v3627
    %v3652 = vpop.xlane.xlu0 %3651
    %3653 = vadd.xlane.f32.xlu0 %v3628
    %v3654 = vpop.xlane.xlu0 %3653
    %3655 = vadd.xlane.f32.xlu0 %v3629
    %v3656 = vpop.xlane.xlu0 %3655
    %3657 = vadd.xlane.f32.xlu0 %v3630
    %v3658 = vpop.xlane.xlu0 %3657
    %3659 = vadd.xlane.f32.xlu0 %v3631
    %v3660 = vpop.xlane.xlu0 %3659
    %3661 = vadd.xlane.f32.xlu0 %v3632
    %v3662 = vpop.xlane.xlu0 %3661
    %3663 = vadd.xlane.f32.xlu0 %v3633
    %v3664 = vpop.xlane.xlu0 %3663
    %3665 = vadd.xlane.f32.xlu0 %v3634
    %v3666 = vpop.xlane.xlu0 %3665
    %3667 = vadd.xlane.f32.xlu0 %v3635
    %v3668 = vpop.xlane.xlu0 %3667
    %3669 = vadd.xlane.f32.xlu0 %v3636
    %v3670 = vpop.xlane.xlu0 %3669
    %v3671 = vmul.f32 %v3640, %v203
    %v3672 = vmul.f32 %v3642, %v203
    %v3673 = vmul.f32 %v3644, %v203
    %v3674 = vmul.f32 %v3646, %v203
    %v3675 = vmul.f32 %v3648, %v203
    %v3676 = vmul.f32 %v3650, %v203
    %v3677 = vmul.f32 %v3652, %v203
    %v3678 = vmul.f32 %v3654, %v203
    %v3679 = vmul.f32 %v3656, %v203
    %v3680 = vmul.f32 %v3658, %v203
    %v3681 = vmul.f32 %v3660, %v203
    %v3682 = vmul.f32 %v3662, %v203
    %v3683 = vmul.f32 %v3664, %v203
    %v3684 = vmul.f32 %v3666, %v203
    %v3685 = vmul.f32 %v3668, %v203
    %v3686 = vmul.f32 %v3670, %v203
    %v3687 = vsub.f32 %v3621, %v3671
    %v3688 = vsub.f32 %v3622, %v3672
    %v3689 = vsub.f32 %v3623, %v3673
    %v3690 = vsub.f32 %v3624, %v3674
    %v3691 = vsub.f32 %v3625, %v3675
    %v3692 = vsub.f32 %v3626, %v3676
    %v3693 = vsub.f32 %v3627, %v3677
    %v3694 = vsub.f32 %v3628, %v3678
    %v3695 = vsub.f32 %v3629, %v3679
    %v3696 = vsub.f32 %v3630, %v3680
    %v3697 = vsub.f32 %v3631, %v3681
    %v3698 = vsub.f32 %v3632, %v3682
    %v3699 = vsub.f32 %v3633, %v3683
    %v3700 = vsub.f32 %v3634, %v3684
    %v3701 = vsub.f32 %v3635, %v3685
    %v3702 = vsub.f32 %v3636, %v3686
    %v3703 = vmul.f32 %v3687, %v3687
    %v3704 = vmul.f32 %v3688, %v3688
    %v3705 = vmul.f32 %v3689, %v3689
    %v3706 = vmul.f32 %v3690, %v3690
    %v3707 = vmul.f32 %v3691, %v3691
    %v3708 = vmul.f32 %v3692, %v3692
    %v3709 = vmul.f32 %v3693, %v3693
    %v3710 = vmul.f32 %v3694, %v3694
    %v3711 = vmul.f32 %v3695, %v3695
    %v3712 = vmul.f32 %v3696, %v3696
    %v3713 = vmul.f32 %v3697, %v3697
    %v3714 = vmul.f32 %v3698, %v3698
    %v3715 = vmul.f32 %v3699, %v3699
    %v3716 = vmul.f32 %v3700, %v3700
    %v3717 = vmul.f32 %v3701, %v3701
    %v3718 = vmul.f32 %v3702, %v3702
    %3719 = vadd.xlane.f32.xlu0 %v3703
    %v3720 = vpop.xlane.xlu0 %3719
    %3721 = vadd.xlane.f32.xlu0 %v3704
    %v3722 = vpop.xlane.xlu0 %3721
    %3723 = vadd.xlane.f32.xlu0 %v3705
    %v3724 = vpop.xlane.xlu0 %3723
    %3725 = vadd.xlane.f32.xlu0 %v3706
    %v3726 = vpop.xlane.xlu0 %3725
    %3727 = vadd.xlane.f32.xlu0 %v3707
    %v3728 = vpop.xlane.xlu0 %3727
    %3729 = vadd.xlane.f32.xlu0 %v3708
    %v3730 = vpop.xlane.xlu0 %3729
    %3731 = vadd.xlane.f32.xlu0 %v3709
    %v3732 = vpop.xlane.xlu0 %3731
    %3733 = vadd.xlane.f32.xlu0 %v3710
    %v3734 = vpop.xlane.xlu0 %3733
    %3735 = vadd.xlane.f32.xlu0 %v3711
    %v3736 = vpop.xlane.xlu0 %3735
    %3737 = vadd.xlane.f32.xlu0 %v3712
    %v3738 = vpop.xlane.xlu0 %3737
    %3739 = vadd.xlane.f32.xlu0 %v3713
    %v3740 = vpop.xlane.xlu0 %3739
    %3741 = vadd.xlane.f32.xlu0 %v3714
    %v3742 = vpop.xlane.xlu0 %3741
    %3743 = vadd.xlane.f32.xlu0 %v3715
    %v3744 = vpop.xlane.xlu0 %3743
    %3745 = vadd.xlane.f32.xlu0 %v3716
    %v3746 = vpop.xlane.xlu0 %3745
    %3747 = vadd.xlane.f32.xlu0 %v3717
    %v3748 = vpop.xlane.xlu0 %3747
    %3749 = vadd.xlane.f32.xlu0 %v3718
    %v3750 = vpop.xlane.xlu0 %3749
    %v3751 = vmul.f32 %v3720, %v203
    %v3752 = vmul.f32 %v3722, %v203
    %v3753 = vmul.f32 %v3724, %v203
    %v3754 = vmul.f32 %v3726, %v203
    %v3755 = vmul.f32 %v3728, %v203
    %v3756 = vmul.f32 %v3730, %v203
    %v3757 = vmul.f32 %v3732, %v203
    %v3758 = vmul.f32 %v3734, %v203
    %v3759 = vmul.f32 %v3736, %v203
    %v3760 = vmul.f32 %v3738, %v203
    %v3761 = vmul.f32 %v3740, %v203
    %v3762 = vmul.f32 %v3742, %v203
    %v3763 = vmul.f32 %v3744, %v203
    %v3764 = vmul.f32 %v3746, %v203
    %v3765 = vmul.f32 %v3748, %v203
    %v3766 = vmul.f32 %v3750, %v203
    %v3767 = vadd.f32 %v3751, 1e-05
    %v3768 = vadd.f32 %v3752, 1e-05
    %v3769 = vadd.f32 %v3753, 1e-05
    %v3770 = vadd.f32 %v3754, 1e-05
    %v3771 = vadd.f32 %v3755, 1e-05
    %v3772 = vadd.f32 %v3756, 1e-05
    %v3773 = vadd.f32 %v3757, 1e-05
    %v3774 = vadd.f32 %v3758, 1e-05
    %v3775 = vadd.f32 %v3759, 1e-05
    %v3776 = vadd.f32 %v3760, 1e-05
    %v3777 = vadd.f32 %v3761, 1e-05
    %v3778 = vadd.f32 %v3762, 1e-05
    %v3779 = vadd.f32 %v3763, 1e-05
    %v3780 = vadd.f32 %v3764, 1e-05
    %v3781 = vadd.f32 %v3765, 1e-05
    %v3782 = vadd.f32 %v3766, 1e-05
    %v3783 = vrsqrt.pop %v3767
    %v3784 = vrsqrt.pop %v3768
    %v3785 = vrsqrt.pop %v3769
    %v3786 = vrsqrt.pop %v3770
    %v3787 = vrsqrt.pop %v3771
    %v3788 = vrsqrt.pop %v3772
    %v3789 = vrsqrt.pop %v3773
    %v3790 = vrsqrt.pop %v3774
    %v3791 = vrsqrt.pop %v3775
    %v3792 = vrsqrt.pop %v3776
    %v3793 = vrsqrt.pop %v3777
    %v3794 = vrsqrt.pop %v3778
    %v3795 = vrsqrt.pop %v3779
    %v3796 = vrsqrt.pop %v3780
    %v3797 = vrsqrt.pop %v3781
    %v3798 = vrsqrt.pop %v3782
    %v3799 = vmul.f32 %v3687, %v3783
    %v3800 = vmul.f32 %v3688, %v3784
    %v3801 = vmul.f32 %v3689, %v3785
    %v3802 = vmul.f32 %v3690, %v3786
    %v3803 = vmul.f32 %v3691, %v3787
    %v3804 = vmul.f32 %v3692, %v3788
    %v3805 = vmul.f32 %v3693, %v3789
    %v3806 = vmul.f32 %v3694, %v3790
    %v3807 = vmul.f32 %v3695, %v3791
    %v3808 = vmul.f32 %v3696, %v3792
    %v3809 = vmul.f32 %v3697, %v3793
    %v3810 = vmul.f32 %v3698, %v3794
    %v3811 = vmul.f32 %v3699, %v3795
    %v3812 = vmul.f32 %v3700, %v3796
    %v3813 = vmul.f32 %v3701, %v3797
    %v3814 = vmul.f32 %v3702, %v3798
    %v3816 = vlaneseq
    %v3817 = vshrl.u32 %v3816, 7
    %v3818 = vsub.s32 0, %v3817
    %v3819 = vrot.slane %v3637, %v3818
    %v3821 = vmul.f32 %v3799, %v3819
    %v3822 = vmul.f32 %v3800, %v3819
    %v3823 = vmul.f32 %v3801, %v3819
    %v3824 = vmul.f32 %v3802, %v3819
    %v3825 = vmul.f32 %v3803, %v3819
    %v3826 = vmul.f32 %v3804, %v3819
    %v3827 = vmul.f32 %v3805, %v3819
    %v3828 = vmul.f32 %v3806, %v3819
    %v3829 = vmul.f32 %v3807, %v3819
    %v3830 = vmul.f32 %v3808, %v3819
    %v3831 = vmul.f32 %v3809, %v3819
    %v3832 = vmul.f32 %v3810, %v3819
    %v3833 = vmul.f32 %v3811, %v3819
    %v3834 = vmul.f32 %v3812, %v3819
    %v3835 = vmul.f32 %v3813, %v3819
    %v3836 = vmul.f32 %v3814, %v3819
    %v3838 = vlaneseq
    %v3839 = vshrl.u32 %v3838, 7
    %v3840 = vsub.s32 0, %v3839
    %v3841 = vrot.slane %v3638, %v3840
    %v3843 = vadd.f32 %v3821, %v3841
    %v3844 = vadd.f32 %v3822, %v3841
    %v3845 = vadd.f32 %v3823, %v3841
    %v3846 = vadd.f32 %v3824, %v3841
    %v3847 = vadd.f32 %v3825, %v3841
    %v3848 = vadd.f32 %v3826, %v3841
    %v3849 = vadd.f32 %v3827, %v3841
    %v3850 = vadd.f32 %v3828, %v3841
    %v3851 = vadd.f32 %v3829, %v3841
    %v3852 = vadd.f32 %v3830, %v3841
    %v3853 = vadd.f32 %v3831, %v3841
    %v3854 = vadd.f32 %v3832, %v3841
    %v3855 = vadd.f32 %v3833, %v3841
    %v3856 = vadd.f32 %v3834, %v3841
    %v3857 = vadd.f32 %v3835, %v3841
    %v3858 = vadd.f32 %v3836, %v3841
    %v3859 = vpack.c.bf16 %v3844, %v3843
    %v3860 = vpack.c.bf16 %v3846, %v3845
    %v3861 = vpack.c.bf16 %v3848, %v3847
    %v3862 = vpack.c.bf16 %v3850, %v3849
    %v3863 = vpack.c.bf16 %v3852, %v3851
    %v3864 = vpack.c.bf16 %v3854, %v3853
    %v3865 = vpack.c.bf16 %v3856, %v3855
    %v3866 = vpack.c.bf16 %v3858, %v3857
    %v3867 = vld [vmem:[#allocation11] sm:$0xff]
    %v3868 = vld [vmem:[#allocation11 + $0x8] sm:$0xff]
    %v3869 = vld [vmem:[#allocation11 + $0x10] sm:$0xff]
    %v3870 = vld [vmem:[#allocation11 + $0x18] sm:$0xff]
    %v3871 = vld [vmem:[#allocation11 + $0x20] sm:$0xff]
    %v3872 = vld [vmem:[#allocation11 + $0x28] sm:$0xff]
    %v3873 = vld [vmem:[#allocation11 + $0x30] sm:$0xff]
    %v3874 = vld [vmem:[#allocation11 + $0x38] sm:$0xff]
    %v3875 = vld [vmem:[#allocation11 + $0x40] sm:$0xff]
    %v3876 = vld [vmem:[#allocation11 + $0x48] sm:$0xff]
    %v3877 = vld [vmem:[#allocation11 + $0x50] sm:$0xff]
    %v3878 = vld [vmem:[#allocation11 + $0x58] sm:$0xff]
    %v3879 = vld [vmem:[#allocation11 + $0x60] sm:$0xff]
    %v3880 = vld [vmem:[#allocation11 + $0x68] sm:$0xff]
    %v3881 = vld [vmem:[#allocation11 + $0x70] sm:$0xff]
    %v3882 = vld [vmem:[#allocation11 + $0x78] sm:$0xff]
    %v3899 = vunpack.c.l.b16 %v3867
    %v3900 = vunpack.c.h.b16 %v3867
    %v3901 = vunpack.c.l.b16 %v3868
    %v3902 = vunpack.c.h.b16 %v3868
    %v3903 = vunpack.c.l.b16 %v3869
    %v3904 = vunpack.c.h.b16 %v3869
    %v3905 = vunpack.c.l.b16 %v3870
    %v3906 = vunpack.c.h.b16 %v3870
    %v3907 = vunpack.c.l.b16 %v3871
    %v3908 = vunpack.c.h.b16 %v3871
    %v3909 = vunpack.c.l.b16 %v3872
    %v3910 = vunpack.c.h.b16 %v3872
    %v3911 = vunpack.c.l.b16 %v3873
    %v3912 = vunpack.c.h.b16 %v3873
    %v3913 = vunpack.c.l.b16 %v3874
    %v3914 = vunpack.c.h.b16 %v3874
    %v3915 = vunpack.c.l.b16 %v3875
    %v3916 = vunpack.c.h.b16 %v3875
    %v3917 = vunpack.c.l.b16 %v3876
    %v3918 = vunpack.c.h.b16 %v3876
    %v3919 = vunpack.c.l.b16 %v3877
    %v3920 = vunpack.c.h.b16 %v3877
    %v3921 = vunpack.c.l.b16 %v3878
    %v3922 = vunpack.c.h.b16 %v3878
    %v3923 = vunpack.c.l.b16 %v3879
    %v3924 = vunpack.c.h.b16 %v3879
    %v3925 = vunpack.c.l.b16 %v3880
    %v3926 = vunpack.c.h.b16 %v3880
    %v3927 = vunpack.c.l.b16 %v3881
    %v3928 = vunpack.c.h.b16 %v3881
    %v3929 = vunpack.c.l.b16 %v3882
    %v3930 = vunpack.c.h.b16 %v3882
    %v3931 = vpack.c.b16 %v3901, %v3899
    %v3932 = vpack.c.b16 %v3902, %v3900
    %v3933 = vpack.c.b16 %v3905, %v3903
    %v3934 = vpack.c.b16 %v3906, %v3904
    %v3935 = vpack.c.b16 %v3909, %v3907
    %v3936 = vpack.c.b16 %v3910, %v3908
    %v3937 = vpack.c.b16 %v3913, %v3911
    %v3938 = vpack.c.b16 %v3914, %v3912
    %v3939 = vpack.c.b16 %v3917, %v3915
    %v3940 = vpack.c.b16 %v3918, %v3916
    %v3941 = vpack.c.b16 %v3921, %v3919
    %v3942 = vpack.c.b16 %v3922, %v3920
    %v3943 = vpack.c.b16 %v3925, %v3923
    %v3944 = vpack.c.b16 %v3926, %v3924
    %v3945 = vpack.c.b16 %v3929, %v3927
    %v3946 = vpack.c.b16 %v3930, %v3928
    %3963 = vmatprep.subr.bf16.mxu0 %v3932
    %3964 = vmatpush1.bf16.msra.mxu0 %v3931
    %3965 = vmatprep.subr.bf16.mxu0 %v3934
    %3966 = vmatpush1.bf16.msra.mxu0 %v3933
    %3967 = vmatprep.subr.bf16.mxu0 %v3936
    %3968 = vmatpush1.bf16.msra.mxu0 %v3935
    %3969 = vmatprep.subr.bf16.mxu0 %v3938
    %3970 = vmatpush1.bf16.msra.mxu0 %v3937
    %3971 = vmatprep.subr.bf16.mxu0 %v3940
    %3972 = vmatpush1.bf16.msra.mxu0 %v3939
    %3973 = vmatprep.subr.bf16.mxu0 %v3942
    %3974 = vmatpush1.bf16.msra.mxu0 %v3941
    %3975 = vmatprep.subr.bf16.mxu0 %v3944
    %3976 = vmatpush1.bf16.msra.mxu0 %v3943
    %3977 = vmatprep.subr.bf16.mxu0 %v3946
    %3978 = vmatpush1.bf16.msra.mxu0 %v3945
    %3979 = vmatprep.subr.bf16.mxu0 0
    %3980 = vmatpush1.bf16.msra.mxu0 0
    %3981 = vmatprep.subr.bf16.mxu0 0
    %3982 = vmatpush1.bf16.msra.mxu0 0
    %3983 = vmatprep.subr.bf16.mxu0 0
    %3984 = vmatpush1.bf16.msra.mxu0 0
    %3985 = vmatprep.subr.bf16.mxu0 0
    %3986 = vmatpush1.bf16.msra.mxu0 0
    %3987 = vmatprep.subr.bf16.mxu0 0
    %3988 = vmatpush1.bf16.msra.mxu0 0
    %3989 = vmatprep.subr.bf16.mxu0 0
    %3990 = vmatpush1.bf16.msra.mxu0 0
    %3991 = vmatprep.subr.bf16.mxu0 0
    %3992 = vmatpush1.bf16.msra.mxu0 0
    %3993 = vmatprep.subr.bf16.mxu0 0
    %3994 = vmatpush1.bf16.msra.mxu0 0
    %3995 = vmatprep.mubr.bf16.mxu0 0
    %3996 = vmatmul.mubr.bf16.gmra.mrb[0].mxu0 %v3859
    %v3997 = vpop.f32.mrb[0].mxu0
    %v3998 = vadd.f32 0.0, %v3997
    %v3999 = vpop.f32.mrb[0].mxu0
    %v4000 = vadd.f32 0.0, %v3999
    %v4001 = vpop.f32.mrb[0].mxu0
    %v4002 = vadd.f32 0.0, %v4001
    %v4003 = vpop.f32.mrb[0].mxu0
    %v4004 = vadd.f32 0.0, %v4003
    %4005 = vmatprep.mubr.bf16.mxu0 0
    %4006 = vmatmul.mubr.bf16.gmra.mrb[0].mxu0 %v3860
    %v4007 = vpop.f32.mrb[0].mxu0
    %v4008 = vadd.f32 0.0, %v4007
    %v4009 = vpop.f32.mrb[0].mxu0
    %v4010 = vadd.f32 0.0, %v4009
    %v4011 = vpop.f32.mrb[0].mxu0
    %v4012 = vadd.f32 0.0, %v4011
    %v4013 = vpop.f32.mrb[0].mxu0
    %v4014 = vadd.f32 0.0, %v4013
    %4015 = vmatprep.mubr.bf16.mxu0 0
    %4016 = vmatmul.mubr.bf16.gmra.mrb[0].mxu0 %v3861
    %v4017 = vpop.f32.mrb[0].mxu0
    %v4018 = vadd.f32 0.0, %v4017
    %v4019 = vpop.f32.mrb[0].mxu0
    %v4020 = vadd.f32 0.0, %v4019
    %v4021 = vpop.f32.mrb[0].mxu0
    %v4022 = vadd.f32 0.0, %v4021
    %v4023 = vpop.f32.mrb[0].mxu0
    %v4024 = vadd.f32 0.0, %v4023
    %4025 = vmatprep.mubr.bf16.mxu0 0
    %4026 = vmatmul.mubr.bf16.gmra.mrb[0].mxu0 %v3862
    %v4027 = vpop.f32.mrb[0].mxu0
    %v4028 = vadd.f32 0.0, %v4027
    %v4029 = vpop.f32.mrb[0].mxu0
    %v4030 = vadd.f32 0.0, %v4029
    %v4031 = vpop.f32.mrb[0].mxu0
    %v4032 = vadd.f32 0.0, %v4031
    %v4033 = vpop.f32.mrb[0].mxu0
    %v4034 = vadd.f32 0.0, %v4033
    %4035 = vmatprep.mubr.bf16.mxu0 0
    %4036 = vmatmul.mubr.bf16.gmra.mrb[0].mxu0 %v3863
    %v4037 = vpop.f32.mrb[0].mxu0
    %v4038 = vadd.f32 0.0, %v4037
    %v4039 = vpop.f32.mrb[0].mxu0
    %v4040 = vadd.f32 0.0, %v4039
    %v4041 = vpop.f32.mrb[0].mxu0
    %v4042 = vadd.f32 0.0, %v4041
    %v4043 = vpop.f32.mrb[0].mxu0
    %v4044 = vadd.f32 0.0, %v4043
    %4045 = vmatprep.mubr.bf16.mxu0 0
    %4046 = vmatmul.mubr.bf16.gmra.mrb[0].mxu0 %v3864
    %v4047 = vpop.f32.mrb[0].mxu0
    %v4048 = vadd.f32 0.0, %v4047
    %v4049 = vpop.f32.mrb[0].mxu0
    %v4050 = vadd.f32 0.0, %v4049
    %v4051 = vpop.f32.mrb[0].mxu0
    %v4052 = vadd.f32 0.0, %v4051
    %v4053 = vpop.f32.mrb[0].mxu0
    %v4054 = vadd.f32 0.0, %v4053
    %4055 = vmatprep.mubr.bf16.mxu0 0
    %4056 = vmatmul.mubr.bf16.gmra.mrb[0].mxu0 %v3865
    %v4057 = vpop.f32.mrb[0].mxu0
    %v4058 = vadd.f32 0.0, %v4057
    %v4059 = vpop.f32.mrb[0].mxu0
    %v4060 = vadd.f32 0.0, %v4059
    %v4061 = vpop.f32.mrb[0].mxu0
    %v4062 = vadd.f32 0.0, %v4061
    %v4063 = vpop.f32.mrb[0].mxu0
    %v4064 = vadd.f32 0.0, %v4063
    %4065 = vmatprep.mubr.bf16.mxu0 0
    %4066 = vmatmul.mubr.bf16.gmra.mrb[0].mxu0 %v3866
    %v4067 = vpop.f32.mrb[0].mxu0
    %v4068 = vadd.f32 0.0, %v4067
    %v4069 = vpop.f32.mrb[0].mxu0
    %v4070 = vadd.f32 0.0, %v4069
    %v4071 = vpop.f32.mrb[0].mxu0
    %v4072 = vadd.f32 0.0, %v4071
    %v4073 = vpop.f32.mrb[0].mxu0
    %v4074 = vadd.f32 0.0, %v4073
    %4075 = vdwg.mxu0
    %v4076 = vmul.f32 %v3998, 0.5
    %v4077 = vmul.f32 %v4000, 0.5
    %v4078 = vmul.f32 %v4002, 0.5
    %v4079 = vmul.f32 %v4004, 0.5
    %v4080 = vmul.f32 %v4008, 0.5
    %v4081 = vmul.f32 %v4010, 0.5
    %v4082 = vmul.f32 %v4012, 0.5
    %v4083 = vmul.f32 %v4014, 0.5
    %v4084 = vmul.f32 %v4018, 0.5
    %v4085 = vmul.f32 %v4020, 0.5
    %v4086 = vmul.f32 %v4022, 0.5
    %v4087 = vmul.f32 %v4024, 0.5
    %v4088 = vmul.f32 %v4028, 0.5
    %v4089 = vmul.f32 %v4030, 0.5
    %v4090 = vmul.f32 %v4032, 0.5
    %v4091 = vmul.f32 %v4034, 0.5
    %v4092 = vmul.f32 %v4038, 0.5
    %v4093 = vmul.f32 %v4040, 0.5
    %v4094 = vmul.f32 %v4042, 0.5
    %v4095 = vmul.f32 %v4044, 0.5
    %v4096 = vmul.f32 %v4048, 0.5
    %v4097 = vmul.f32 %v4050, 0.5
    %v4098 = vmul.f32 %v4052, 0.5
    %v4099 = vmul.f32 %v4054, 0.5
    %v4100 = vmul.f32 %v4058, 0.5
    %v4101 = vmul.f32 %v4060, 0.5
    %v4102 = vmul.f32 %v4062, 0.5
    %v4103 = vmul.f32 %v4064, 0.5
    %v4104 = vmul.f32 %v4068, 0.5
    %v4105 = vmul.f32 %v4070, 0.5
    %v4106 = vmul.f32 %v4072, 0.5
    %v4107 = vmul.f32 %v4074, 0.5
    %v4108 = vmul.f32 %v3998, 0.044715
    %v4109 = vmul.f32 %v4000, 0.044715
    %v4110 = vmul.f32 %v4002, 0.044715
    %v4111 = vmul.f32 %v4004, 0.044715
    %v4112 = vmul.f32 %v4008, 0.044715
    %v4113 = vmul.f32 %v4010, 0.044715
    %v4114 = vmul.f32 %v4012, 0.044715
    %v4115 = vmul.f32 %v4014, 0.044715
    %v4116 = vmul.f32 %v4018, 0.044715
    %v4117 = vmul.f32 %v4020, 0.044715
    %v4118 = vmul.f32 %v4022, 0.044715
    %v4119 = vmul.f32 %v4024, 0.044715
    %v4120 = vmul.f32 %v4028, 0.044715
    %v4121 = vmul.f32 %v4030, 0.044715
    %v4122 = vmul.f32 %v4032, 0.044715
    %v4123 = vmul.f32 %v4034, 0.044715
    %v4124 = vmul.f32 %v4038, 0.044715
    %v4125 = vmul.f32 %v4040, 0.044715
    %v4126 = vmul.f32 %v4042, 0.044715
    %v4127 = vmul.f32 %v4044, 0.044715
    %v4128 = vmul.f32 %v4048, 0.044715
    %v4129 = vmul.f32 %v4050, 0.044715
    %v4130 = vmul.f32 %v4052, 0.044715
    %v4131 = vmul.f32 %v4054, 0.044715
    %v4132 = vmul.f32 %v4058, 0.044715
    %v4133 = vmul.f32 %v4060, 0.044715
    %v4134 = vmul.f32 %v4062, 0.044715
    %v4135 = vmul.f32 %v4064, 0.044715
    %v4136 = vmul.f32 %v4068, 0.044715
    %v4137 = vmul.f32 %v4070, 0.044715
    %v4138 = vmul.f32 %v4072, 0.044715
    %v4139 = vmul.f32 %v4074, 0.044715
    %v4140 = vmul.f32 %v4108, %v3998
    %v4141 = vmul.f32 %v4109, %v4000
    %v4142 = vmul.f32 %v4110, %v4002
    %v4143 = vmul.f32 %v4111, %v4004
    %v4144 = vmul.f32 %v4112, %v4008
    %v4145 = vmul.f32 %v4113, %v4010
    %v4146 = vmul.f32 %v4114, %v4012
    %v4147 = vmul.f32 %v4115, %v4014
    %v4148 = vmul.f32 %v4116, %v4018
    %v4149 = vmul.f32 %v4117, %v4020
    %v4150 = vmul.f32 %v4118, %v4022
    %v4151 = vmul.f32 %v4119, %v4024
    %v4152 = vmul.f32 %v4120, %v4028
    %v4153 = vmul.f32 %v4121, %v4030
    %v4154 = vmul.f32 %v4122, %v4032
    %v4155 = vmul.f32 %v4123, %v4034
    %v4156 = vmul.f32 %v4124, %v4038
    %v4157 = vmul.f32 %v4125, %v4040
    %v4158 = vmul.f32 %v4126, %v4042
    %v4159 = vmul.f32 %v4127, %v4044
    %v4160 = vmul.f32 %v4128, %v4048
    %v4161 = vmul.f32 %v4129, %v4050
    %v4162 = vmul.f32 %v4130, %v4052
    %v4163 = vmul.f32 %v4131, %v4054
    %v4164 = vmul.f32 %v4132, %v4058
    %v4165 = vmul.f32 %v4133, %v4060
    %v4166 = vmul.f32 %v4134, %v4062
    %v4167 = vmul.f32 %v4135, %v4064
    %v4168 = vmul.f32 %v4136, %v4068
    %v4169 = vmul.f32 %v4137, %v4070
    %v4170 = vmul.f32 %v4138, %v4072
    %v4171 = vmul.f32 %v4139, %v4074
    %v4172 = vmul.f32 %v4140, %v3998
    %v4173 = vmul.f32 %v4141, %v4000
    %v4174 = vmul.f32 %v4142, %v4002
    %v4175 = vmul.f32 %v4143, %v4004
    %v4176 = vmul.f32 %v4144, %v4008
    %v4177 = vmul.f32 %v4145, %v4010
    %v4178 = vmul.f32 %v4146, %v4012
    %v4179 = vmul.f32 %v4147, %v4014
    %v4180 = vmul.f32 %v4148, %v4018
    %v4181 = vmul.f32 %v4149, %v4020
    %v4182 = vmul.f32 %v4150, %v4022
    %v4183 = vmul.f32 %v4151, %v4024
    %v4184 = vmul.f32 %v4152, %v4028
    %v4185 = vmul.f32 %v4153, %v4030
    %v4186 = vmul.f32 %v4154, %v4032
    %v4187 = vmul.f32 %v4155, %v4034
    %v4188 = vmul.f32 %v4156, %v4038
    %v4189 = vmul.f32 %v4157, %v4040
    %v4190 = vmul.f32 %v4158, %v4042
    %v4191 = vmul.f32 %v4159, %v4044
    %v4192 = vmul.f32 %v4160, %v4048
    %v4193 = vmul.f32 %v4161, %v4050
    %v4194 = vmul.f32 %v4162, %v4052
    %v4195 = vmul.f32 %v4163, %v4054
    %v4196 = vmul.f32 %v4164, %v4058
    %v4197 = vmul.f32 %v4165, %v4060
    %v4198 = vmul.f32 %v4166, %v4062
    %v4199 = vmul.f32 %v4167, %v4064
    %v4200 = vmul.f32 %v4168, %v4068
    %v4201 = vmul.f32 %v4169, %v4070
    %v4202 = vmul.f32 %v4170, %v4072
    %v4203 = vmul.f32 %v4171, %v4074
    %v4204 = vadd.f32 %v3998, %v4172
    %v4205 = vadd.f32 %v4000, %v4173
    %v4206 = vadd.f32 %v4002, %v4174
    %v4207 = vadd.f32 %v4004, %v4175
    %v4208 = vadd.f32 %v4008, %v4176
    %v4209 = vadd.f32 %v4010, %v4177
    %v4210 = vadd.f32 %v4012, %v4178
    %v4211 = vadd.f32 %v4014, %v4179
    %v4212 = vadd.f32 %v4018, %v4180
    %v4213 = vadd.f32 %v4020, %v4181
    %v4214 = vadd.f32 %v4022, %v4182
    %v4215 = vadd.f32 %v4024, %v4183
    %v4216 = vadd.f32 %v4028, %v4184
    %v4217 = vadd.f32 %v4030, %v4185
    %v4218 = vadd.f32 %v4032, %v4186
    %v4219 = vadd.f32 %v4034, %v4187
    %v4220 = vadd.f32 %v4038, %v4188
    %v4221 = vadd.f32 %v4040, %v4189
    %v4222 = vadd.f32 %v4042, %v4190
    %v4223 = vadd.f32 %v4044, %v4191
    %v4224 = vadd.f32 %v4048, %v4192
    %v4225 = vadd.f32 %v4050, %v4193
    %v4226 = vadd.f32 %v4052, %v4194
    %v4227 = vadd.f32 %v4054, %v4195
    %v4228 = vadd.f32 %v4058, %v4196
    %v4229 = vadd.f32 %v4060, %v4197
    %v4230 = vadd.f32 %v4062, %v4198
    %v4231 = vadd.f32 %v4064, %v4199
    %v4232 = vadd.f32 %v4068, %v4200
    %v4233 = vadd.f32 %v4070, %v4201
    %v4234 = vadd.f32 %v4072, %v4202
    %v4235 = vadd.f32 %v4074, %v4203
    %v4236 = vmul.f32 %v4204, 0.7978846
    %v4237 = vmul.f32 %v4205, 0.7978846
    %v4238 = vmul.f32 %v4206, 0.7978846
    %v4239 = vmul.f32 %v4207, 0.7978846
    %v4240 = vmul.f32 %v4208, 0.7978846
    %v4241 = vmul.f32 %v4209, 0.7978846
    %v4242 = vmul.f32 %v4210, 0.7978846
    %v4243 = vmul.f32 %v4211, 0.7978846
    %v4244 = vmul.f32 %v4212, 0.7978846
    %v4245 = vmul.f32 %v4213, 0.7978846
    %v4246 = vmul.f32 %v4214, 0.7978846
    %v4247 = vmul.f32 %v4215, 0.7978846
    %v4248 = vmul.f32 %v4216, 0.7978846
    %v4249 = vmul.f32 %v4217, 0.7978846
    %v4250 = vmul.f32 %v4218, 0.7978846
    %v4251 = vmul.f32 %v4219, 0.7978846
    %v4252 = vmul.f32 %v4220, 0.7978846
    %v4253 = vmul.f32 %v4221, 0.7978846
    %v4254 = vmul.f32 %v4222, 0.7978846
    %v4255 = vmul.f32 %v4223, 0.7978846
    %v4256 = vmul.f32 %v4224, 0.7978846
    %v4257 = vmul.f32 %v4225, 0.7978846
    %v4258 = vmul.f32 %v4226, 0.7978846
    %v4259 = vmul.f32 %v4227, 0.7978846
    %v4260 = vmul.f32 %v4228, 0.7978846
    %v4261 = vmul.f32 %v4229, 0.7978846
    %v4262 = vmul.f32 %v4230, 0.7978846
    %v4263 = vmul.f32 %v4231, 0.7978846
    %v4264 = vmul.f32 %v4232, 0.7978846
    %v4265 = vmul.f32 %v4233, 0.7978846
    %v4266 = vmul.f32 %v4234, 0.7978846
    %v4267 = vmul.f32 %v4235, 0.7978846
    %v4268 = vtanh.pop %v4236
    %v4269 = vtanh.pop %v4237
    %v4270 = vtanh.pop %v4238
    %v4271 = vtanh.pop %v4239
    %v4272 = vtanh.pop %v4240
    %v4273 = vtanh.pop %v4241
    %v4274 = vtanh.pop %v4242
    %v4275 = vtanh.pop %v4243
    %v4276 = vtanh.pop %v4244
    %v4277 = vtanh.pop %v4245
    %v4278 = vtanh.pop %v4246
    %v4279 = vtanh.pop %v4247
    %v4280 = vtanh.pop %v4248
    %v4281 = vtanh.pop %v4249
    %v4282 = vtanh.pop %v4250
    %v4283 = vtanh.pop %v4251
    %v4284 = vtanh.pop %v4252
    %v4285 = vtanh.pop %v4253
    %v4286 = vtanh.pop %v4254
    %v4287 = vtanh.pop %v4255
    %v4288 = vtanh.pop %v4256
    %v4289 = vtanh.pop %v4257
    %v4290 = vtanh.pop %v4258
    %v4291 = vtanh.pop %v4259
    %v4292 = vtanh.pop %v4260
    %v4293 = vtanh.pop %v4261
    %v4294 = vtanh.pop %v4262
    %v4295 = vtanh.pop %v4263
    %v4296 = vtanh.pop %v4264
    %v4297 = vtanh.pop %v4265
    %v4298 = vtanh.pop %v4266
    %v4299 = vtanh.pop %v4267
    %v4300 = vadd.f32 %v4268, 1.0
    %v4301 = vadd.f32 %v4269, 1.0
    %v4302 = vadd.f32 %v4270, 1.0
    %v4303 = vadd.f32 %v4271, 1.0
    %v4304 = vadd.f32 %v4272, 1.0
    %v4305 = vadd.f32 %v4273, 1.0
    %v4306 = vadd.f32 %v4274, 1.0
    %v4307 = vadd.f32 %v4275, 1.0
    %v4308 = vadd.f32 %v4276, 1.0
    %v4309 = vadd.f32 %v4277, 1.0
    %v4310 = vadd.f32 %v4278, 1.0
    %v4311 = vadd.f32 %v4279, 1.0
    %v4312 = vadd.f32 %v4280, 1.0
    %v4313 = vadd.f32 %v4281, 1.0
    %v4314 = vadd.f32 %v4282, 1.0
    %v4315 = vadd.f32 %v4283, 1.0
    %v4316 = vadd.f32 %v4284, 1.0
    %v4317 = vadd.f32 %v4285, 1.0
    %v4318 = vadd.f32 %v4286, 1.0
    %v4319 = vadd.f32 %v4287, 1.0
    %v4320 = vadd.f32 %v4288, 1.0
    %v4321 = vadd.f32 %v4289, 1.0
    %v4322 = vadd.f32 %v4290, 1.0
    %v4323 = vadd.f32 %v4291, 1.0
    %v4324 = vadd.f32 %v4292, 1.0
    %v4325 = vadd.f32 %v4293, 1.0
    %v4326 = vadd.f32 %v4294, 1.0
    %v4327 = vadd.f32 %v4295, 1.0
    %v4328 = vadd.f32 %v4296, 1.0
    %v4329 = vadd.f32 %v4297, 1.0
    %v4330 = vadd.f32 %v4298, 1.0
    %v4331 = vadd.f32 %v4299, 1.0
    %v4332 = vmul.f32 %v4076, %v4300
    %v4333 = vmul.f32 %v4077, %v4301
    %v4334 = vmul.f32 %v4078, %v4302
    %v4335 = vmul.f32 %v4079, %v4303
    %v4336 = vmul.f32 %v4080, %v4304
    %v4337 = vmul.f32 %v4081, %v4305
    %v4338 = vmul.f32 %v4082, %v4306
    %v4339 = vmul.f32 %v4083, %v4307
    %v4340 = vmul.f32 %v4084, %v4308
    %v4341 = vmul.f32 %v4085, %v4309
    %v4342 = vmul.f32 %v4086, %v4310
    %v4343 = vmul.f32 %v4087, %v4311
    %v4344 = vmul.f32 %v4088, %v4312
    %v4345 = vmul.f32 %v4089, %v4313
    %v4346 = vmul.f32 %v4090, %v4314
    %v4347 = vmul.f32 %v4091, %v4315
    %v4348 = vmul.f32 %v4092, %v4316
    %v4349 = vmul.f32 %v4093, %v4317
    %v4350 = vmul.f32 %v4094, %v4318
    %v4351 = vmul.f32 %v4095, %v4319
    %v4352 = vmul.f32 %v4096, %v4320
    %v4353 = vmul.f32 %v4097, %v4321
    %v4354 = vmul.f32 %v4098, %v4322
    %v4355 = vmul.f32 %v4099, %v4323
    %v4356 = vmul.f32 %v4100, %v4324
    %v4357 = vmul.f32 %v4101, %v4325
    %v4358 = vmul.f32 %v4102, %v4326
    %v4359 = vmul.f32 %v4103, %v4327
    %v4360 = vmul.f32 %v4104, %v4328
    %v4361 = vmul.f32 %v4105, %v4329
    %v4362 = vmul.f32 %v4106, %v4330
    %v4363 = vmul.f32 %v4107, %v4331
    %v4364 = vpack.c.bf16 %v4334, %v4332
    %v4365 = vpack.c.bf16 %v4335, %v4333
    %v4366 = vpack.c.bf16 %v4338, %v4336
    %v4367 = vpack.c.bf16 %v4339, %v4337
    %v4368 = vpack.c.bf16 %v4342, %v4340
    %v4369 = vpack.c.bf16 %v4343, %v4341
    %v4370 = vpack.c.bf16 %v4346, %v4344
    %v4371 = vpack.c.bf16 %v4347, %v4345
    %v4372 = vpack.c.bf16 %v4350, %v4348
    %v4373 = vpack.c.bf16 %v4351, %v4349
    %v4374 = vpack.c.bf16 %v4354, %v4352
    %v4375 = vpack.c.bf16 %v4355, %v4353
    %v4376 = vpack.c.bf16 %v4358, %v4356
    %v4377 = vpack.c.bf16 %v4359, %v4357
    %v4378 = vpack.c.bf16 %v4362, %v4360
    %v4379 = vpack.c.bf16 %v4363, %v4361
    %v4380 = vld [vmem:[#allocation13] sm:$0xf]
    %v4381 = vld [vmem:[#allocation13 + $0x4] sm:$0xf]
    %v4382 = vld [vmem:[#allocation13 + $0x8] sm:$0xf]
    %v4383 = vld [vmem:[#allocation13 + $0xc] sm:$0xf]
    %v4384 = vld [vmem:[#allocation13 + $0x10] sm:$0xf]
    %v4385 = vld [vmem:[#allocation13 + $0x14] sm:$0xf]
    %v4386 = vld [vmem:[#allocation13 + $0x18] sm:$0xf]
    %v4387 = vld [vmem:[#allocation13 + $0x1c] sm:$0xf]
    %v4388 = vld [vmem:[#allocation13 + $0x20] sm:$0xf]
    %v4389 = vld [vmem:[#allocation13 + $0x24] sm:$0xf]
    %v4390 = vld [vmem:[#allocation13 + $0x28] sm:$0xf]
    %v4391 = vld [vmem:[#allocation13 + $0x2c] sm:$0xf]
    %v4392 = vld [vmem:[#allocation13 + $0x30] sm:$0xf]
    %v4393 = vld [vmem:[#allocation13 + $0x34] sm:$0xf]
    %v4394 = vld [vmem:[#allocation13 + $0x38] sm:$0xf]
    %v4395 = vld [vmem:[#allocation13 + $0x3c] sm:$0xf]
    %v4396 = vld [vmem:[#allocation13 + $0x40] sm:$0xf]
    %v4397 = vld [vmem:[#allocation13 + $0x44] sm:$0xf]
    %v4398 = vld [vmem:[#allocation13 + $0x48] sm:$0xf]
    %v4399 = vld [vmem:[#allocation13 + $0x4c] sm:$0xf]
    %v4400 = vld [vmem:[#allocation13 + $0x50] sm:$0xf]
    %v4401 = vld [vmem:[#allocation13 + $0x54] sm:$0xf]
    %v4402 = vld [vmem:[#allocation13 + $0x58] sm:$0xf]
    %v4403 = vld [vmem:[#allocation13 + $0x5c] sm:$0xf]
    %v4404 = vld [vmem:[#allocation13 + $0x60] sm:$0xf]
    %v4405 = vld [vmem:[#allocation13 + $0x64] sm:$0xf]
    %v4406 = vld [vmem:[#allocation13 + $0x68] sm:$0xf]
    %v4407 = vld [vmem:[#allocation13 + $0x6c] sm:$0xf]
    %v4408 = vld [vmem:[#allocation13 + $0x70] sm:$0xf]
    %v4409 = vld [vmem:[#allocation13 + $0x74] sm:$0xf]
    %v4410 = vld [vmem:[#allocation13 + $0x78] sm:$0xf]
    %v4411 = vld [vmem:[#allocation13 + $0x7c] sm:$0xf]
    %v4444 = vunpack.c.l.b16 %v4380
    %v4445 = vunpack.c.l.b16 %v4381
    %v4446 = vunpack.c.l.b16 %v4382
    %v4447 = vunpack.c.l.b16 %v4383
    %v4448 = vunpack.c.l.b16 %v4384
    %v4449 = vunpack.c.l.b16 %v4385
    %v4450 = vunpack.c.l.b16 %v4386
    %v4451 = vunpack.c.l.b16 %v4387
    %v4452 = vunpack.c.l.b16 %v4388
    %v4453 = vunpack.c.l.b16 %v4389
    %v4454 = vunpack.c.l.b16 %v4390
    %v4455 = vunpack.c.l.b16 %v4391
    %v4456 = vunpack.c.l.b16 %v4392
    %v4457 = vunpack.c.l.b16 %v4393
    %v4458 = vunpack.c.l.b16 %v4394
    %v4459 = vunpack.c.l.b16 %v4395
    %v4460 = vunpack.c.l.b16 %v4396
    %v4461 = vunpack.c.l.b16 %v4397
    %v4462 = vunpack.c.l.b16 %v4398
    %v4463 = vunpack.c.l.b16 %v4399
    %v4464 = vunpack.c.l.b16 %v4400
    %v4465 = vunpack.c.l.b16 %v4401
    %v4466 = vunpack.c.l.b16 %v4402
    %v4467 = vunpack.c.l.b16 %v4403
    %v4468 = vunpack.c.l.b16 %v4404
    %v4469 = vunpack.c.l.b16 %v4405
    %v4470 = vunpack.c.l.b16 %v4406
    %v4471 = vunpack.c.l.b16 %v4407
    %v4472 = vunpack.c.l.b16 %v4408
    %v4473 = vunpack.c.l.b16 %v4409
    %v4474 = vunpack.c.l.b16 %v4410
    %v4475 = vunpack.c.l.b16 %v4411
    %v4476 = vpack.c.b16 %v4445, %v4444
    %v4477 = vpack.c.b16 %v4447, %v4446
    %v4478 = vpack.c.b16 %v4449, %v4448
    %v4479 = vpack.c.b16 %v4451, %v4450
    %v4480 = vpack.c.b16 %v4453, %v4452
    %v4481 = vpack.c.b16 %v4455, %v4454
    %v4482 = vpack.c.b16 %v4457, %v4456
    %v4483 = vpack.c.b16 %v4459, %v4458
    %v4484 = vpack.c.b16 %v4461, %v4460
    %v4485 = vpack.c.b16 %v4463, %v4462
    %v4486 = vpack.c.b16 %v4465, %v4464
    %v4487 = vpack.c.b16 %v4467, %v4466
    %v4488 = vpack.c.b16 %v4469, %v4468
    %v4489 = vpack.c.b16 %v4471, %v4470
    %v4490 = vpack.c.b16 %v4473, %v4472
    %v4491 = vpack.c.b16 %v4475, %v4474
    %4508 = vmatprep.subr.bf16.mxu0 0
    %4509 = vmatpush1.bf16.msra.mxu0 %v4476
    %4510 = vmatprep.subr.bf16.mxu0 0
    %4511 = vmatpush1.bf16.msra.mxu0 %v4477
    %4512 = vmatprep.subr.bf16.mxu0 0
    %4513 = vmatpush1.bf16.msra.mxu0 %v4478
    %4514 = vmatprep.subr.bf16.mxu0 0
    %4515 = vmatpush1.bf16.msra.mxu0 %v4479
    %4516 = vmatprep.subr.bf16.mxu0 0
    %4517 = vmatpush1.bf16.msra.mxu0 %v4480
    %4518 = vmatprep.subr.bf16.mxu0 0
    %4519 = vmatpush1.bf16.msra.mxu0 %v4481
    %4520 = vmatprep.subr.bf16.mxu0 0
    %4521 = vmatpush1.bf16.msra.mxu0 %v4482
    %4522 = vmatprep.subr.bf16.mxu0 0
    %4523 = vmatpush1.bf16.msra.mxu0 %v4483
    %4524 = vmatprep.subr.bf16.mxu0 0
    %4525 = vmatpush1.bf16.msra.mxu0 %v4484
    %4526 = vmatprep.subr.bf16.mxu0 0
    %4527 = vmatpush1.bf16.msra.mxu0 %v4485
    %4528 = vmatprep.subr.bf16.mxu0 0
    %4529 = vmatpush1.bf16.msra.mxu0 %v4486
    %4530 = vmatprep.subr.bf16.mxu0 0
    %4531 = vmatpush1.bf16.msra.mxu0 %v4487
    %4532 = vmatprep.subr.bf16.mxu0 0
    %4533 = vmatpush1.bf16.msra.mxu0 %v4488
    %4534 = vmatprep.subr.bf16.mxu0 0
    %4535 = vmatpush1.bf16.msra.mxu0 %v4489
    %4536 = vmatprep.subr.bf16.mxu0 0
    %4537 = vmatpush1.bf16.msra.mxu0 %v4490
    %4538 = vmatprep.subr.bf16.mxu0 0
    %4539 = vmatpush1.bf16.msra.mxu0 %v4491
    %4540 = vmatprep.mubr.bf16.mxu0 %v4365
    %4541 = vmatmul.mubr.bf16.gmra.mrb[0].mxu0 %v4364
    %v4542 = vpop.f32.mrb[0].mxu0
    %v4543 = vadd.f32 0.0, %v4542
    %v4544 = vpop.f32.mrb[0].mxu0
    %v4545 = vpop.f32.mrb[0].mxu0
    %v4546 = vadd.f32 0.0, %v4545
    %v4547 = vpop.f32.mrb[0].mxu0
    %4548 = vmatprep.mubr.bf16.mxu0 %v4367
    %4549 = vmatmul.mubr.bf16.gmra.mrb[0].mxu0 %v4366
    %v4550 = vpop.f32.mrb[0].mxu0
    %v4551 = vadd.f32 0.0, %v4550
    %v4552 = vpop.f32.mrb[0].mxu0
    %v4553 = vpop.f32.mrb[0].mxu0
    %v4554 = vadd.f32 0.0, %v4553
    %v4555 = vpop.f32.mrb[0].mxu0
    %4556 = vmatprep.mubr.bf16.mxu0 %v4369
    %4557 = vmatmul.mubr.bf16.gmra.mrb[0].mxu0 %v4368
    %v4558 = vpop.f32.mrb[0].mxu0
    %v4559 = vadd.f32 0.0, %v4558
    %v4560 = vpop.f32.mrb[0].mxu0
    %v4561 = vpop.f32.mrb[0].mxu0
    %v4562 = vadd.f32 0.0, %v4561
    %v4563 = vpop.f32.mrb[0].mxu0
    %4564 = vmatprep.mubr.bf16.mxu0 %v4371
    %4565 = vmatmul.mubr.bf16.gmra.mrb[0].mxu0 %v4370
    %v4566 = vpop.f32.mrb[0].mxu0
    %v4567 = vadd.f32 0.0, %v4566
    %v4568 = vpop.f32.mrb[0].mxu0
    %v4569 = vpop.f32.mrb[0].mxu0
    %v4570 = vadd.f32 0.0, %v4569
    %v4571 = vpop.f32.mrb[0].mxu0
    %4572 = vmatprep.mubr.bf16.mxu0 %v4373
    %4573 = vmatmul.mubr.bf16.gmra.mrb[0].mxu0 %v4372
    %v4574 = vpop.f32.mrb[0].mxu0
    %v4575 = vadd.f32 0.0, %v4574
    %v4576 = vpop.f32.mrb[0].mxu0
    %v4577 = vpop.f32.mrb[0].mxu0
    %v4578 = vadd.f32 0.0, %v4577
    %v4579 = vpop.f32.mrb[0].mxu0
    %4580 = vmatprep.mubr.bf16.mxu0 %v4375
    %4581 = vmatmul.mubr.bf16.gmra.mrb[0].mxu0 %v4374
    %v4582 = vpop.f32.mrb[0].mxu0
    %v4583 = vadd.f32 0.0, %v4582
    %v4584 = vpop.f32.mrb[0].mxu0
    %v4585 = vpop.f32.mrb[0].mxu0
    %v4586 = vadd.f32 0.0, %v4585
    %v4587 = vpop.f32.mrb[0].mxu0
    %4588 = vmatprep.mubr.bf16.mxu0 %v4377
    %4589 = vmatmul.mubr.bf16.gmra.mrb[0].mxu0 %v4376
    %v4590 = vpop.f32.mrb[0].mxu0
    %v4591 = vadd.f32 0.0, %v4590
    %v4592 = vpop.f32.mrb[0].mxu0
    %v4593 = vpop.f32.mrb[0].mxu0
    %v4594 = vadd.f32 0.0, %v4593
    %v4595 = vpop.f32.mrb[0].mxu0
    %4596 = vmatprep.mubr.bf16.mxu0 %v4379
    %4597 = vmatmul.mubr.bf16.gmra.mrb[0].mxu0 %v4378
    %v4598 = vpop.f32.mrb[0].mxu0
    %v4599 = vadd.f32 0.0, %v4598
    %v4600 = vpop.f32.mrb[0].mxu0
    %v4601 = vpop.f32.mrb[0].mxu0
    %v4602 = vadd.f32 0.0, %v4601
    %v4603 = vpop.f32.mrb[0].mxu0
    %4604 = vdwg.mxu0
    %v4605 = vadd.f32 %v3621, %v4543
    %v4606 = vadd.f32 %v3622, %v4546
    %v4607 = vadd.f32 %v3623, %v4551
    %v4608 = vadd.f32 %v3624, %v4554
    %v4609 = vadd.f32 %v3625, %v4559
    %v4610 = vadd.f32 %v3626, %v4562
    %v4611 = vadd.f32 %v3627, %v4567
    %v4612 = vadd.f32 %v3628, %v4570
    %v4613 = vadd.f32 %v3629, %v4575
    %v4614 = vadd.f32 %v3630, %v4578
    %v4615 = vadd.f32 %v3631, %v4583
    %v4616 = vadd.f32 %v3632, %v4586
    %v4617 = vadd.f32 %v3633, %v4591
    %v4618 = vadd.f32 %v3634, %v4594
    %v4619 = vadd.f32 %v3635, %v4599
    %v4620 = vadd.f32 %v3636, %v4602
    %4621 = vst [vmem:[#allocation14] sm:$0xff] %v4605
    %4622 = vst [vmem:[#allocation14 + $0x8] sm:$0xff] %v4606
    %4623 = vst [vmem:[#allocation14 + $0x10] sm:$0xff] %v4607
    %4624 = vst [vmem:[#allocation14 + $0x18] sm:$0xff] %v4608
    %4625 = vst [vmem:[#allocation14 + $0x20] sm:$0xff] %v4609
    %4626 = vst [vmem:[#allocation14 + $0x28] sm:$0xff] %v4610
    %4627 = vst [vmem:[#allocation14 + $0x30] sm:$0xff] %v4611
    %4628 = vst [vmem:[#allocation14 + $0x38] sm:$0xff] %v4612
    %4629 = vst [vmem:[#allocation14 + $0x40] sm:$0xff] %v4613
    %4630 = vst [vmem:[#allocation14 + $0x48] sm:$0xff] %v4614
    %4631 = vst [vmem:[#allocation14 + $0x50] sm:$0xff] %v4615
    %4632 = vst [vmem:[#allocation14 + $0x58] sm:$0xff] %v4616
    %4633 = vst [vmem:[#allocation14 + $0x60] sm:$0xff] %v4617
    %4634 = vst [vmem:[#allocation14 + $0x68] sm:$0xff] %v4618
    %4635 = vst [vmem:[#allocation14 + $0x70] sm:$0xff] %v4619
    %4636 = vst [vmem:[#allocation14 + $0x78] sm:$0xff] %v4620
    // Predicated region
    $region82: #{tpu_custom_call.1} parent=1 // pred_check
      _
    $region83: #{tpu_custom_call.1} parent=1 // pred_check_branch
      %4638 = sbr.rel (0) target = $region85
    $region84: #{tpu_custom_call.1} parent=1 // pred_region
      %s4640 = ssub.s32 2048, 2048
      %4641 = vsyncadd [#allocation4], %s4640
      %s4642 = sshll.u32 [#allocation14], 4
      %s4643 = int_to_ptr.vmem [resolvable:$true] %s4642
      %4648 = dma.vmem_to_hbm [thread:$0]  %s4643, 2048, %s13, [#allocation4], 128, 128, 8
    $region85: #{tpu_custom_call.1} parent=1 // pred_fallthru
      _
    // Predicated region
    $region86: #{tpu_custom_call.1} parent=1 // pred_check
      _
    $region87: #{tpu_custom_call.1} parent=1 // pred_check_branch
      %4650 = sbr.rel (0) target = $region89
    $region88: #{tpu_custom_call.1} parent=1 // pred_region
      %4651 = dma.done [#allocation4], 2048
    $region89: #{tpu_custom_call.1} parent=1 // pred_fallthru
      _
    %4652 = vsyncpa [#allocation3], 1
    %4653 = vsyncpa [#allocation6], 1
    %4654 = vsyncpa [#allocation9], 1
    %4655 = vsyncpa [#allocation12], 1
    %4656 = vsyncpa [#allocation4], 1

</llo_original>
